<compile_context>
chip_gen: v6e
topology: v6e:2x2x1
jax: 0.10.0
libtpu: 0.0.40
codegen_flags: <defaults>
</compile_context>

<pallas_src>
import functools

import jax
import jax.numpy as jnp
from jax.experimental import pallas as pl
from jax.experimental.pallas import tpu as pltpu


def _round_up(x, m):
    return (x + m - 1) // m * m


def _final_height(seq_len):
    # height after the region conv is L-2; each DPCNN block halves it until <= 2
    h = seq_len - 2
    while h > 2:
        h //= 2
    return h


def _rot_rows(x, delta):
    """Row rotation with explicit semantics: y[r] = x[(r + delta) % M]."""
    m = x.shape[0]
    d = delta % m
    if d == 0:
        return x
    return jnp.concatenate([x[d:], x[:d]], axis=0)


def _local_rows(tb, stride, width):
    """(tb*stride, width) int32 map: row index within each length-`stride` slab."""
    m = tb * stride
    r = jax.lax.broadcasted_iota(jnp.int32, (m, width), 0)
    local = r
    for b in range(1, tb):
        local = jnp.where(r >= b * stride, r - b * stride, local)
    return local


def _pool_select(tb, hp, stride_in, m_in):
    """One-hot (tb*hp, m_in) matrix selecting rows {slab*stride_in + 2k}: stride-2
    downsample + cross-slab compaction applied as a single MXU matmul."""
    rows = tb * hp
    i = jax.lax.broadcasted_iota(jnp.int32, (rows, m_in), 0)
    j = jax.lax.broadcasted_iota(jnp.int32, (rows, m_in), 1)
    slab = jnp.zeros((rows, m_in), jnp.int32)
    for b in range(1, tb):
        slab = slab + (i >= b * hp).astype(jnp.int32)
    src = 2 * i + slab * (stride_in - 2 * hp)        # == slab*stride_in + 2*local
    return (j == src).astype(jnp.float32)


def _dpcnn_kernel(embed_ref, wr_ref, br_ref, wc_ref, bc_ref, wfc_ref, bfc_ref,
                  out_ref, *, tb, seq_len):
    f32 = jnp.float32
    c = wc_ref.shape[-1]

    wr = wr_ref[...]        # (3E, C): region conv weights, taps packed into K
    br = br_ref[...]        # (1, C)
    wc = wc_ref[...]        # (3C, C): conv3 weights, taps packed into K
    bc = bc_ref[...]        # (1, C)

    def two_convs_residual(p, local, h):
        # [ZeroPad2d((0,0,1,1)) -> relu -> conv3] x 2, then residual, all slabs at once.
        x = p
        for _ in range(2):
            xr = jnp.maximum(x, 0.0)
            tap_prev = jnp.where(local >= 1, _rot_rows(xr, -1), 0.0)       # row h-1 (0 pad)
            tap_next = jnp.where(local <= h - 2, _rot_rows(xr, 1), 0.0)    # row h+1 (0 pad)
            taps = jnp.concatenate([tap_prev, xr, tap_next], axis=-1)      # (M, 3C)
            x = jnp.dot(taps, wc, preferred_element_type=f32) + bc         # one MXU dot
        return x + p

    def pool(x, local, h, stride):
        # ZeroPad2d((0,0,0,1)) + MaxPool2d((3,1), stride=2): two full-slab maximums,
        # then one one-hot compaction matmul (drops junk rows, stride-2 downsample).
        hp = h // 2
        e2 = jnp.where(local <= h - 2, _rot_rows(x, 1), 0.0)
        e3 = jnp.where(local <= h - 3, _rot_rows(x, 2), 0.0)
        mx = jnp.maximum(jnp.maximum(x, e2), e3)
        sel = _pool_select(tb, hp, stride, x.shape[0])
        return jnp.dot(sel, mx, preferred_element_type=f32), hp

    # Region embedding Conv2d(1, C, (3, E)) as ONE K=3E matmul over all TB slabs.
    emb = embed_ref[...]                                                   # (TB*L, E)
    rtaps = jnp.concatenate([emb, _rot_rows(emb, 1), _rot_rows(emb, 2)], axis=-1)
    px = jnp.dot(rtaps, wr, preferred_element_type=f32) + br               # (TB*L, C)
    # Rows with local >= L-2 are junk (windows crossing slab boundaries); every tap /
    # max that could touch a valid row masks them out and they are dropped at pooling.

    stride = seq_len                      # rows per slab in the current stacked frame
    h = seq_len - 2                       # valid rows per slab
    local = _local_rows(tb, stride, c)
    x = two_convs_residual(px, local, h)

    while h > 2:                          # pyramid unrolled at trace time (static shapes)
        x, h = pool(x, local, h, stride)
        stride = h
        local = _local_rows(tb, stride, c)
        x = two_convs_residual(x, local, h)

    if stride != 1:                       # only for tiny seq_len where no pooling ran
        sel = _pool_select(tb, 1, stride, x.shape[0])
        x = jnp.dot(sel, x, preferred_element_type=f32)

    # h == 1: x is (TB, C) == squeeze(); Linear(C, class_num) with the class dimension
    # padded to 128 lanes so the store is a single unmasked lane-dense block per tile.
    out_ref[...] = jnp.dot(x, wfc_ref[...], preferred_element_type=f32) + bfc_ref[...]


def init_params(key, vocab, embed_size, channel_size, class_num):
    ks = jax.random.split(key, 7)
    s = 0.1
    return dict(
        embedding=jax.random.normal(ks[0], (vocab, embed_size), jnp.float32) * s,
        w_region=jax.random.normal(ks[1], (3, embed_size, channel_size), jnp.float32) * s,
        b_region=jax.random.normal(ks[2], (1, channel_size), jnp.float32) * s,
        w_conv3=jax.random.normal(ks[3], (3, channel_size, channel_size), jnp.float32) * s,
        b_conv3=jax.random.normal(ks[4], (1, channel_size), jnp.float32) * s,
        w_fc=jax.random.normal(ks[5], (channel_size, class_num), jnp.float32) * s,
        b_fc=jax.random.normal(ks[6], (1, class_num), jnp.float32) * s,
    )


def dpcnn_forward(tokens, params, *, batch_tile=None):
    B, L = tokens.shape
    E = params['embedding'].shape[1]
    C = params['w_region'].shape[-1]
    n_class = params['w_fc'].shape[-1]
    assert L >= 3 and _final_height(L) == 1, \
        "sequence length must reduce to final height 1 (required by the fc layer)"

    # Batch tile: multiple of 8 for sublane alignment; grid = Bp/TB parallel blocks.
    TB = batch_tile if batch_tile is not None else min(32, _round_up(B, 8))
    TB = _round_up(TB, 8)
    Bp = _round_up(B, TB)
    nb = Bp // TB

    # TODO(synk): fuse the embedding gather into the kernel (scalar-prefetch token ids
    # + DMA gather) to avoid materializing the (B, L, E) activations in HBM.
    tokens_p = jnp.pad(tokens, ((0, Bp - B), (0, 0)))
    embed = params['embedding'][tokens_p].astype(jnp.float32).reshape(Bp * L, E)

    # Pack the 3 conv taps into the contraction dimension (one MXU dot per conv).
    wr = params['w_region'].astype(jnp.float32).reshape(3 * E, C)
    wc = params['w_conv3'].astype(jnp.float32).reshape(3 * C, C)
    br = params['b_region'].astype(jnp.float32).reshape(1, C)
    bc = params['b_conv3'].astype(jnp.float32).reshape(1, C)

    # Lane-dense output: pad the class dim to a full 128-lane block.
    NP = _round_up(n_class, 128)
    wfc = jnp.zeros((C, NP), jnp.float32).at[:, :n_class].set(params['w_fc'])
    bfc = jnp.zeros((1, NP), jnp.float32).at[:, :n_class].set(
        params['b_fc'].reshape(1, n_class))

    out = pl.pallas_call(
        functools.partial(_dpcnn_kernel, tb=TB, seq_len=L),
        out_shape=jax.ShapeDtypeStruct((Bp, NP), jnp.float32),
        grid_spec=pltpu.PrefetchScalarGridSpec(
            num_scalar_prefetch=0,
            grid=(nb,),
            in_specs=[
                pl.BlockSpec((TB * L, E), lambda b: (b, 0)),   # TB stacked sequences
                pl.BlockSpec((3 * E, C), lambda b: (0, 0)),
                pl.BlockSpec((1, C), lambda b: (0, 0)),
                pl.BlockSpec((3 * C, C), lambda b: (0, 0)),
                pl.BlockSpec((1, C), lambda b: (0, 0)),
                pl.BlockSpec((C, NP), lambda b: (0, 0)),
                pl.BlockSpec((1, NP), lambda b: (0, 0)),
            ],
            out_specs=pl.BlockSpec((TB, NP), lambda b: (b, 0)),
        ),
        compiler_params=pltpu.CompilerParams(
            dimension_semantics=("parallel",)),
    )(embed, wr, br, wc, bc, wfc, bfc)
    return out[:B, :n_class]


def dpcnn_reference(tokens, params):
    """Pure-JAX mirror of the PyTorch DPCNN forward (for correctness checking)."""
    hi = jax.lax.Precision.HIGHEST
    emb = params['embedding'][tokens].astype(jnp.float32)          # (B, L, E)
    L = emb.shape[1]
    H = L - 2

    px = sum(jnp.einsum('ble,ec->blc', emb[:, d:d + H, :], params['w_region'][d],
                        precision=hi) for d in range(3)) + params['b_region']

    def conv3(x):
        hout = x.shape[1] - 2
        return sum(jnp.einsum('bhc,cd->bhd', x[:, d:d + hout, :], params['w_conv3'][d],
                              precision=hi) for d in range(3)) + params['b_conv3']

    def two_convs(p):
        x = p
        for _ in range(2):
            x = conv3(jax.nn.relu(jnp.pad(x, ((0, 0), (1, 1), (0, 0)))))
        return x + p

    x = two_convs(px)
    while x.shape[1] > 2:
        xp = jnp.pad(x, ((0, 0), (0, 1), (0, 0)))
        hp = x.shape[1] // 2
        pooled = jnp.stack([jnp.max(xp[:, 2 * k:2 * k + 3, :], axis=1)
                            for k in range(hp)], axis=1)
        x = two_convs(pooled)
    feat = x[:, 0, :]                                              # final height == 1
    return jnp.einsum('bc,cn->bn', feat, params['w_fc'], precision=hi) + params['b_fc']


if __name__ == "__main__":
    config = dict(vocab_size=50, embed_size=32, channel_size=32, class_num=4)
    B, L = 2, 16                                   # heights: 14 -> 7 -> 3 -> 1

    key = jax.random.PRNGKey(0)
    kp, kx = jax.random.split(key)
    params = init_params(kp, config['vocab_size'], config['embed_size'],
                         config['channel_size'], config['class_num'])
    tokens = jax.random.randint(kx, (B, L), 0, config['vocab_size'], dtype=jnp.int32)

    logits = dpcnn_forward(tokens, params)
    jax.block_until_ready(logits)
    assert logits.shape == (B, config['class_num'])

    ref = dpcnn_reference(tokens, params)
    err = float(jnp.max(jnp.abs(logits - ref)))
    assert err < 2e-2, f"kernel vs reference mismatch: max abs err = {err}"
    print("KERNEL_OK")
</pallas_src>

<mosaic_0001>
module attributes {stable_mosaic.version = 11 : i64} {
  func.func @_dpcnn_kernel(%arg0: i32, %arg1: memref<128x32xf32, #tpu.memory_space<vmem>>, %arg2: memref<96x32xf32, #tpu.memory_space<vmem>>, %arg3: memref<1x32xf32, #tpu.memory_space<vmem>>, %arg4: memref<96x32xf32, #tpu.memory_space<vmem>>, %arg5: memref<1x32xf32, #tpu.memory_space<vmem>>, %arg6: memref<32x128xf32, #tpu.memory_space<vmem>>, %arg7: memref<1x128xf32, #tpu.memory_space<vmem>>, %arg8: memref<8x128xf32, #tpu.memory_space<vmem>>) attributes {dimension_semantics = [#tpu.dimension_semantics<parallel>], iteration_bounds = array<i64: 1>, scalar_prefetch = 0 : i64, scratch_operands = 0 : i64, tpu.core_type = #tpu.core_type<tc>, window_params = [{transform_indices = @transform_0, window_bounds = array<i64: 128, 32>}, {pipeline_mode = #tpu.pipeline_mode<synchronous>, transform_indices = @transform_1, window_bounds = array<i64: 96, 32>}, {pipeline_mode = #tpu.pipeline_mode<synchronous>, transform_indices = @transform_2, window_bounds = array<i64: 1, 32>}, {pipeline_mode = #tpu.pipeline_mode<synchronous>, transform_indices = @transform_3, window_bounds = array<i64: 96, 32>}, {pipeline_mode = #tpu.pipeline_mode<synchronous>, transform_indices = @transform_4, window_bounds = array<i64: 1, 32>}, {pipeline_mode = #tpu.pipeline_mode<synchronous>, transform_indices = @transform_5, window_bounds = array<i64: 32, 128>}, {pipeline_mode = #tpu.pipeline_mode<synchronous>, transform_indices = @transform_6, window_bounds = array<i64: 1, 128>}, {transform_indices = @transform_7, window_bounds = array<i64: 8, 128>}]} {
    %c0 = arith.constant 0 : index
    %c0_0 = arith.constant 0 : index
    %0 = vector.load %arg2[%c0, %c0_0] : memref<96x32xf32, #tpu.memory_space<vmem>>, vector<96x32xf32>
    %c0_1 = arith.constant 0 : index
    %c0_2 = arith.constant 0 : index
    %1 = vector.load %arg3[%c0_1, %c0_2] : memref<1x32xf32, #tpu.memory_space<vmem>>, vector<1x32xf32>
    %c0_3 = arith.constant 0 : index
    %c0_4 = arith.constant 0 : index
    %2 = vector.load %arg4[%c0_3, %c0_4] : memref<96x32xf32, #tpu.memory_space<vmem>>, vector<96x32xf32>
    %c0_5 = arith.constant 0 : index
    %c0_6 = arith.constant 0 : index
    %3 = vector.load %arg5[%c0_5, %c0_6] : memref<1x32xf32, #tpu.memory_space<vmem>>, vector<1x32xf32>
    %c0_7 = arith.constant 0 : index
    %c0_8 = arith.constant 0 : index
    %4 = vector.load %arg1[%c0_7, %c0_8] : memref<128x32xf32, #tpu.memory_space<vmem>>, vector<128x32xf32>
    %5 = vector.extract_strided_slice %4 {offsets = [1, 0], sizes = [127, 32], strides = [1, 1]} : vector<128x32xf32> to vector<127x32xf32>
    %6 = vector.extract_strided_slice %4 {offsets = [0, 0], sizes = [1, 32], strides = [1, 1]} : vector<128x32xf32> to vector<1x32xf32>
    %7 = tpu.concatenate %5, %6 in 0 : vector<127x32xf32>, vector<1x32xf32> -> vector<128x32xf32>
    %8 = vector.extract_strided_slice %4 {offsets = [2, 0], sizes = [126, 32], strides = [1, 1]} : vector<128x32xf32> to vector<126x32xf32>
    %9 = vector.extract_strided_slice %4 {offsets = [0, 0], sizes = [2, 32], strides = [1, 1]} : vector<128x32xf32> to vector<2x32xf32>
    %10 = tpu.concatenate %8, %9 in 0 : vector<126x32xf32>, vector<2x32xf32> -> vector<128x32xf32>
    %11 = tpu.concatenate %4, %7, %10 in 1 : vector<128x32xf32>, vector<128x32xf32>, vector<128x32xf32> -> vector<128x96xf32>
    %cst = arith.constant dense<0.000000e+00> : vector<128x32xf32>
    %12 = tpu.matmul %11, %0, %cst {dimension_numbers = #tpu.dot_dimension_numbers<[1], [0], [0], [1], [0, 0, 1, 1], [], []>} : vector<128x96xf32>, vector<96x32xf32>, vector<128x32xf32> -> vector<128x32xf32>
    %13 = vector.broadcast %1 : vector<1x32xf32> to vector<128x32xf32>
    %14 = arith.addf %12, %13 : vector<128x32xf32>
    %15 = tpu.iota {dimensions = array<i32: 0>} : vector<128x32xi32>
    %c16_i32 = arith.constant 16 : i32
    %16 = vector.broadcast %c16_i32 : i32 to vector<128x32xi32>
    %17 = arith.cmpi sge, %15, %16 : vector<128x32xi32>
    %c16_i32_9 = arith.constant 16 : i32
    %18 = vector.broadcast %c16_i32_9 : i32 to vector<128x32xi32>
    %19 = arith.subi %15, %18 : vector<128x32xi32>
    %20 = arith.select %17, %19, %15 : vector<128x32xi1>, vector<128x32xi32>
    %c32_i32 = arith.constant 32 : i32
    %21 = vector.broadcast %c32_i32 : i32 to vector<128x32xi32>
    %22 = arith.cmpi sge, %15, %21 : vector<128x32xi32>
    %c32_i32_10 = arith.constant 32 : i32
    %23 = vector.broadcast %c32_i32_10 : i32 to vector<128x32xi32>
    %24 = arith.subi %15, %23 : vector<128x32xi32>
    %25 = arith.select %22, %24, %20 : vector<128x32xi1>, vector<128x32xi32>
    %c48_i32 = arith.constant 48 : i32
    %26 = vector.broadcast %c48_i32 : i32 to vector<128x32xi32>
    %27 = arith.cmpi sge, %15, %26 : vector<128x32xi32>
    %c48_i32_11 = arith.constant 48 : i32
    %28 = vector.broadcast %c48_i32_11 : i32 to vector<128x32xi32>
    %29 = arith.subi %15, %28 : vector<128x32xi32>
    %30 = arith.select %27, %29, %25 : vector<128x32xi1>, vector<128x32xi32>
    %c64_i32 = arith.constant 64 : i32
    %31 = vector.broadcast %c64_i32 : i32 to vector<128x32xi32>
    %32 = arith.cmpi sge, %15, %31 : vector<128x32xi32>
    %c64_i32_12 = arith.constant 64 : i32
    %33 = vector.broadcast %c64_i32_12 : i32 to vector<128x32xi32>
    %34 = arith.subi %15, %33 : vector<128x32xi32>
    %35 = arith.select %32, %34, %30 : vector<128x32xi1>, vector<128x32xi32>
    %c80_i32 = arith.constant 80 : i32
    %36 = vector.broadcast %c80_i32 : i32 to vector<128x32xi32>
    %37 = arith.cmpi sge, %15, %36 : vector<128x32xi32>
    %c80_i32_13 = arith.constant 80 : i32
    %38 = vector.broadcast %c80_i32_13 : i32 to vector<128x32xi32>
    %39 = arith.subi %15, %38 : vector<128x32xi32>
    %40 = arith.select %37, %39, %35 : vector<128x32xi1>, vector<128x32xi32>
    %c96_i32 = arith.constant 96 : i32
    %41 = vector.broadcast %c96_i32 : i32 to vector<128x32xi32>
    %42 = arith.cmpi sge, %15, %41 : vector<128x32xi32>
    %c96_i32_14 = arith.constant 96 : i32
    %43 = vector.broadcast %c96_i32_14 : i32 to vector<128x32xi32>
    %44 = arith.subi %15, %43 : vector<128x32xi32>
    %45 = arith.select %42, %44, %40 : vector<128x32xi1>, vector<128x32xi32>
    %c112_i32 = arith.constant 112 : i32
    %46 = vector.broadcast %c112_i32 : i32 to vector<128x32xi32>
    %47 = arith.cmpi sge, %15, %46 : vector<128x32xi32>
    %c112_i32_15 = arith.constant 112 : i32
    %48 = vector.broadcast %c112_i32_15 : i32 to vector<128x32xi32>
    %49 = arith.subi %15, %48 : vector<128x32xi32>
    %50 = arith.select %47, %49, %45 : vector<128x32xi1>, vector<128x32xi32>
    %cst_16 = arith.constant 0.000000e+00 : f32
    %51 = vector.broadcast %cst_16 : f32 to vector<128x32xf32>
    %52 = arith.maximumf %14, %51 : vector<128x32xf32>
    %c1_i32 = arith.constant 1 : i32
    %53 = vector.broadcast %c1_i32 : i32 to vector<128x32xi32>
    %54 = arith.cmpi sge, %50, %53 : vector<128x32xi32>
    %55 = vector.extract_strided_slice %52 {offsets = [127, 0], sizes = [1, 32], strides = [1, 1]} : vector<128x32xf32> to vector<1x32xf32>
    %56 = vector.extract_strided_slice %52 {offsets = [0, 0], sizes = [127, 32], strides = [1, 1]} : vector<128x32xf32> to vector<127x32xf32>
    %57 = tpu.concatenate %55, %56 in 0 : vector<1x32xf32>, vector<127x32xf32> -> vector<128x32xf32>
    %cst_17 = arith.constant 0.000000e+00 : f32
    %58 = vector.broadcast %cst_17 : f32 to vector<128x32xf32>
    %59 = arith.select %54, %57, %58 : vector<128x32xi1>, vector<128x32xf32>
    %c12_i32 = arith.constant 12 : i32
    %60 = vector.broadcast %c12_i32 : i32 to vector<128x32xi32>
    %61 = arith.cmpi sle, %50, %60 : vector<128x32xi32>
    %62 = vector.extract_strided_slice %52 {offsets = [1, 0], sizes = [127, 32], strides = [1, 1]} : vector<128x32xf32> to vector<127x32xf32>
    %63 = vector.extract_strided_slice %52 {offsets = [0, 0], sizes = [1, 32], strides = [1, 1]} : vector<128x32xf32> to vector<1x32xf32>
    %64 = tpu.concatenate %62, %63 in 0 : vector<127x32xf32>, vector<1x32xf32> -> vector<128x32xf32>
    %cst_18 = arith.constant 0.000000e+00 : f32
    %65 = vector.broadcast %cst_18 : f32 to vector<128x32xf32>
    %66 = arith.select %61, %64, %65 : vector<128x32xi1>, vector<128x32xf32>
    %67 = tpu.concatenate %59, %52, %66 in 1 : vector<128x32xf32>, vector<128x32xf32>, vector<128x32xf32> -> vector<128x96xf32>
    %cst_19 = arith.constant dense<0.000000e+00> : vector<128x32xf32>
    %68 = tpu.matmul %67, %2, %cst_19 {dimension_numbers = #tpu.dot_dimension_numbers<[1], [0], [0], [1], [0, 0, 1, 1], [], []>} : vector<128x96xf32>, vector<96x32xf32>, vector<128x32xf32> -> vector<128x32xf32>
    %69 = vector.broadcast %3 : vector<1x32xf32> to vector<128x32xf32>
    %70 = arith.addf %68, %69 : vector<128x32xf32>
    %cst_20 = arith.constant 0.000000e+00 : f32
    %71 = vector.broadcast %cst_20 : f32 to vector<128x32xf32>
    %72 = arith.maximumf %70, %71 : vector<128x32xf32>
    %c1_i32_21 = arith.constant 1 : i32
    %73 = vector.broadcast %c1_i32_21 : i32 to vector<128x32xi32>
    %74 = arith.cmpi sge, %50, %73 : vector<128x32xi32>
    %75 = vector.extract_strided_slice %72 {offsets = [127, 0], sizes = [1, 32], strides = [1, 1]} : vector<128x32xf32> to vector<1x32xf32>
    %76 = vector.extract_strided_slice %72 {offsets = [0, 0], sizes = [127, 32], strides = [1, 1]} : vector<128x32xf32> to vector<127x32xf32>
    %77 = tpu.concatenate %75, %76 in 0 : vector<1x32xf32>, vector<127x32xf32> -> vector<128x32xf32>
    %cst_22 = arith.constant 0.000000e+00 : f32
    %78 = vector.broadcast %cst_22 : f32 to vector<128x32xf32>
    %79 = arith.select %74, %77, %78 : vector<128x32xi1>, vector<128x32xf32>
    %c12_i32_23 = arith.constant 12 : i32
    %80 = vector.broadcast %c12_i32_23 : i32 to vector<128x32xi32>
    %81 = arith.cmpi sle, %50, %80 : vector<128x32xi32>
    %82 = vector.extract_strided_slice %72 {offsets = [1, 0], sizes = [127, 32], strides = [1, 1]} : vector<128x32xf32> to vector<127x32xf32>
    %83 = vector.extract_strided_slice %72 {offsets = [0, 0], sizes = [1, 32], strides = [1, 1]} : vector<128x32xf32> to vector<1x32xf32>
    %84 = tpu.concatenate %82, %83 in 0 : vector<127x32xf32>, vector<1x32xf32> -> vector<128x32xf32>
    %cst_24 = arith.constant 0.000000e+00 : f32
    %85 = vector.broadcast %cst_24 : f32 to vector<128x32xf32>
    %86 = arith.select %81, %84, %85 : vector<128x32xi1>, vector<128x32xf32>
    %87 = tpu.concatenate %79, %72, %86 in 1 : vector<128x32xf32>, vector<128x32xf32>, vector<128x32xf32> -> vector<128x96xf32>
    %cst_25 = arith.constant dense<0.000000e+00> : vector<128x32xf32>
    %88 = tpu.matmul %87, %2, %cst_25 {dimension_numbers = #tpu.dot_dimension_numbers<[1], [0], [0], [1], [0, 0, 1, 1], [], []>} : vector<128x96xf32>, vector<96x32xf32>, vector<128x32xf32> -> vector<128x32xf32>
    %89 = vector.broadcast %3 : vector<1x32xf32> to vector<128x32xf32>
    %90 = arith.addf %88, %89 : vector<128x32xf32>
    %91 = arith.addf %90, %14 : vector<128x32xf32>
    %c12_i32_26 = arith.constant 12 : i32
    %92 = vector.broadcast %c12_i32_26 : i32 to vector<128x32xi32>
    %93 = arith.cmpi sle, %50, %92 : vector<128x32xi32>
    %94 = vector.extract_strided_slice %91 {offsets = [1, 0], sizes = [127, 32], strides = [1, 1]} : vector<128x32xf32> to vector<127x32xf32>
    %95 = vector.extract_strided_slice %91 {offsets = [0, 0], sizes = [1, 32], strides = [1, 1]} : vector<128x32xf32> to vector<1x32xf32>
    %96 = tpu.concatenate %94, %95 in 0 : vector<127x32xf32>, vector<1x32xf32> -> vector<128x32xf32>
    %cst_27 = arith.constant 0.000000e+00 : f32
    %97 = vector.broadcast %cst_27 : f32 to vector<128x32xf32>
    %98 = arith.select %93, %96, %97 : vector<128x32xi1>, vector<128x32xf32>
    %c11_i32 = arith.constant 11 : i32
    %99 = vector.broadcast %c11_i32 : i32 to vector<128x32xi32>
    %100 = arith.cmpi sle, %50, %99 : vector<128x32xi32>
    %101 = vector.extract_strided_slice %91 {offsets = [2, 0], sizes = [126, 32], strides = [1, 1]} : vector<128x32xf32> to vector<126x32xf32>
    %102 = vector.extract_strided_slice %91 {offsets = [0, 0], sizes = [2, 32], strides = [1, 1]} : vector<128x32xf32> to vector<2x32xf32>
    %103 = tpu.concatenate %101, %102 in 0 : vector<126x32xf32>, vector<2x32xf32> -> vector<128x32xf32>
    %cst_28 = arith.constant 0.000000e+00 : f32
    %104 = vector.broadcast %cst_28 : f32 to vector<128x32xf32>
    %105 = arith.select %100, %103, %104 : vector<128x32xi1>, vector<128x32xf32>
    %106 = arith.maximumf %91, %98 : vector<128x32xf32>
    %107 = arith.maximumf %106, %105 : vector<128x32xf32>
    %108 = tpu.iota {dimensions = array<i32: 0>} : vector<56x128xi32>
    %109 = tpu.iota {dimensions = array<i32: 1>} : vector<56x128xi32>
    %c0_i32 = arith.constant 0 : i32
    %110 = vector.broadcast %c0_i32 : i32 to vector<56x128xi32>
    %c7_i32 = arith.constant 7 : i32
    %111 = vector.broadcast %c7_i32 : i32 to vector<56x128xi32>
    %112 = arith.cmpi sge, %108, %111 : vector<56x128xi32>
    %113 = arith.extui %112 : vector<56x128xi1> to vector<56x128xi32>
    %114 = arith.addi %110, %113 : vector<56x128xi32>
    %c14_i32 = arith.constant 14 : i32
    %115 = vector.broadcast %c14_i32 : i32 to vector<56x128xi32>
    %116 = arith.cmpi sge, %108, %115 : vector<56x128xi32>
    %117 = arith.extui %116 : vector<56x128xi1> to vector<56x128xi32>
    %118 = arith.addi %114, %117 : vector<56x128xi32>
    %c21_i32 = arith.constant 21 : i32
    %119 = vector.broadcast %c21_i32 : i32 to vector<56x128xi32>
    %120 = arith.cmpi sge, %108, %119 : vector<56x128xi32>
    %121 = arith.extui %120 : vector<56x128xi1> to vector<56x128xi32>
    %122 = arith.addi %118, %121 : vector<56x128xi32>
    %c28_i32 = arith.constant 28 : i32
    %123 = vector.broadcast %c28_i32 : i32 to vector<56x128xi32>
    %124 = arith.cmpi sge, %108, %123 : vector<56x128xi32>
    %125 = arith.extui %124 : vector<56x128xi1> to vector<56x128xi32>
    %126 = arith.addi %122, %125 : vector<56x128xi32>
    %c35_i32 = arith.constant 35 : i32
    %127 = vector.broadcast %c35_i32 : i32 to vector<56x128xi32>
    %128 = arith.cmpi sge, %108, %127 : vector<56x128xi32>
    %129 = arith.extui %128 : vector<56x128xi1> to vector<56x128xi32>
    %130 = arith.addi %126, %129 : vector<56x128xi32>
    %c42_i32 = arith.constant 42 : i32
    %131 = vector.broadcast %c42_i32 : i32 to vector<56x128xi32>
    %132 = arith.cmpi sge, %108, %131 : vector<56x128xi32>
    %133 = arith.extui %132 : vector<56x128xi1> to vector<56x128xi32>
    %134 = arith.addi %130, %133 : vector<56x128xi32>
    %c49_i32 = arith.constant 49 : i32
    %135 = vector.broadcast %c49_i32 : i32 to vector<56x128xi32>
    %136 = arith.cmpi sge, %108, %135 : vector<56x128xi32>
    %137 = arith.extui %136 : vector<56x128xi1> to vector<56x128xi32>
    %138 = arith.addi %134, %137 : vector<56x128xi32>
    %c2_i32 = arith.constant 2 : i32
    %139 = vector.broadcast %c2_i32 : i32 to vector<56x128xi32>
    %140 = arith.muli %139, %108 : vector<56x128xi32>
    %c2_i32_29 = arith.constant 2 : i32
    %141 = vector.broadcast %c2_i32_29 : i32 to vector<56x128xi32>
    %142 = arith.muli %138, %141 : vector<56x128xi32>
    %143 = arith.addi %140, %142 : vector<56x128xi32>
    %144 = arith.cmpi eq, %109, %143 : vector<56x128xi32>
    %145 = arith.extui %144 : vector<56x128xi1> to vector<56x128xi32>
    %146 = arith.sitofp %145 : vector<56x128xi32> to vector<56x128xf32>
    %cst_30 = arith.constant dense<0.000000e+00> : vector<56x32xf32>
    %147 = tpu.matmul %146, %107, %cst_30 {dimension_numbers = #tpu.dot_dimension_numbers<[1], [0], [0], [1], [0, 0, 1, 1], [], []>} : vector<56x128xf32>, vector<128x32xf32>, vector<56x32xf32> -> vector<56x32xf32>
    %148 = tpu.iota {dimensions = array<i32: 0>} : vector<56x32xi32>
    %c7_i32_31 = arith.constant 7 : i32
    %149 = vector.broadcast %c7_i32_31 : i32 to vector<56x32xi32>
    %150 = arith.cmpi sge, %148, %149 : vector<56x32xi32>
    %c7_i32_32 = arith.constant 7 : i32
    %151 = vector.broadcast %c7_i32_32 : i32 to vector<56x32xi32>
    %152 = arith.subi %148, %151 : vector<56x32xi32>
    %153 = arith.select %150, %152, %148 : vector<56x32xi1>, vector<56x32xi32>
    %c14_i32_33 = arith.constant 14 : i32
    %154 = vector.broadcast %c14_i32_33 : i32 to vector<56x32xi32>
    %155 = arith.cmpi sge, %148, %154 : vector<56x32xi32>
    %c14_i32_34 = arith.constant 14 : i32
    %156 = vector.broadcast %c14_i32_34 : i32 to vector<56x32xi32>
    %157 = arith.subi %148, %156 : vector<56x32xi32>
    %158 = arith.select %155, %157, %153 : vector<56x32xi1>, vector<56x32xi32>
    %c21_i32_35 = arith.constant 21 : i32
    %159 = vector.broadcast %c21_i32_35 : i32 to vector<56x32xi32>
    %160 = arith.cmpi sge, %148, %159 : vector<56x32xi32>
    %c21_i32_36 = arith.constant 21 : i32
    %161 = vector.broadcast %c21_i32_36 : i32 to vector<56x32xi32>
    %162 = arith.subi %148, %161 : vector<56x32xi32>
    %163 = arith.select %160, %162, %158 : vector<56x32xi1>, vector<56x32xi32>
    %c28_i32_37 = arith.constant 28 : i32
    %164 = vector.broadcast %c28_i32_37 : i32 to vector<56x32xi32>
    %165 = arith.cmpi sge, %148, %164 : vector<56x32xi32>
    %c28_i32_38 = arith.constant 28 : i32
    %166 = vector.broadcast %c28_i32_38 : i32 to vector<56x32xi32>
    %167 = arith.subi %148, %166 : vector<56x32xi32>
    %168 = arith.select %165, %167, %163 : vector<56x32xi1>, vector<56x32xi32>
    %c35_i32_39 = arith.constant 35 : i32
    %169 = vector.broadcast %c35_i32_39 : i32 to vector<56x32xi32>
    %170 = arith.cmpi sge, %148, %169 : vector<56x32xi32>
    %c35_i32_40 = arith.constant 35 : i32
    %171 = vector.broadcast %c35_i32_40 : i32 to vector<56x32xi32>
    %172 = arith.subi %148, %171 : vector<56x32xi32>
    %173 = arith.select %170, %172, %168 : vector<56x32xi1>, vector<56x32xi32>
    %c42_i32_41 = arith.constant 42 : i32
    %174 = vector.broadcast %c42_i32_41 : i32 to vector<56x32xi32>
    %175 = arith.cmpi sge, %148, %174 : vector<56x32xi32>
    %c42_i32_42 = arith.constant 42 : i32
    %176 = vector.broadcast %c42_i32_42 : i32 to vector<56x32xi32>
    %177 = arith.subi %148, %176 : vector<56x32xi32>
    %178 = arith.select %175, %177, %173 : vector<56x32xi1>, vector<56x32xi32>
    %c49_i32_43 = arith.constant 49 : i32
    %179 = vector.broadcast %c49_i32_43 : i32 to vector<56x32xi32>
    %180 = arith.cmpi sge, %148, %179 : vector<56x32xi32>
    %c49_i32_44 = arith.constant 49 : i32
    %181 = vector.broadcast %c49_i32_44 : i32 to vector<56x32xi32>
    %182 = arith.subi %148, %181 : vector<56x32xi32>
    %183 = arith.select %180, %182, %178 : vector<56x32xi1>, vector<56x32xi32>
    %cst_45 = arith.constant 0.000000e+00 : f32
    %184 = vector.broadcast %cst_45 : f32 to vector<56x32xf32>
    %185 = arith.maximumf %147, %184 : vector<56x32xf32>
    %c1_i32_46 = arith.constant 1 : i32
    %186 = vector.broadcast %c1_i32_46 : i32 to vector<56x32xi32>
    %187 = arith.cmpi sge, %183, %186 : vector<56x32xi32>
    %188 = vector.extract_strided_slice %185 {offsets = [55, 0], sizes = [1, 32], strides = [1, 1]} : vector<56x32xf32> to vector<1x32xf32>
    %189 = vector.extract_strided_slice %185 {offsets = [0, 0], sizes = [55, 32], strides = [1, 1]} : vector<56x32xf32> to vector<55x32xf32>
    %190 = tpu.concatenate %188, %189 in 0 : vector<1x32xf32>, vector<55x32xf32> -> vector<56x32xf32>
    %cst_47 = arith.constant 0.000000e+00 : f32
    %191 = vector.broadcast %cst_47 : f32 to vector<56x32xf32>
    %192 = arith.select %187, %190, %191 : vector<56x32xi1>, vector<56x32xf32>
    %c5_i32 = arith.constant 5 : i32
    %193 = vector.broadcast %c5_i32 : i32 to vector<56x32xi32>
    %194 = arith.cmpi sle, %183, %193 : vector<56x32xi32>
    %195 = vector.extract_strided_slice %185 {offsets = [1, 0], sizes = [55, 32], strides = [1, 1]} : vector<56x32xf32> to vector<55x32xf32>
    %196 = vector.extract_strided_slice %185 {offsets = [0, 0], sizes = [1, 32], strides = [1, 1]} : vector<56x32xf32> to vector<1x32xf32>
    %197 = tpu.concatenate %195, %196 in 0 : vector<55x32xf32>, vector<1x32xf32> -> vector<56x32xf32>
    %cst_48 = arith.constant 0.000000e+00 : f32
    %198 = vector.broadcast %cst_48 : f32 to vector<56x32xf32>
    %199 = arith.select %194, %197, %198 : vector<56x32xi1>, vector<56x32xf32>
    %200 = tpu.concatenate %192, %185, %199 in 1 : vector<56x32xf32>, vector<56x32xf32>, vector<56x32xf32> -> vector<56x96xf32>
    %cst_49 = arith.constant dense<0.000000e+00> : vector<56x32xf32>
    %201 = tpu.matmul %200, %2, %cst_49 {dimension_numbers = #tpu.dot_dimension_numbers<[1], [0], [0], [1], [0, 0, 1, 1], [], []>} : vector<56x96xf32>, vector<96x32xf32>, vector<56x32xf32> -> vector<56x32xf32>
    %202 = vector.broadcast %3 : vector<1x32xf32> to vector<56x32xf32>
    %203 = arith.addf %201, %202 : vector<56x32xf32>
    %cst_50 = arith.constant 0.000000e+00 : f32
    %204 = vector.broadcast %cst_50 : f32 to vector<56x32xf32>
    %205 = arith.maximumf %203, %204 : vector<56x32xf32>
    %c1_i32_51 = arith.constant 1 : i32
    %206 = vector.broadcast %c1_i32_51 : i32 to vector<56x32xi32>
    %207 = arith.cmpi sge, %183, %206 : vector<56x32xi32>
    %208 = vector.extract_strided_slice %205 {offsets = [55, 0], sizes = [1, 32], strides = [1, 1]} : vector<56x32xf32> to vector<1x32xf32>
    %209 = vector.extract_strided_slice %205 {offsets = [0, 0], sizes = [55, 32], strides = [1, 1]} : vector<56x32xf32> to vector<55x32xf32>
    %210 = tpu.concatenate %208, %209 in 0 : vector<1x32xf32>, vector<55x32xf32> -> vector<56x32xf32>
    %cst_52 = arith.constant 0.000000e+00 : f32
    %211 = vector.broadcast %cst_52 : f32 to vector<56x32xf32>
    %212 = arith.select %207, %210, %211 : vector<56x32xi1>, vector<56x32xf32>
    %c5_i32_53 = arith.constant 5 : i32
    %213 = vector.broadcast %c5_i32_53 : i32 to vector<56x32xi32>
    %214 = arith.cmpi sle, %183, %213 : vector<56x32xi32>
    %215 = vector.extract_strided_slice %205 {offsets = [1, 0], sizes = [55, 32], strides = [1, 1]} : vector<56x32xf32> to vector<55x32xf32>
    %216 = vector.extract_strided_slice %205 {offsets = [0, 0], sizes = [1, 32], strides = [1, 1]} : vector<56x32xf32> to vector<1x32xf32>
    %217 = tpu.concatenate %215, %216 in 0 : vector<55x32xf32>, vector<1x32xf32> -> vector<56x32xf32>
    %cst_54 = arith.constant 0.000000e+00 : f32
    %218 = vector.broadcast %cst_54 : f32 to vector<56x32xf32>
    %219 = arith.select %214, %217, %218 : vector<56x32xi1>, vector<56x32xf32>
    %220 = tpu.concatenate %212, %205, %219 in 1 : vector<56x32xf32>, vector<56x32xf32>, vector<56x32xf32> -> vector<56x96xf32>
    %cst_55 = arith.constant dense<0.000000e+00> : vector<56x32xf32>
    %221 = tpu.matmul %220, %2, %cst_55 {dimension_numbers = #tpu.dot_dimension_numbers<[1], [0], [0], [1], [0, 0, 1, 1], [], []>} : vector<56x96xf32>, vector<96x32xf32>, vector<56x32xf32> -> vector<56x32xf32>
    %222 = vector.broadcast %3 : vector<1x32xf32> to vector<56x32xf32>
    %223 = arith.addf %221, %222 : vector<56x32xf32>
    %224 = arith.addf %223, %147 : vector<56x32xf32>
    %c5_i32_56 = arith.constant 5 : i32
    %225 = vector.broadcast %c5_i32_56 : i32 to vector<56x32xi32>
    %226 = arith.cmpi sle, %183, %225 : vector<56x32xi32>
    %227 = vector.extract_strided_slice %224 {offsets = [1, 0], sizes = [55, 32], strides = [1, 1]} : vector<56x32xf32> to vector<55x32xf32>
    %228 = vector.extract_strided_slice %224 {offsets = [0, 0], sizes = [1, 32], strides = [1, 1]} : vector<56x32xf32> to vector<1x32xf32>
    %229 = tpu.concatenate %227, %228 in 0 : vector<55x32xf32>, vector<1x32xf32> -> vector<56x32xf32>
    %cst_57 = arith.constant 0.000000e+00 : f32
    %230 = vector.broadcast %cst_57 : f32 to vector<56x32xf32>
    %231 = arith.select %226, %229, %230 : vector<56x32xi1>, vector<56x32xf32>
    %c4_i32 = arith.constant 4 : i32
    %232 = vector.broadcast %c4_i32 : i32 to vector<56x32xi32>
    %233 = arith.cmpi sle, %183, %232 : vector<56x32xi32>
    %234 = vector.extract_strided_slice %224 {offsets = [2, 0], sizes = [54, 32], strides = [1, 1]} : vector<56x32xf32> to vector<54x32xf32>
    %235 = vector.extract_strided_slice %224 {offsets = [0, 0], sizes = [2, 32], strides = [1, 1]} : vector<56x32xf32> to vector<2x32xf32>
    %236 = tpu.concatenate %234, %235 in 0 : vector<54x32xf32>, vector<2x32xf32> -> vector<56x32xf32>
    %cst_58 = arith.constant 0.000000e+00 : f32
    %237 = vector.broadcast %cst_58 : f32 to vector<56x32xf32>
    %238 = arith.select %233, %236, %237 : vector<56x32xi1>, vector<56x32xf32>
    %239 = arith.maximumf %224, %231 : vector<56x32xf32>
    %240 = arith.maximumf %239, %238 : vector<56x32xf32>
    %241 = tpu.iota {dimensions = array<i32: 0>} : vector<24x56xi32>
    %242 = tpu.iota {dimensions = array<i32: 1>} : vector<24x56xi32>
    %c0_i32_59 = arith.constant 0 : i32
    %243 = vector.broadcast %c0_i32_59 : i32 to vector<24x56xi32>
    %c3_i32 = arith.constant 3 : i32
    %244 = vector.broadcast %c3_i32 : i32 to vector<24x56xi32>
    %245 = arith.cmpi sge, %241, %244 : vector<24x56xi32>
    %246 = arith.extui %245 : vector<24x56xi1> to vector<24x56xi32>
    %247 = arith.addi %243, %246 : vector<24x56xi32>
    %c6_i32 = arith.constant 6 : i32
    %248 = vector.broadcast %c6_i32 : i32 to vector<24x56xi32>
    %249 = arith.cmpi sge, %241, %248 : vector<24x56xi32>
    %250 = arith.extui %249 : vector<24x56xi1> to vector<24x56xi32>
    %251 = arith.addi %247, %250 : vector<24x56xi32>
    %c9_i32 = arith.constant 9 : i32
    %252 = vector.broadcast %c9_i32 : i32 to vector<24x56xi32>
    %253 = arith.cmpi sge, %241, %252 : vector<24x56xi32>
    %254 = arith.extui %253 : vector<24x56xi1> to vector<24x56xi32>
    %255 = arith.addi %251, %254 : vector<24x56xi32>
    %c12_i32_60 = arith.constant 12 : i32
    %256 = vector.broadcast %c12_i32_60 : i32 to vector<24x56xi32>
    %257 = arith.cmpi sge, %241, %256 : vector<24x56xi32>
    %258 = arith.extui %257 : vector<24x56xi1> to vector<24x56xi32>
    %259 = arith.addi %255, %258 : vector<24x56xi32>
    %c15_i32 = arith.constant 15 : i32
    %260 = vector.broadcast %c15_i32 : i32 to vector<24x56xi32>
    %261 = arith.cmpi sge, %241, %260 : vector<24x56xi32>
    %262 = arith.extui %261 : vector<24x56xi1> to vector<24x56xi32>
    %263 = arith.addi %259, %262 : vector<24x56xi32>
    %c18_i32 = arith.constant 18 : i32
    %264 = vector.broadcast %c18_i32 : i32 to vector<24x56xi32>
    %265 = arith.cmpi sge, %241, %264 : vector<24x56xi32>
    %266 = arith.extui %265 : vector<24x56xi1> to vector<24x56xi32>
    %267 = arith.addi %263, %266 : vector<24x56xi32>
    %c21_i32_61 = arith.constant 21 : i32
    %268 = vector.broadcast %c21_i32_61 : i32 to vector<24x56xi32>
    %269 = arith.cmpi sge, %241, %268 : vector<24x56xi32>
    %270 = arith.extui %269 : vector<24x56xi1> to vector<24x56xi32>
    %271 = arith.addi %267, %270 : vector<24x56xi32>
    %c2_i32_62 = arith.constant 2 : i32
    %272 = vector.broadcast %c2_i32_62 : i32 to vector<24x56xi32>
    %273 = arith.muli %272, %241 : vector<24x56xi32>
    %c1_i32_63 = arith.constant 1 : i32
    %274 = vector.broadcast %c1_i32_63 : i32 to vector<24x56xi32>
    %275 = arith.muli %271, %274 : vector<24x56xi32>
    %276 = arith.addi %273, %275 : vector<24x56xi32>
    %277 = arith.cmpi eq, %242, %276 : vector<24x56xi32>
    %278 = arith.extui %277 : vector<24x56xi1> to vector<24x56xi32>
    %279 = arith.sitofp %278 : vector<24x56xi32> to vector<24x56xf32>
    %cst_64 = arith.constant dense<0.000000e+00> : vector<24x32xf32>
    %280 = tpu.matmul %279, %240, %cst_64 {dimension_numbers = #tpu.dot_dimension_numbers<[1], [0], [0], [1], [0, 0, 1, 1], [], []>} : vector<24x56xf32>, vector<56x32xf32>, vector<24x32xf32> -> vector<24x32xf32>
    %281 = tpu.iota {dimensions = array<i32: 0>} : vector<24x32xi32>
    %c3_i32_65 = arith.constant 3 : i32
    %282 = vector.broadcast %c3_i32_65 : i32 to vector<24x32xi32>
    %283 = arith.cmpi sge, %281, %282 : vector<24x32xi32>
    %c3_i32_66 = arith.constant 3 : i32
    %284 = vector.broadcast %c3_i32_66 : i32 to vector<24x32xi32>
    %285 = arith.subi %281, %284 : vector<24x32xi32>
    %286 = arith.select %283, %285, %281 : vector<24x32xi1>, vector<24x32xi32>
    %c6_i32_67 = arith.constant 6 : i32
    %287 = vector.broadcast %c6_i32_67 : i32 to vector<24x32xi32>
    %288 = arith.cmpi sge, %281, %287 : vector<24x32xi32>
    %c6_i32_68 = arith.constant 6 : i32
    %289 = vector.broadcast %c6_i32_68 : i32 to vector<24x32xi32>
    %290 = arith.subi %281, %289 : vector<24x32xi32>
    %291 = arith.select %288, %290, %286 : vector<24x32xi1>, vector<24x32xi32>
    %c9_i32_69 = arith.constant 9 : i32
    %292 = vector.broadcast %c9_i32_69 : i32 to vector<24x32xi32>
    %293 = arith.cmpi sge, %281, %292 : vector<24x32xi32>
    %c9_i32_70 = arith.constant 9 : i32
    %294 = vector.broadcast %c9_i32_70 : i32 to vector<24x32xi32>
    %295 = arith.subi %281, %294 : vector<24x32xi32>
    %296 = arith.select %293, %295, %291 : vector<24x32xi1>, vector<24x32xi32>
    %c12_i32_71 = arith.constant 12 : i32
    %297 = vector.broadcast %c12_i32_71 : i32 to vector<24x32xi32>
    %298 = arith.cmpi sge, %281, %297 : vector<24x32xi32>
    %c12_i32_72 = arith.constant 12 : i32
    %299 = vector.broadcast %c12_i32_72 : i32 to vector<24x32xi32>
    %300 = arith.subi %281, %299 : vector<24x32xi32>
    %301 = arith.select %298, %300, %296 : vector<24x32xi1>, vector<24x32xi32>
    %c15_i32_73 = arith.constant 15 : i32
    %302 = vector.broadcast %c15_i32_73 : i32 to vector<24x32xi32>
    %303 = arith.cmpi sge, %281, %302 : vector<24x32xi32>
    %c15_i32_74 = arith.constant 15 : i32
    %304 = vector.broadcast %c15_i32_74 : i32 to vector<24x32xi32>
    %305 = arith.subi %281, %304 : vector<24x32xi32>
    %306 = arith.select %303, %305, %301 : vector<24x32xi1>, vector<24x32xi32>
    %c18_i32_75 = arith.constant 18 : i32
    %307 = vector.broadcast %c18_i32_75 : i32 to vector<24x32xi32>
    %308 = arith.cmpi sge, %281, %307 : vector<24x32xi32>
    %c18_i32_76 = arith.constant 18 : i32
    %309 = vector.broadcast %c18_i32_76 : i32 to vector<24x32xi32>
    %310 = arith.subi %281, %309 : vector<24x32xi32>
    %311 = arith.select %308, %310, %306 : vector<24x32xi1>, vector<24x32xi32>
    %c21_i32_77 = arith.constant 21 : i32
    %312 = vector.broadcast %c21_i32_77 : i32 to vector<24x32xi32>
    %313 = arith.cmpi sge, %281, %312 : vector<24x32xi32>
    %c21_i32_78 = arith.constant 21 : i32
    %314 = vector.broadcast %c21_i32_78 : i32 to vector<24x32xi32>
    %315 = arith.subi %281, %314 : vector<24x32xi32>
    %316 = arith.select %313, %315, %311 : vector<24x32xi1>, vector<24x32xi32>
    %cst_79 = arith.constant 0.000000e+00 : f32
    %317 = vector.broadcast %cst_79 : f32 to vector<24x32xf32>
    %318 = arith.maximumf %280, %317 : vector<24x32xf32>
    %c1_i32_80 = arith.constant 1 : i32
    %319 = vector.broadcast %c1_i32_80 : i32 to vector<24x32xi32>
    %320 = arith.cmpi sge, %316, %319 : vector<24x32xi32>
    %321 = vector.extract_strided_slice %318 {offsets = [23, 0], sizes = [1, 32], strides = [1, 1]} : vector<24x32xf32> to vector<1x32xf32>
    %322 = vector.extract_strided_slice %318 {offsets = [0, 0], sizes = [23, 32], strides = [1, 1]} : vector<24x32xf32> to vector<23x32xf32>
    %323 = tpu.concatenate %321, %322 in 0 : vector<1x32xf32>, vector<23x32xf32> -> vector<24x32xf32>
    %cst_81 = arith.constant 0.000000e+00 : f32
    %324 = vector.broadcast %cst_81 : f32 to vector<24x32xf32>
    %325 = arith.select %320, %323, %324 : vector<24x32xi1>, vector<24x32xf32>
    %c1_i32_82 = arith.constant 1 : i32
    %326 = vector.broadcast %c1_i32_82 : i32 to vector<24x32xi32>
    %327 = arith.cmpi sle, %316, %326 : vector<24x32xi32>
    %328 = vector.extract_strided_slice %318 {offsets = [1, 0], sizes = [23, 32], strides = [1, 1]} : vector<24x32xf32> to vector<23x32xf32>
    %329 = vector.extract_strided_slice %318 {offsets = [0, 0], sizes = [1, 32], strides = [1, 1]} : vector<24x32xf32> to vector<1x32xf32>
    %330 = tpu.concatenate %328, %329 in 0 : vector<23x32xf32>, vector<1x32xf32> -> vector<24x32xf32>
    %cst_83 = arith.constant 0.000000e+00 : f32
    %331 = vector.broadcast %cst_83 : f32 to vector<24x32xf32>
    %332 = arith.select %327, %330, %331 : vector<24x32xi1>, vector<24x32xf32>
    %333 = tpu.concatenate %325, %318, %332 in 1 : vector<24x32xf32>, vector<24x32xf32>, vector<24x32xf32> -> vector<24x96xf32>
    %cst_84 = arith.constant dense<0.000000e+00> : vector<24x32xf32>
    %334 = tpu.matmul %333, %2, %cst_84 {dimension_numbers = #tpu.dot_dimension_numbers<[1], [0], [0], [1], [0, 0, 1, 1], [], []>} : vector<24x96xf32>, vector<96x32xf32>, vector<24x32xf32> -> vector<24x32xf32>
    %335 = vector.broadcast %3 : vector<1x32xf32> to vector<24x32xf32>
    %336 = arith.addf %334, %335 : vector<24x32xf32>
    %cst_85 = arith.constant 0.000000e+00 : f32
    %337 = vector.broadcast %cst_85 : f32 to vector<24x32xf32>
    %338 = arith.maximumf %336, %337 : vector<24x32xf32>
    %c1_i32_86 = arith.constant 1 : i32
    %339 = vector.broadcast %c1_i32_86 : i32 to vector<24x32xi32>
    %340 = arith.cmpi sge, %316, %339 : vector<24x32xi32>
    %341 = vector.extract_strided_slice %338 {offsets = [23, 0], sizes = [1, 32], strides = [1, 1]} : vector<24x32xf32> to vector<1x32xf32>
    %342 = vector.extract_strided_slice %338 {offsets = [0, 0], sizes = [23, 32], strides = [1, 1]} : vector<24x32xf32> to vector<23x32xf32>
    %343 = tpu.concatenate %341, %342 in 0 : vector<1x32xf32>, vector<23x32xf32> -> vector<24x32xf32>
    %cst_87 = arith.constant 0.000000e+00 : f32
    %344 = vector.broadcast %cst_87 : f32 to vector<24x32xf32>
    %345 = arith.select %340, %343, %344 : vector<24x32xi1>, vector<24x32xf32>
    %c1_i32_88 = arith.constant 1 : i32
    %346 = vector.broadcast %c1_i32_88 : i32 to vector<24x32xi32>
    %347 = arith.cmpi sle, %316, %346 : vector<24x32xi32>
    %348 = vector.extract_strided_slice %338 {offsets = [1, 0], sizes = [23, 32], strides = [1, 1]} : vector<24x32xf32> to vector<23x32xf32>
    %349 = vector.extract_strided_slice %338 {offsets = [0, 0], sizes = [1, 32], strides = [1, 1]} : vector<24x32xf32> to vector<1x32xf32>
    %350 = tpu.concatenate %348, %349 in 0 : vector<23x32xf32>, vector<1x32xf32> -> vector<24x32xf32>
    %cst_89 = arith.constant 0.000000e+00 : f32
    %351 = vector.broadcast %cst_89 : f32 to vector<24x32xf32>
    %352 = arith.select %347, %350, %351 : vector<24x32xi1>, vector<24x32xf32>
    %353 = tpu.concatenate %345, %338, %352 in 1 : vector<24x32xf32>, vector<24x32xf32>, vector<24x32xf32> -> vector<24x96xf32>
    %cst_90 = arith.constant dense<0.000000e+00> : vector<24x32xf32>
    %354 = tpu.matmul %353, %2, %cst_90 {dimension_numbers = #tpu.dot_dimension_numbers<[1], [0], [0], [1], [0, 0, 1, 1], [], []>} : vector<24x96xf32>, vector<96x32xf32>, vector<24x32xf32> -> vector<24x32xf32>
    %355 = vector.broadcast %3 : vector<1x32xf32> to vector<24x32xf32>
    %356 = arith.addf %354, %355 : vector<24x32xf32>
    %357 = arith.addf %356, %280 : vector<24x32xf32>
    %c1_i32_91 = arith.constant 1 : i32
    %358 = vector.broadcast %c1_i32_91 : i32 to vector<24x32xi32>
    %359 = arith.cmpi sle, %316, %358 : vector<24x32xi32>
    %360 = vector.extract_strided_slice %357 {offsets = [1, 0], sizes = [23, 32], strides = [1, 1]} : vector<24x32xf32> to vector<23x32xf32>
    %361 = vector.extract_strided_slice %357 {offsets = [0, 0], sizes = [1, 32], strides = [1, 1]} : vector<24x32xf32> to vector<1x32xf32>
    %362 = tpu.concatenate %360, %361 in 0 : vector<23x32xf32>, vector<1x32xf32> -> vector<24x32xf32>
    %cst_92 = arith.constant 0.000000e+00 : f32
    %363 = vector.broadcast %cst_92 : f32 to vector<24x32xf32>
    %364 = arith.select %359, %362, %363 : vector<24x32xi1>, vector<24x32xf32>
    %c0_i32_93 = arith.constant 0 : i32
    %365 = vector.broadcast %c0_i32_93 : i32 to vector<24x32xi32>
    %366 = arith.cmpi sle, %316, %365 : vector<24x32xi32>
    %367 = vector.extract_strided_slice %357 {offsets = [2, 0], sizes = [22, 32], strides = [1, 1]} : vector<24x32xf32> to vector<22x32xf32>
    %368 = vector.extract_strided_slice %357 {offsets = [0, 0], sizes = [2, 32], strides = [1, 1]} : vector<24x32xf32> to vector<2x32xf32>
    %369 = tpu.concatenate %367, %368 in 0 : vector<22x32xf32>, vector<2x32xf32> -> vector<24x32xf32>
    %cst_94 = arith.constant 0.000000e+00 : f32
    %370 = vector.broadcast %cst_94 : f32 to vector<24x32xf32>
    %371 = arith.select %366, %369, %370 : vector<24x32xi1>, vector<24x32xf32>
    %372 = arith.maximumf %357, %364 : vector<24x32xf32>
    %373 = arith.maximumf %372, %371 : vector<24x32xf32>
    %374 = tpu.iota {dimensions = array<i32: 0>} : vector<8x24xi32>
    %375 = tpu.iota {dimensions = array<i32: 1>} : vector<8x24xi32>
    %c0_i32_95 = arith.constant 0 : i32
    %376 = vector.broadcast %c0_i32_95 : i32 to vector<8x24xi32>
    %c1_i32_96 = arith.constant 1 : i32
    %377 = vector.broadcast %c1_i32_96 : i32 to vector<8x24xi32>
    %378 = arith.cmpi sge, %374, %377 : vector<8x24xi32>
    %379 = arith.extui %378 : vector<8x24xi1> to vector<8x24xi32>
    %380 = arith.addi %376, %379 : vector<8x24xi32>
    %c2_i32_97 = arith.constant 2 : i32
    %381 = vector.broadcast %c2_i32_97 : i32 to vector<8x24xi32>
    %382 = arith.cmpi sge, %374, %381 : vector<8x24xi32>
    %383 = arith.extui %382 : vector<8x24xi1> to vector<8x24xi32>
    %384 = arith.addi %380, %383 : vector<8x24xi32>
    %c3_i32_98 = arith.constant 3 : i32
    %385 = vector.broadcast %c3_i32_98 : i32 to vector<8x24xi32>
    %386 = arith.cmpi sge, %374, %385 : vector<8x24xi32>
    %387 = arith.extui %386 : vector<8x24xi1> to vector<8x24xi32>
    %388 = arith.addi %384, %387 : vector<8x24xi32>
    %c4_i32_99 = arith.constant 4 : i32
    %389 = vector.broadcast %c4_i32_99 : i32 to vector<8x24xi32>
    %390 = arith.cmpi sge, %374, %389 : vector<8x24xi32>
    %391 = arith.extui %390 : vector<8x24xi1> to vector<8x24xi32>
    %392 = arith.addi %388, %391 : vector<8x24xi32>
    %c5_i32_100 = arith.constant 5 : i32
    %393 = vector.broadcast %c5_i32_100 : i32 to vector<8x24xi32>
    %394 = arith.cmpi sge, %374, %393 : vector<8x24xi32>
    %395 = arith.extui %394 : vector<8x24xi1> to vector<8x24xi32>
    %396 = arith.addi %392, %395 : vector<8x24xi32>
    %c6_i32_101 = arith.constant 6 : i32
    %397 = vector.broadcast %c6_i32_101 : i32 to vector<8x24xi32>
    %398 = arith.cmpi sge, %374, %397 : vector<8x24xi32>
    %399 = arith.extui %398 : vector<8x24xi1> to vector<8x24xi32>
    %400 = arith.addi %396, %399 : vector<8x24xi32>
    %c7_i32_102 = arith.constant 7 : i32
    %401 = vector.broadcast %c7_i32_102 : i32 to vector<8x24xi32>
    %402 = arith.cmpi sge, %374, %401 : vector<8x24xi32>
    %403 = arith.extui %402 : vector<8x24xi1> to vector<8x24xi32>
    %404 = arith.addi %400, %403 : vector<8x24xi32>
    %c2_i32_103 = arith.constant 2 : i32
    %405 = vector.broadcast %c2_i32_103 : i32 to vector<8x24xi32>
    %406 = arith.muli %405, %374 : vector<8x24xi32>
    %c1_i32_104 = arith.constant 1 : i32
    %407 = vector.broadcast %c1_i32_104 : i32 to vector<8x24xi32>
    %408 = arith.muli %404, %407 : vector<8x24xi32>
    %409 = arith.addi %406, %408 : vector<8x24xi32>
    %410 = arith.cmpi eq, %375, %409 : vector<8x24xi32>
    %411 = arith.extui %410 : vector<8x24xi1> to vector<8x24xi32>
    %412 = arith.sitofp %411 : vector<8x24xi32> to vector<8x24xf32>
    %cst_105 = arith.constant dense<0.000000e+00> : vector<8x32xf32>
    %413 = tpu.matmul %412, %373, %cst_105 {dimension_numbers = #tpu.dot_dimension_numbers<[1], [0], [0], [1], [0, 0, 1, 1], [], []>} : vector<8x24xf32>, vector<24x32xf32>, vector<8x32xf32> -> vector<8x32xf32>
    %414 = tpu.iota {dimensions = array<i32: 0>} : vector<8x32xi32>
    %c1_i32_106 = arith.constant 1 : i32
    %415 = vector.broadcast %c1_i32_106 : i32 to vector<8x32xi32>
    %416 = arith.cmpi sge, %414, %415 : vector<8x32xi32>
    %c1_i32_107 = arith.constant 1 : i32
    %417 = vector.broadcast %c1_i32_107 : i32 to vector<8x32xi32>
    %418 = arith.subi %414, %417 : vector<8x32xi32>
    %419 = arith.select %416, %418, %414 : vector<8x32xi1>, vector<8x32xi32>
    %c2_i32_108 = arith.constant 2 : i32
    %420 = vector.broadcast %c2_i32_108 : i32 to vector<8x32xi32>
    %421 = arith.cmpi sge, %414, %420 : vector<8x32xi32>
    %c2_i32_109 = arith.constant 2 : i32
    %422 = vector.broadcast %c2_i32_109 : i32 to vector<8x32xi32>
    %423 = arith.subi %414, %422 : vector<8x32xi32>
    %424 = arith.select %421, %423, %419 : vector<8x32xi1>, vector<8x32xi32>
    %c3_i32_110 = arith.constant 3 : i32
    %425 = vector.broadcast %c3_i32_110 : i32 to vector<8x32xi32>
    %426 = arith.cmpi sge, %414, %425 : vector<8x32xi32>
    %c3_i32_111 = arith.constant 3 : i32
    %427 = vector.broadcast %c3_i32_111 : i32 to vector<8x32xi32>
    %428 = arith.subi %414, %427 : vector<8x32xi32>
    %429 = arith.select %426, %428, %424 : vector<8x32xi1>, vector<8x32xi32>
    %c4_i32_112 = arith.constant 4 : i32
    %430 = vector.broadcast %c4_i32_112 : i32 to vector<8x32xi32>
    %431 = arith.cmpi sge, %414, %430 : vector<8x32xi32>
    %c4_i32_113 = arith.constant 4 : i32
    %432 = vector.broadcast %c4_i32_113 : i32 to vector<8x32xi32>
    %433 = arith.subi %414, %432 : vector<8x32xi32>
    %434 = arith.select %431, %433, %429 : vector<8x32xi1>, vector<8x32xi32>
    %c5_i32_114 = arith.constant 5 : i32
    %435 = vector.broadcast %c5_i32_114 : i32 to vector<8x32xi32>
    %436 = arith.cmpi sge, %414, %435 : vector<8x32xi32>
    %c5_i32_115 = arith.constant 5 : i32
    %437 = vector.broadcast %c5_i32_115 : i32 to vector<8x32xi32>
    %438 = arith.subi %414, %437 : vector<8x32xi32>
    %439 = arith.select %436, %438, %434 : vector<8x32xi1>, vector<8x32xi32>
    %c6_i32_116 = arith.constant 6 : i32
    %440 = vector.broadcast %c6_i32_116 : i32 to vector<8x32xi32>
    %441 = arith.cmpi sge, %414, %440 : vector<8x32xi32>
    %c6_i32_117 = arith.constant 6 : i32
    %442 = vector.broadcast %c6_i32_117 : i32 to vector<8x32xi32>
    %443 = arith.subi %414, %442 : vector<8x32xi32>
    %444 = arith.select %441, %443, %439 : vector<8x32xi1>, vector<8x32xi32>
    %c7_i32_118 = arith.constant 7 : i32
    %445 = vector.broadcast %c7_i32_118 : i32 to vector<8x32xi32>
    %446 = arith.cmpi sge, %414, %445 : vector<8x32xi32>
    %c7_i32_119 = arith.constant 7 : i32
    %447 = vector.broadcast %c7_i32_119 : i32 to vector<8x32xi32>
    %448 = arith.subi %414, %447 : vector<8x32xi32>
    %449 = arith.select %446, %448, %444 : vector<8x32xi1>, vector<8x32xi32>
    %cst_120 = arith.constant 0.000000e+00 : f32
    %450 = vector.broadcast %cst_120 : f32 to vector<8x32xf32>
    %451 = arith.maximumf %413, %450 : vector<8x32xf32>
    %c1_i32_121 = arith.constant 1 : i32
    %452 = vector.broadcast %c1_i32_121 : i32 to vector<8x32xi32>
    %453 = arith.cmpi sge, %449, %452 : vector<8x32xi32>
    %454 = vector.extract_strided_slice %451 {offsets = [7, 0], sizes = [1, 32], strides = [1, 1]} : vector<8x32xf32> to vector<1x32xf32>
    %455 = vector.extract_strided_slice %451 {offsets = [0, 0], sizes = [7, 32], strides = [1, 1]} : vector<8x32xf32> to vector<7x32xf32>
    %456 = tpu.concatenate %454, %455 in 0 : vector<1x32xf32>, vector<7x32xf32> -> vector<8x32xf32>
    %cst_122 = arith.constant 0.000000e+00 : f32
    %457 = vector.broadcast %cst_122 : f32 to vector<8x32xf32>
    %458 = arith.select %453, %456, %457 : vector<8x32xi1>, vector<8x32xf32>
    %c-1_i32 = arith.constant -1 : i32
    %459 = vector.broadcast %c-1_i32 : i32 to vector<8x32xi32>
    %460 = arith.cmpi sle, %449, %459 : vector<8x32xi32>
    %461 = vector.extract_strided_slice %451 {offsets = [1, 0], sizes = [7, 32], strides = [1, 1]} : vector<8x32xf32> to vector<7x32xf32>
    %462 = vector.extract_strided_slice %451 {offsets = [0, 0], sizes = [1, 32], strides = [1, 1]} : vector<8x32xf32> to vector<1x32xf32>
    %463 = tpu.concatenate %461, %462 in 0 : vector<7x32xf32>, vector<1x32xf32> -> vector<8x32xf32>
    %cst_123 = arith.constant 0.000000e+00 : f32
    %464 = vector.broadcast %cst_123 : f32 to vector<8x32xf32>
    %465 = arith.select %460, %463, %464 : vector<8x32xi1>, vector<8x32xf32>
    %466 = tpu.concatenate %458, %451, %465 in 1 : vector<8x32xf32>, vector<8x32xf32>, vector<8x32xf32> -> vector<8x96xf32>
    %cst_124 = arith.constant dense<0.000000e+00> : vector<8x32xf32>
    %467 = tpu.matmul %466, %2, %cst_124 {dimension_numbers = #tpu.dot_dimension_numbers<[1], [0], [0], [1], [0, 0, 1, 1], [], []>} : vector<8x96xf32>, vector<96x32xf32>, vector<8x32xf32> -> vector<8x32xf32>
    %468 = vector.broadcast %3 : vector<1x32xf32> to vector<8x32xf32>
    %469 = arith.addf %467, %468 : vector<8x32xf32>
    %cst_125 = arith.constant 0.000000e+00 : f32
    %470 = vector.broadcast %cst_125 : f32 to vector<8x32xf32>
    %471 = arith.maximumf %469, %470 : vector<8x32xf32>
    %c1_i32_126 = arith.constant 1 : i32
    %472 = vector.broadcast %c1_i32_126 : i32 to vector<8x32xi32>
    %473 = arith.cmpi sge, %449, %472 : vector<8x32xi32>
    %474 = vector.extract_strided_slice %471 {offsets = [7, 0], sizes = [1, 32], strides = [1, 1]} : vector<8x32xf32> to vector<1x32xf32>
    %475 = vector.extract_strided_slice %471 {offsets = [0, 0], sizes = [7, 32], strides = [1, 1]} : vector<8x32xf32> to vector<7x32xf32>
    %476 = tpu.concatenate %474, %475 in 0 : vector<1x32xf32>, vector<7x32xf32> -> vector<8x32xf32>
    %cst_127 = arith.constant 0.000000e+00 : f32
    %477 = vector.broadcast %cst_127 : f32 to vector<8x32xf32>
    %478 = arith.select %473, %476, %477 : vector<8x32xi1>, vector<8x32xf32>
    %c-1_i32_128 = arith.constant -1 : i32
    %479 = vector.broadcast %c-1_i32_128 : i32 to vector<8x32xi32>
    %480 = arith.cmpi sle, %449, %479 : vector<8x32xi32>
    %481 = vector.extract_strided_slice %471 {offsets = [1, 0], sizes = [7, 32], strides = [1, 1]} : vector<8x32xf32> to vector<7x32xf32>
    %482 = vector.extract_strided_slice %471 {offsets = [0, 0], sizes = [1, 32], strides = [1, 1]} : vector<8x32xf32> to vector<1x32xf32>
    %483 = tpu.concatenate %481, %482 in 0 : vector<7x32xf32>, vector<1x32xf32> -> vector<8x32xf32>
    %cst_129 = arith.constant 0.000000e+00 : f32
    %484 = vector.broadcast %cst_129 : f32 to vector<8x32xf32>
    %485 = arith.select %480, %483, %484 : vector<8x32xi1>, vector<8x32xf32>
    %486 = tpu.concatenate %478, %471, %485 in 1 : vector<8x32xf32>, vector<8x32xf32>, vector<8x32xf32> -> vector<8x96xf32>
    %cst_130 = arith.constant dense<0.000000e+00> : vector<8x32xf32>
    %487 = tpu.matmul %486, %2, %cst_130 {dimension_numbers = #tpu.dot_dimension_numbers<[1], [0], [0], [1], [0, 0, 1, 1], [], []>} : vector<8x96xf32>, vector<96x32xf32>, vector<8x32xf32> -> vector<8x32xf32>
    %488 = vector.broadcast %3 : vector<1x32xf32> to vector<8x32xf32>
    %489 = arith.addf %487, %488 : vector<8x32xf32>
    %490 = arith.addf %489, %413 : vector<8x32xf32>
    %c0_131 = arith.constant 0 : index
    %c0_132 = arith.constant 0 : index
    %491 = vector.load %arg6[%c0_131, %c0_132] : memref<32x128xf32, #tpu.memory_space<vmem>>, vector<32x128xf32>
    %cst_133 = arith.constant dense<0.000000e+00> : vector<8x128xf32>
    %492 = tpu.matmul %490, %491, %cst_133 {dimension_numbers = #tpu.dot_dimension_numbers<[1], [0], [0], [1], [0, 0, 1, 1], [], []>} : vector<8x32xf32>, vector<32x128xf32>, vector<8x128xf32> -> vector<8x128xf32>
    %c0_134 = arith.constant 0 : index
    %c0_135 = arith.constant 0 : index
    %493 = vector.load %arg7[%c0_134, %c0_135] : memref<1x128xf32, #tpu.memory_space<vmem>>, vector<1x128xf32>
    %494 = vector.broadcast %493 : vector<1x128xf32> to vector<8x128xf32>
    %495 = arith.addf %492, %494 : vector<8x128xf32>
    %c0_136 = arith.constant 0 : index
    %c0_137 = arith.constant 0 : index
    %496 = vector.load %arg8[%c0_136, %c0_137] : memref<8x128xf32, #tpu.memory_space<vmem>>, vector<8x128xf32>
    tpu.vector_store %arg8[%c0_136, %c0_137], %495 {strides = array<i32>} : memref<8x128xf32, #tpu.memory_space<vmem>>, vector<8x128xf32>,
    return
  }
  func.func @transform_0(%arg0: i32) -> (i32, i32) {
    %c0_i32 = arith.constant 0 : i32
    %c0_i32_0 = arith.constant 0 : i32
    return %arg0, %c0_i32 : i32, i32
  }
  func.func @transform_1(%arg0: i32) -> (i32, i32) {
    %c0_i32 = arith.constant 0 : i32
    %c0_i32_0 = arith.constant 0 : i32
    %c0_i32_1 = arith.constant 0 : i32
    return %c0_i32, %c0_i32_0 : i32, i32
  }
  func.func @transform_2(%arg0: i32) -> (i32, i32) {
    %c0_i32 = arith.constant 0 : i32
    %c0_i32_0 = arith.constant 0 : i32
    %c0_i32_1 = arith.constant 0 : i32
    return %c0_i32, %c0_i32_0 : i32, i32
  }
  func.func @transform_3(%arg0: i32) -> (i32, i32) {
    %c0_i32 = arith.constant 0 : i32
    %c0_i32_0 = arith.constant 0 : i32
    %c0_i32_1 = arith.constant 0 : i32
    return %c0_i32, %c0_i32_0 : i32, i32
  }
  func.func @transform_4(%arg0: i32) -> (i32, i32) {
    %c0_i32 = arith.constant 0 : i32
    %c0_i32_0 = arith.constant 0 : i32
    %c0_i32_1 = arith.constant 0 : i32
    return %c0_i32, %c0_i32_0 : i32, i32
  }
  func.func @transform_5(%arg0: i32) -> (i32, i32) {
    %c0_i32 = arith.constant 0 : i32
    %c0_i32_0 = arith.constant 0 : i32
    %c0_i32_1 = arith.constant 0 : i32
    return %c0_i32, %c0_i32_0 : i32, i32
  }
  func.func @transform_6(%arg0: i32) -> (i32, i32) {
    %c0_i32 = arith.constant 0 : i32
    %c0_i32_0 = arith.constant 0 : i32
    %c0_i32_1 = arith.constant 0 : i32
    return %c0_i32, %c0_i32_0 : i32, i32
  }
  func.func @transform_7(%arg0: i32) -> (i32, i32) {
    %c0_i32 = arith.constant 0 : i32
    %c0_i32_0 = arith.constant 0 : i32
    return %arg0, %c0_i32 : i32, i32
  }
}

</mosaic_0001>

<llo_original>
// kernel: tpu_custom_call.1
$region0: #{tpu_custom_call.1}
  #allocation0 [shape = 'u32[]', space=smem, size = 0x4, offset = 0x4, fixed_abs, tag = 'smem constant byte address 0x4 - core index']
  #allocation1 [shape = 'u32[144,128]{1,0:T(1,128)}', space=vmem, size = 0x12000, scoped, tag = 'internal scratch']
  %s0 = inlined_call_operand.vmem [shape: f32[128,32], index: 0, kind: input, shape index: {}]
  %s1 = inlined_call_operand.vmem [shape: f32[96,32], index: 1, kind: input, shape index: {}]
  %s2 = inlined_call_operand.vmem [shape: f32[1,32], index: 2, kind: input, shape index: {}]
  %s3 = inlined_call_operand.vmem [shape: f32[96,32], index: 3, kind: input, shape index: {}]
  %s4 = inlined_call_operand.vmem [shape: f32[1,32], index: 4, kind: input, shape index: {}]
  %s5 = inlined_call_operand.vmem [shape: f32[32,128], index: 5, kind: input, shape index: {}]
  %s6 = inlined_call_operand.vmem [shape: f32[1,128], index: 6, kind: input, shape index: {}]
  %s7 = inlined_call_operand.hbm [shape: f32[8,128], index: 7, kind: output, shape index: {}]
  %s8 = sld [smem:[#allocation0]]
  $region38: #{tpu_custom_call.1} parent=0
    _
  %s10 = ssub.s32 1, %s8
  %s11 = scalar_select 0, %s10, %s8
  $region1: #{tpu_custom_call.1} parent=0
    #allocation2 [shape = 'u8[4096]{0}', space=vmem, size = 0x1000, scoped, tag = 'output window, operand 0, single buffered']
    #allocation3 [shape = 's32[1]{0}', space=sflag, size = 0x4, scoped, tag = 'scoped memory for tpu_custom_call.1']
    %12 = vsyncpa [#allocation3], 0
    // Predicated region
    $region2: #{tpu_custom_call.1} parent=1 // pred_check
      _
    $region3: #{tpu_custom_call.1} parent=1 // pred_check_branch
      %14 = sbr.rel (0) target = $region5
    $region4: #{tpu_custom_call.1} parent=1 // pred_region
      _
    $region5: #{tpu_custom_call.1} parent=1 // pred_fallthru
      _
    // Predicated region
    $region6: #{tpu_custom_call.1} parent=1 // pred_check
      _
    $region7: #{tpu_custom_call.1} parent=1 // pred_check_branch
      %16 = sbr.rel (0) target = $region9
    $region8: #{tpu_custom_call.1} parent=1 // pred_region
      _
    $region9: #{tpu_custom_call.1} parent=1 // pred_fallthru
      _
    // Predicated region
    $region10: #{tpu_custom_call.1} parent=1 // pred_check
      _
    $region11: #{tpu_custom_call.1} parent=1 // pred_check_branch
      %18 = sbr.rel (0) target = $region13
    $region12: #{tpu_custom_call.1} parent=1 // pred_region
      _
    $region13: #{tpu_custom_call.1} parent=1 // pred_fallthru
      _
    // Predicated region
    $region14: #{tpu_custom_call.1} parent=1 // pred_check
      _
    $region15: #{tpu_custom_call.1} parent=1 // pred_check_branch
      %20 = sbr.rel (0) target = $region17
    $region16: #{tpu_custom_call.1} parent=1 // pred_region
      _
    $region17: #{tpu_custom_call.1} parent=1 // pred_fallthru
      _
    // Predicated region
    $region18: #{tpu_custom_call.1} parent=1 // pred_check
      _
    $region19: #{tpu_custom_call.1} parent=1 // pred_check_branch
      %22 = sbr.rel (0) target = $region21
    $region20: #{tpu_custom_call.1} parent=1 // pred_region
      _
    $region21: #{tpu_custom_call.1} parent=1 // pred_fallthru
      _
    // Predicated region
    $region22: #{tpu_custom_call.1} parent=1 // pred_check
      _
    $region23: #{tpu_custom_call.1} parent=1 // pred_check_branch
      %24 = sbr.rel (0) target = $region25
    $region24: #{tpu_custom_call.1} parent=1 // pred_region
      _
    $region25: #{tpu_custom_call.1} parent=1 // pred_fallthru
      _
    // Predicated region
    $region26: #{tpu_custom_call.1} parent=1 // pred_check
      _
    $region27: #{tpu_custom_call.1} parent=1 // pred_check_branch
      %26 = sbr.rel (0) target = $region29
    $region28: #{tpu_custom_call.1} parent=1 // pred_region
      _
    $region29: #{tpu_custom_call.1} parent=1 // pred_fallthru
      _
    %v27 = vld [vmem:[%s1] sm:$0xff]
    %v28 = vld [vmem:[%s1 + $0x8] sm:$0xff]
    %v29 = vld [vmem:[%s1 + $0x10] sm:$0xff]
    %v30 = vld [vmem:[%s1 + $0x18] sm:$0xff]
    %v31 = vld [vmem:[%s1 + $0x20] sm:$0xff]
    %v32 = vld [vmem:[%s1 + $0x28] sm:$0xff]
    %v33 = vld [vmem:[%s1 + $0x30] sm:$0xff]
    %v34 = vld [vmem:[%s1 + $0x38] sm:$0xff]
    %v35 = vld [vmem:[%s1 + $0x40] sm:$0xff]
    %v36 = vld [vmem:[%s1 + $0x48] sm:$0xff]
    %v37 = vld [vmem:[%s1 + $0x50] sm:$0xff]
    %v38 = vld [vmem:[%s1 + $0x58] sm:$0xff]
    %v39 = vld [vmem:[%s2] sm:$0x1]
    %v40 = vld [vmem:[%s3] sm:$0xff]
    %v41 = vld [vmem:[%s3 + $0x8] sm:$0xff]
    %v42 = vld [vmem:[%s3 + $0x10] sm:$0xff]
    %v43 = vld [vmem:[%s3 + $0x18] sm:$0xff]
    %v44 = vld [vmem:[%s3 + $0x20] sm:$0xff]
    %v45 = vld [vmem:[%s3 + $0x28] sm:$0xff]
    %v46 = vld [vmem:[%s3 + $0x30] sm:$0xff]
    %v47 = vld [vmem:[%s3 + $0x38] sm:$0xff]
    %v48 = vld [vmem:[%s3 + $0x40] sm:$0xff]
    %v49 = vld [vmem:[%s3 + $0x48] sm:$0xff]
    %v50 = vld [vmem:[%s3 + $0x50] sm:$0xff]
    %v51 = vld [vmem:[%s3 + $0x58] sm:$0xff]
    %v52 = vld [vmem:[%s4] sm:$0x1]
    %v53 = vld [vmem:[%s0] sm:$0xff]
    %v54 = vld [vmem:[%s0 + $0x8] sm:$0xff]
    %v55 = vld [vmem:[%s0 + $0x10] sm:$0xff]
    %v56 = vld [vmem:[%s0 + $0x18] sm:$0xff]
    %v57 = vld [vmem:[%s0 + $0x20] sm:$0xff]
    %v58 = vld [vmem:[%s0 + $0x28] sm:$0xff]
    %v59 = vld [vmem:[%s0 + $0x30] sm:$0xff]
    %v60 = vld [vmem:[%s0 + $0x38] sm:$0xff]
    %v61 = vld [vmem:[%s0 + $0x40] sm:$0xff]
    %v62 = vld [vmem:[%s0 + $0x48] sm:$0xff]
    %v63 = vld [vmem:[%s0 + $0x50] sm:$0xff]
    %v64 = vld [vmem:[%s0 + $0x58] sm:$0xff]
    %v65 = vld [vmem:[%s0 + $0x60] sm:$0xff]
    %v66 = vld [vmem:[%s0 + $0x68] sm:$0xff]
    %v67 = vld [vmem:[%s0 + $0x70] sm:$0xff]
    %v68 = vld [vmem:[%s0 + $0x78] sm:$0xff]
    %vm85 = vcmask 1046528
    %v86 = vrot.slane %v53, 1
    %v87 = vrot.slane %v54, 1
    %v88 = vsel %vm85, %v86, %v87
    %v89 = vrot.slane %v55, 1
    %v90 = vsel %vm85, %v87, %v89
    %v91 = vrot.slane %v56, 1
    %v92 = vsel %vm85, %v89, %v91
    %v93 = vrot.slane %v57, 1
    %v94 = vsel %vm85, %v91, %v93
    %v95 = vrot.slane %v58, 1
    %v96 = vsel %vm85, %v93, %v95
    %v97 = vrot.slane %v59, 1
    %v98 = vsel %vm85, %v95, %v97
    %v99 = vrot.slane %v60, 1
    %v100 = vsel %vm85, %v97, %v99
    %v101 = vrot.slane %v61, 1
    %v102 = vsel %vm85, %v99, %v101
    %v103 = vrot.slane %v62, 1
    %v104 = vsel %vm85, %v101, %v103
    %v105 = vrot.slane %v63, 1
    %v106 = vsel %vm85, %v103, %v105
    %v107 = vrot.slane %v64, 1
    %v108 = vsel %vm85, %v105, %v107
    %v109 = vrot.slane %v65, 1
    %v110 = vsel %vm85, %v107, %v109
    %v111 = vrot.slane %v66, 1
    %v112 = vsel %vm85, %v109, %v111
    %v113 = vrot.slane %v67, 1
    %v114 = vsel %vm85, %v111, %v113
    %v115 = vrot.slane %v68, 1
    %v116 = vsel %vm85, %v113, %v115
    %v119 = vsel %vm85, %v115, %v86
    %vm120 = vcmask 1045504
    %v121 = vrot.slane %v53, 2
    %v122 = vrot.slane %v54, 2
    %v123 = vsel %vm120, %v121, %v122
    %v124 = vrot.slane %v55, 2
    %v125 = vsel %vm120, %v122, %v124
    %v126 = vrot.slane %v56, 2
    %v127 = vsel %vm120, %v124, %v126
    %v128 = vrot.slane %v57, 2
    %v129 = vsel %vm120, %v126, %v128
    %v130 = vrot.slane %v58, 2
    %v131 = vsel %vm120, %v128, %v130
    %v132 = vrot.slane %v59, 2
    %v133 = vsel %vm120, %v130, %v132
    %v134 = vrot.slane %v60, 2
    %v135 = vsel %vm120, %v132, %v134
    %v136 = vrot.slane %v61, 2
    %v137 = vsel %vm120, %v134, %v136
    %v138 = vrot.slane %v62, 2
    %v139 = vsel %vm120, %v136, %v138
    %v140 = vrot.slane %v63, 2
    %v141 = vsel %vm120, %v138, %v140
    %v142 = vrot.slane %v64, 2
    %v143 = vsel %vm120, %v140, %v142
    %v144 = vrot.slane %v65, 2
    %v145 = vsel %vm120, %v142, %v144
    %v146 = vrot.slane %v66, 2
    %v147 = vsel %vm120, %v144, %v146
    %v148 = vrot.slane %v67, 2
    %v149 = vsel %vm120, %v146, %v148
    %v150 = vrot.slane %v68, 2
    %v151 = vsel %vm120, %v148, %v150
    %v154 = vsel %vm120, %v150, %v121
    %156 = vrot.lane.b32.xlu0 %v88, 32
    %v157 = vpop.permute.xlu0 %156
    %158 = vrot.lane.b32.xlu0 %v90, 32
    %v159 = vpop.permute.xlu0 %158
    %160 = vrot.lane.b32.xlu0 %v92, 32
    %v161 = vpop.permute.xlu0 %160
    %162 = vrot.lane.b32.xlu0 %v94, 32
    %v163 = vpop.permute.xlu0 %162
    %164 = vrot.lane.b32.xlu0 %v96, 32
    %v165 = vpop.permute.xlu0 %164
    %166 = vrot.lane.b32.xlu0 %v98, 32
    %v167 = vpop.permute.xlu0 %166
    %168 = vrot.lane.b32.xlu0 %v100, 32
    %v169 = vpop.permute.xlu0 %168
    %170 = vrot.lane.b32.xlu0 %v102, 32
    %v171 = vpop.permute.xlu0 %170
    %172 = vrot.lane.b32.xlu0 %v104, 32
    %v173 = vpop.permute.xlu0 %172
    %174 = vrot.lane.b32.xlu0 %v106, 32
    %v175 = vpop.permute.xlu0 %174
    %176 = vrot.lane.b32.xlu0 %v108, 32
    %v177 = vpop.permute.xlu0 %176
    %178 = vrot.lane.b32.xlu0 %v110, 32
    %v179 = vpop.permute.xlu0 %178
    %180 = vrot.lane.b32.xlu0 %v112, 32
    %v181 = vpop.permute.xlu0 %180
    %182 = vrot.lane.b32.xlu0 %v114, 32
    %v183 = vpop.permute.xlu0 %182
    %184 = vrot.lane.b32.xlu0 %v116, 32
    %v185 = vpop.permute.xlu0 %184
    %186 = vrot.lane.b32.xlu0 %v119, 32
    %v187 = vpop.permute.xlu0 %186
    %205 = vrot.lane.b32.xlu0 %v123, 64
    %v206 = vpop.permute.xlu0 %205
    %207 = vrot.lane.b32.xlu0 %v125, 64
    %v208 = vpop.permute.xlu0 %207
    %209 = vrot.lane.b32.xlu0 %v127, 64
    %v210 = vpop.permute.xlu0 %209
    %211 = vrot.lane.b32.xlu0 %v129, 64
    %v212 = vpop.permute.xlu0 %211
    %213 = vrot.lane.b32.xlu0 %v131, 64
    %v214 = vpop.permute.xlu0 %213
    %215 = vrot.lane.b32.xlu0 %v133, 64
    %v216 = vpop.permute.xlu0 %215
    %217 = vrot.lane.b32.xlu0 %v135, 64
    %v218 = vpop.permute.xlu0 %217
    %219 = vrot.lane.b32.xlu0 %v137, 64
    %v220 = vpop.permute.xlu0 %219
    %221 = vrot.lane.b32.xlu0 %v139, 64
    %v222 = vpop.permute.xlu0 %221
    %223 = vrot.lane.b32.xlu0 %v141, 64
    %v224 = vpop.permute.xlu0 %223
    %225 = vrot.lane.b32.xlu0 %v143, 64
    %v226 = vpop.permute.xlu0 %225
    %227 = vrot.lane.b32.xlu0 %v145, 64
    %v228 = vpop.permute.xlu0 %227
    %229 = vrot.lane.b32.xlu0 %v147, 64
    %v230 = vpop.permute.xlu0 %229
    %231 = vrot.lane.b32.xlu0 %v149, 64
    %v232 = vpop.permute.xlu0 %231
    %233 = vrot.lane.b32.xlu0 %v151, 64
    %v234 = vpop.permute.xlu0 %233
    %235 = vrot.lane.b32.xlu0 %v154, 64
    %v236 = vpop.permute.xlu0 %235
    %vm253 = vcmask 261120
    %v254 = vsel %vm253, %v53, %v157
    %v255 = vsel %vm253, %v54, %v159
    %v256 = vsel %vm253, %v55, %v161
    %v257 = vsel %vm253, %v56, %v163
    %v258 = vsel %vm253, %v57, %v165
    %v259 = vsel %vm253, %v58, %v167
    %v260 = vsel %vm253, %v59, %v169
    %v261 = vsel %vm253, %v60, %v171
    %v262 = vsel %vm253, %v61, %v173
    %v263 = vsel %vm253, %v62, %v175
    %v264 = vsel %vm253, %v63, %v177
    %v265 = vsel %vm253, %v64, %v179
    %v266 = vsel %vm253, %v65, %v181
    %v267 = vsel %vm253, %v66, %v183
    %v268 = vsel %vm253, %v67, %v185
    %v269 = vsel %vm253, %v68, %v187
    %vm270 = vcmask 523264
    %v271 = vsel %vm270, %v254, %v206
    %v272 = vsel %vm270, %v255, %v208
    %v273 = vsel %vm270, %v256, %v210
    %v274 = vsel %vm270, %v257, %v212
    %v275 = vsel %vm270, %v258, %v214
    %v276 = vsel %vm270, %v259, %v216
    %v277 = vsel %vm270, %v260, %v218
    %v278 = vsel %vm270, %v261, %v220
    %v279 = vsel %vm270, %v262, %v222
    %v280 = vsel %vm270, %v263, %v224
    %v281 = vsel %vm270, %v264, %v226
    %v282 = vsel %vm270, %v265, %v228
    %v283 = vsel %vm270, %v266, %v230
    %v284 = vsel %vm270, %v267, %v232
    %v285 = vsel %vm270, %v268, %v234
    %v286 = vsel %vm270, %v269, %v236
    %v288 = vlaneseq
    %v289 = vshrl.u32 %v288, 7
    %v290 = vsub.s32 0, %v289
    %v291 = vrot.slane %v39, %v290
    %vm293 = vcmask 785408
    %v295 = vsel %vm293, %v271, 0
    %v298 = vsel %vm293, %v272, 0
    %v301 = vsel %vm293, %v273, 0
    %v304 = vsel %vm293, %v274, 0
    %v307 = vsel %vm293, %v275, 0
    %v310 = vsel %vm293, %v276, 0
    %v313 = vsel %vm293, %v277, 0
    %v316 = vsel %vm293, %v278, 0
    %v319 = vsel %vm293, %v279, 0
    %v322 = vsel %vm293, %v280, 0
    %v325 = vsel %vm293, %v281, 0
    %v328 = vsel %vm293, %v282, 0
    %v331 = vsel %vm293, %v283, 0
    %v334 = vsel %vm293, %v284, 0
    %v337 = vsel %vm293, %v285, 0
    %v340 = vsel %vm293, %v286, 0
    %342 = vmatprep.subr.mxu0 0.0
    %343 = vmatpush1.msra.mxu0 0.0
    %344 = vmatprep.subr.mxu0 0.0
    %345 = vmatpush1.msra.mxu0 0.0
    %346 = vmatprep.subr.mxu0 0.0
    %347 = vmatpush1.msra.mxu0 0.0
    %348 = vmatprep.subr.mxu0 0.0
    %349 = vmatpush1.msra.mxu0 0.0
    %350 = vmatprep.subr.mxu0 0.0
    %351 = vmatpush1.msra.mxu0 %v38
    %352 = vmatprep.subr.mxu0 0.0
    %353 = vmatpush1.msra.mxu0 %v37
    %354 = vmatprep.subr.mxu0 0.0
    %355 = vmatpush1.msra.mxu0 %v36
    %356 = vmatprep.subr.mxu0 0.0
    %357 = vmatpush1.msra.mxu0 %v35
    %358 = vmatprep.subr.mxu0 0.0
    %359 = vmatpush1.msra.mxu0 %v34
    %360 = vmatprep.subr.mxu0 0.0
    %361 = vmatpush1.msra.mxu0 %v33
    %362 = vmatprep.subr.mxu0 0.0
    %363 = vmatpush1.msra.mxu0 %v32
    %364 = vmatprep.subr.mxu0 0.0
    %365 = vmatpush1.msra.mxu0 %v31
    %366 = vmatprep.subr.mxu0 0.0
    %367 = vmatpush1.msra.mxu0 %v30
    %368 = vmatprep.subr.mxu0 0.0
    %369 = vmatpush1.msra.mxu0 %v29
    %370 = vmatprep.subr.mxu0 0.0
    %371 = vmatpush1.msra.mxu0 %v28
    %372 = vmatprep.subr.mxu0 0.0
    %373 = vmatpush1.msra.mxu0 %v27
    %374 = vmatprep.subr.mxu0 0.0
    %375 = vmatpush2.msra.mxu0 0.0
    %376 = vmatprep.subr.mxu0 0.0
    %377 = vmatpush2.msra.mxu0 0.0
    %378 = vmatprep.subr.mxu0 0.0
    %379 = vmatpush2.msra.mxu0 0.0
    %380 = vmatprep.subr.mxu0 0.0
    %381 = vmatpush2.msra.mxu0 0.0
    %382 = vmatprep.subr.mxu0 0.0
    %383 = vmatpush2.msra.mxu0 0.0
    %384 = vmatprep.subr.mxu0 0.0
    %385 = vmatpush2.msra.mxu0 0.0
    %386 = vmatprep.subr.mxu0 0.0
    %387 = vmatpush2.msra.mxu0 0.0
    %388 = vmatprep.subr.mxu0 0.0
    %389 = vmatpush2.msra.mxu0 0.0
    %390 = vmatprep.subr.mxu0 0.0
    %391 = vmatpush2.msra.mxu0 0.0
    %392 = vmatprep.subr.mxu0 0.0
    %393 = vmatpush2.msra.mxu0 0.0
    %394 = vmatprep.subr.mxu0 0.0
    %395 = vmatpush2.msra.mxu0 0.0
    %396 = vmatprep.subr.mxu0 0.0
    %397 = vmatpush2.msra.mxu0 0.0
    %398 = vmatprep.subr.mxu0 0.0
    %399 = vmatpush2.msra.mxu0 0.0
    %400 = vmatprep.subr.mxu0 0.0
    %401 = vmatpush2.msra.mxu0 0.0
    %402 = vmatprep.subr.mxu0 0.0
    %403 = vmatpush2.msra.mxu0 0.0
    %404 = vmatprep.subr.mxu0 0.0
    %405 = vmatpush2.msra.mxu0 0.0
    %406 = vmatprep.mubr.f32.mxu0 0.0
    %407 = vmatmul.mubr.f32.gmra.mxu0 %v295
    %v408 = vpop.f32.mrf.mxu0
    %v409 = vadd.f32 %v291, %v408
    %v410 = vpop.f32.mrf.mxu0
    %411 = vmatprep.mubr.f32.mxu0 0.0
    %412 = vmatmul.mubr.f32.gmra.mxu0 %v298
    %v413 = vpop.f32.mrf.mxu0
    %v414 = vadd.f32 %v291, %v413
    %v415 = vpop.f32.mrf.mxu0
    %416 = vmatprep.mubr.f32.mxu0 0.0
    %417 = vmatmul.mubr.f32.gmra.mxu0 %v301
    %v418 = vpop.f32.mrf.mxu0
    %v419 = vadd.f32 %v291, %v418
    %v420 = vpop.f32.mrf.mxu0
    %421 = vmatprep.mubr.f32.mxu0 0.0
    %422 = vmatmul.mubr.f32.gmra.mxu0 %v304
    %v423 = vpop.f32.mrf.mxu0
    %v424 = vadd.f32 %v291, %v423
    %v425 = vpop.f32.mrf.mxu0
    %426 = vmatprep.mubr.f32.mxu0 0.0
    %427 = vmatmul.mubr.f32.gmra.mxu0 %v307
    %v428 = vpop.f32.mrf.mxu0
    %v429 = vadd.f32 %v291, %v428
    %v430 = vpop.f32.mrf.mxu0
    %431 = vmatprep.mubr.f32.mxu0 0.0
    %432 = vmatmul.mubr.f32.gmra.mxu0 %v310
    %v433 = vpop.f32.mrf.mxu0
    %v434 = vadd.f32 %v291, %v433
    %v435 = vpop.f32.mrf.mxu0
    %436 = vmatprep.mubr.f32.mxu0 0.0
    %437 = vmatmul.mubr.f32.gmra.mxu0 %v313
    %v438 = vpop.f32.mrf.mxu0
    %v439 = vadd.f32 %v291, %v438
    %v440 = vpop.f32.mrf.mxu0
    %441 = vmatprep.mubr.f32.mxu0 0.0
    %442 = vmatmul.mubr.f32.gmra.mxu0 %v316
    %v443 = vpop.f32.mrf.mxu0
    %v444 = vadd.f32 %v291, %v443
    %v445 = vpop.f32.mrf.mxu0
    %446 = vmatprep.mubr.f32.mxu0 0.0
    %447 = vmatmul.mubr.f32.gmra.mxu0 %v319
    %v448 = vpop.f32.mrf.mxu0
    %v449 = vadd.f32 %v291, %v448
    %v450 = vpop.f32.mrf.mxu0
    %451 = vmatprep.mubr.f32.mxu0 0.0
    %452 = vmatmul.mubr.f32.gmra.mxu0 %v322
    %v453 = vpop.f32.mrf.mxu0
    %v454 = vadd.f32 %v291, %v453
    %v455 = vpop.f32.mrf.mxu0
    %456 = vmatprep.mubr.f32.mxu0 0.0
    %457 = vmatmul.mubr.f32.gmra.mxu0 %v325
    %v458 = vpop.f32.mrf.mxu0
    %v459 = vadd.f32 %v291, %v458
    %v460 = vpop.f32.mrf.mxu0
    %461 = vmatprep.mubr.f32.mxu0 0.0
    %462 = vmatmul.mubr.f32.gmra.mxu0 %v328
    %v463 = vpop.f32.mrf.mxu0
    %v464 = vadd.f32 %v291, %v463
    %v465 = vpop.f32.mrf.mxu0
    %466 = vmatprep.mubr.f32.mxu0 0.0
    %467 = vmatmul.mubr.f32.gmra.mxu0 %v331
    %v468 = vpop.f32.mrf.mxu0
    %v469 = vadd.f32 %v291, %v468
    %v470 = vpop.f32.mrf.mxu0
    %471 = vmatprep.mubr.f32.mxu0 0.0
    %472 = vmatmul.mubr.f32.gmra.mxu0 %v334
    %v473 = vpop.f32.mrf.mxu0
    %v474 = vadd.f32 %v291, %v473
    %v475 = vpop.f32.mrf.mxu0
    %476 = vmatprep.mubr.f32.mxu0 0.0
    %477 = vmatmul.mubr.f32.gmra.mxu0 %v337
    %v478 = vpop.f32.mrf.mxu0
    %v479 = vadd.f32 %v291, %v478
    %v480 = vpop.f32.mrf.mxu0
    %481 = vmatprep.mubr.f32.mxu0 0.0
    %482 = vmatmul.mubr.f32.gmra.mxu0 %v340
    %v483 = vpop.f32.mrf.mxu0
    %v484 = vadd.f32 %v291, %v483
    %v485 = vpop.f32.mrf.mxu0
    %486 = vdwg.mxu0
    %v487 = vlaneseq
    %v488 = vshrl.u32 %v487, 7
    %v489 = vadd.s32 %v488, 8
    %v490 = vadd.s32 %v488, 16
    %v491 = vadd.s32 %v488, 24
    %v492 = vadd.s32 %v488, 32
    %v493 = vadd.s32 %v488, 40
    %v494 = vadd.s32 %v488, 48
    %v495 = vadd.s32 %v488, 56
    %v496 = vadd.s32 %v488, 64
    %v497 = vadd.s32 %v488, 72
    %v498 = vadd.s32 %v488, 80
    %v499 = vadd.s32 %v488, 88
    %v500 = vadd.s32 %v488, 96
    %v501 = vadd.s32 %v488, 104
    %v502 = vadd.s32 %v488, 112
    %v503 = vadd.s32 %v488, 120
    %vm504 = vcmp.ge.s32.totalorder %v488, 16
    %vm505 = vcmp.ge.s32.totalorder %v489, 16
    %vm506 = vcmp.ge.s32.totalorder %v490, 16
    %vm507 = vcmp.ge.s32.totalorder %v491, 16
    %vm508 = vcmp.ge.s32.totalorder %v492, 16
    %vm509 = vcmp.ge.s32.totalorder %v493, 16
    %vm510 = vcmp.ge.s32.totalorder %v494, 16
    %vm511 = vcmp.ge.s32.totalorder %v495, 16
    %vm512 = vcmp.ge.s32.totalorder %v496, 16
    %vm513 = vcmp.ge.s32.totalorder %v497, 16
    %vm514 = vcmp.ge.s32.totalorder %v498, 16
    %vm515 = vcmp.ge.s32.totalorder %v499, 16
    %vm516 = vcmp.ge.s32.totalorder %v500, 16
    %vm517 = vcmp.ge.s32.totalorder %v501, 16
    %vm518 = vcmp.ge.s32.totalorder %v502, 16
    %vm519 = vcmp.ge.s32.totalorder %v503, 16
    %v520 = vsub.s32 %v488, 16
    %v521 = vsub.s32 %v489, 16
    %v522 = vsub.s32 %v491, 16
    %v523 = vsub.s32 %v492, 16
    %v524 = vsub.s32 %v493, 16
    %v525 = vsub.s32 %v494, 16
    %v526 = vsub.s32 %v495, 16
    %v527 = vsub.s32 %v496, 16
    %v528 = vsub.s32 %v497, 16
    %v529 = vsub.s32 %v498, 16
    %v530 = vsub.s32 %v499, 16
    %v531 = vsub.s32 %v500, 16
    %v532 = vsub.s32 %v501, 16
    %v533 = vsub.s32 %v502, 16
    %v534 = vsub.s32 %v503, 16
    %v535 = vsel %vm504, %v520, %v488
    %v536 = vsel %vm505, %v521, %v489
    %v537 = vsel %vm506, %v488, %v490
    %v538 = vsel %vm507, %v522, %v491
    %v539 = vsel %vm508, %v523, %v492
    %v540 = vsel %vm509, %v524, %v493
    %v541 = vsel %vm510, %v525, %v494
    %v542 = vsel %vm511, %v526, %v495
    %v543 = vsel %vm512, %v527, %v496
    %v544 = vsel %vm513, %v528, %v497
    %v545 = vsel %vm514, %v529, %v498
    %v546 = vsel %vm515, %v530, %v499
    %v547 = vsel %vm516, %v531, %v500
    %v548 = vsel %vm517, %v532, %v501
    %v549 = vsel %vm518, %v533, %v502
    %v550 = vsel %vm519, %v534, %v503
    %vm551 = vcmp.ge.s32.totalorder %v488, 32
    %vm552 = vcmp.ge.s32.totalorder %v489, 32
    %vm553 = vcmp.ge.s32.totalorder %v490, 32
    %vm554 = vcmp.ge.s32.totalorder %v491, 32
    %vm555 = vcmp.ge.s32.totalorder %v492, 32
    %vm556 = vcmp.ge.s32.totalorder %v493, 32
    %vm557 = vcmp.ge.s32.totalorder %v494, 32
    %vm558 = vcmp.ge.s32.totalorder %v495, 32
    %vm559 = vcmp.ge.s32.totalorder %v496, 32
    %vm560 = vcmp.ge.s32.totalorder %v497, 32
    %vm561 = vcmp.ge.s32.totalorder %v498, 32
    %vm562 = vcmp.ge.s32.totalorder %v499, 32
    %vm563 = vcmp.ge.s32.totalorder %v500, 32
    %vm564 = vcmp.ge.s32.totalorder %v501, 32
    %vm565 = vcmp.ge.s32.totalorder %v502, 32
    %vm566 = vcmp.ge.s32.totalorder %v503, 32
    %v567 = vsub.s32 %v488, 32
    %v568 = vsub.s32 %v489, 32
    %v569 = vsub.s32 %v490, 32
    %v570 = vsub.s32 %v491, 32
    %v571 = vsub.s32 %v493, 32
    %v572 = vsub.s32 %v494, 32
    %v573 = vsub.s32 %v495, 32
    %v574 = vsub.s32 %v496, 32
    %v575 = vsub.s32 %v497, 32
    %v576 = vsub.s32 %v498, 32
    %v577 = vsub.s32 %v499, 32
    %v578 = vsub.s32 %v500, 32
    %v579 = vsub.s32 %v501, 32
    %v580 = vsub.s32 %v502, 32
    %v581 = vsub.s32 %v503, 32
    %v582 = vsel %vm551, %v567, %v535
    %v583 = vsel %vm552, %v568, %v536
    %v584 = vsel %vm553, %v569, %v537
    %v585 = vsel %vm554, %v570, %v538
    %v586 = vsel %vm555, %v488, %v539
    %v587 = vsel %vm556, %v571, %v540
    %v588 = vsel %vm557, %v572, %v541
    %v589 = vsel %vm558, %v573, %v542
    %v590 = vsel %vm559, %v574, %v543
    %v591 = vsel %vm560, %v575, %v544
    %v592 = vsel %vm561, %v576, %v545
    %v593 = vsel %vm562, %v577, %v546
    %v594 = vsel %vm563, %v578, %v547
    %v595 = vsel %vm564, %v579, %v548
    %v596 = vsel %vm565, %v580, %v549
    %v597 = vsel %vm566, %v581, %v550
    %vm598 = vcmp.ge.s32.totalorder %v488, 48
    %vm599 = vcmp.ge.s32.totalorder %v489, 48
    %vm600 = vcmp.ge.s32.totalorder %v490, 48
    %vm601 = vcmp.ge.s32.totalorder %v491, 48
    %vm602 = vcmp.ge.s32.totalorder %v492, 48
    %vm603 = vcmp.ge.s32.totalorder %v493, 48
    %vm604 = vcmp.ge.s32.totalorder %v494, 48
    %vm605 = vcmp.ge.s32.totalorder %v495, 48
    %vm606 = vcmp.ge.s32.totalorder %v496, 48
    %vm607 = vcmp.ge.s32.totalorder %v497, 48
    %vm608 = vcmp.ge.s32.totalorder %v498, 48
    %vm609 = vcmp.ge.s32.totalorder %v499, 48
    %vm610 = vcmp.ge.s32.totalorder %v500, 48
    %vm611 = vcmp.ge.s32.totalorder %v501, 48
    %vm612 = vcmp.ge.s32.totalorder %v502, 48
    %vm613 = vcmp.ge.s32.totalorder %v503, 48
    %v614 = vsub.s32 %v488, 48
    %v615 = vsub.s32 %v489, 48
    %v616 = vsub.s32 %v490, 48
    %v617 = vsub.s32 %v491, 48
    %v618 = vsub.s32 %v492, 48
    %v619 = vsub.s32 %v493, 48
    %v620 = vsub.s32 %v495, 48
    %v621 = vsub.s32 %v496, 48
    %v622 = vsub.s32 %v497, 48
    %v623 = vsub.s32 %v498, 48
    %v624 = vsub.s32 %v499, 48
    %v625 = vsub.s32 %v500, 48
    %v626 = vsub.s32 %v501, 48
    %v627 = vsub.s32 %v502, 48
    %v628 = vsub.s32 %v503, 48
    %v629 = vsel %vm598, %v614, %v582
    %v630 = vsel %vm599, %v615, %v583
    %v631 = vsel %vm600, %v616, %v584
    %v632 = vsel %vm601, %v617, %v585
    %v633 = vsel %vm602, %v618, %v586
    %v634 = vsel %vm603, %v619, %v587
    %v635 = vsel %vm604, %v488, %v588
    %v636 = vsel %vm605, %v620, %v589
    %v637 = vsel %vm606, %v621, %v590
    %v638 = vsel %vm607, %v622, %v591
    %v639 = vsel %vm608, %v623, %v592
    %v640 = vsel %vm609, %v624, %v593
    %v641 = vsel %vm610, %v625, %v594
    %v642 = vsel %vm611, %v626, %v595
    %v643 = vsel %vm612, %v627, %v596
    %v644 = vsel %vm613, %v628, %v597
    %vm645 = vcmp.ge.s32.totalorder %v488, 64
    %vm646 = vcmp.ge.s32.totalorder %v489, 64
    %vm647 = vcmp.ge.s32.totalorder %v490, 64
    %vm648 = vcmp.ge.s32.totalorder %v491, 64
    %vm649 = vcmp.ge.s32.totalorder %v492, 64
    %vm650 = vcmp.ge.s32.totalorder %v493, 64
    %vm651 = vcmp.ge.s32.totalorder %v494, 64
    %vm652 = vcmp.ge.s32.totalorder %v495, 64
    %vm653 = vcmp.ge.s32.totalorder %v496, 64
    %vm654 = vcmp.ge.s32.totalorder %v497, 64
    %vm655 = vcmp.ge.s32.totalorder %v498, 64
    %vm656 = vcmp.ge.s32.totalorder %v499, 64
    %vm657 = vcmp.ge.s32.totalorder %v500, 64
    %vm658 = vcmp.ge.s32.totalorder %v501, 64
    %vm659 = vcmp.ge.s32.totalorder %v502, 64
    %vm660 = vcmp.ge.s32.totalorder %v503, 64
    %v661 = vsub.s32 %v488, 64
    %v662 = vsub.s32 %v489, 64
    %v663 = vsub.s32 %v490, 64
    %v664 = vsub.s32 %v491, 64
    %v665 = vsub.s32 %v492, 64
    %v666 = vsub.s32 %v493, 64
    %v667 = vsub.s32 %v494, 64
    %v668 = vsub.s32 %v495, 64
    %v669 = vsub.s32 %v497, 64
    %v670 = vsub.s32 %v498, 64
    %v671 = vsub.s32 %v499, 64
    %v672 = vsub.s32 %v500, 64
    %v673 = vsub.s32 %v501, 64
    %v674 = vsub.s32 %v502, 64
    %v675 = vsub.s32 %v503, 64
    %v676 = vsel %vm645, %v661, %v629
    %v677 = vsel %vm646, %v662, %v630
    %v678 = vsel %vm647, %v663, %v631
    %v679 = vsel %vm648, %v664, %v632
    %v680 = vsel %vm649, %v665, %v633
    %v681 = vsel %vm650, %v666, %v634
    %v682 = vsel %vm651, %v667, %v635
    %v683 = vsel %vm652, %v668, %v636
    %v684 = vsel %vm653, %v488, %v637
    %v685 = vsel %vm654, %v669, %v638
    %v686 = vsel %vm655, %v670, %v639
    %v687 = vsel %vm656, %v671, %v640
    %v688 = vsel %vm657, %v672, %v641
    %v689 = vsel %vm658, %v673, %v642
    %v690 = vsel %vm659, %v674, %v643
    %v691 = vsel %vm660, %v675, %v644
    %vm692 = vcmp.ge.s32.totalorder %v488, 80
    %vm693 = vcmp.ge.s32.totalorder %v489, 80
    %vm694 = vcmp.ge.s32.totalorder %v490, 80
    %vm695 = vcmp.ge.s32.totalorder %v491, 80
    %vm696 = vcmp.ge.s32.totalorder %v492, 80
    %vm697 = vcmp.ge.s32.totalorder %v493, 80
    %vm698 = vcmp.ge.s32.totalorder %v494, 80
    %vm699 = vcmp.ge.s32.totalorder %v495, 80
    %vm700 = vcmp.ge.s32.totalorder %v496, 80
    %vm701 = vcmp.ge.s32.totalorder %v497, 80
    %vm702 = vcmp.ge.s32.totalorder %v498, 80
    %vm703 = vcmp.ge.s32.totalorder %v499, 80
    %vm704 = vcmp.ge.s32.totalorder %v500, 80
    %vm705 = vcmp.ge.s32.totalorder %v501, 80
    %vm706 = vcmp.ge.s32.totalorder %v502, 80
    %vm707 = vcmp.ge.s32.totalorder %v503, 80
    %v708 = vsub.s32 %v488, 80
    %v709 = vsub.s32 %v489, 80
    %v710 = vsub.s32 %v490, 80
    %v711 = vsub.s32 %v491, 80
    %v712 = vsub.s32 %v492, 80
    %v713 = vsub.s32 %v493, 80
    %v714 = vsub.s32 %v494, 80
    %v715 = vsub.s32 %v495, 80
    %v716 = vsub.s32 %v496, 80
    %v717 = vsub.s32 %v497, 80
    %v718 = vsub.s32 %v499, 80
    %v719 = vsub.s32 %v500, 80
    %v720 = vsub.s32 %v501, 80
    %v721 = vsub.s32 %v502, 80
    %v722 = vsub.s32 %v503, 80
    %v723 = vsel %vm692, %v708, %v676
    %v724 = vsel %vm693, %v709, %v677
    %v725 = vsel %vm694, %v710, %v678
    %v726 = vsel %vm695, %v711, %v679
    %v727 = vsel %vm696, %v712, %v680
    %v728 = vsel %vm697, %v713, %v681
    %v729 = vsel %vm698, %v714, %v682
    %v730 = vsel %vm699, %v715, %v683
    %v731 = vsel %vm700, %v716, %v684
    %v732 = vsel %vm701, %v717, %v685
    %v733 = vsel %vm702, %v488, %v686
    %v734 = vsel %vm703, %v718, %v687
    %v735 = vsel %vm704, %v719, %v688
    %v736 = vsel %vm705, %v720, %v689
    %v737 = vsel %vm706, %v721, %v690
    %v738 = vsel %vm707, %v722, %v691
    %vm739 = vcmp.ge.s32.totalorder %v488, 96
    %vm740 = vcmp.ge.s32.totalorder %v489, 96
    %vm741 = vcmp.ge.s32.totalorder %v490, 96
    %vm742 = vcmp.ge.s32.totalorder %v491, 96
    %vm743 = vcmp.ge.s32.totalorder %v492, 96
    %vm744 = vcmp.ge.s32.totalorder %v493, 96
    %vm745 = vcmp.ge.s32.totalorder %v494, 96
    %vm746 = vcmp.ge.s32.totalorder %v495, 96
    %vm747 = vcmp.ge.s32.totalorder %v496, 96
    %vm748 = vcmp.ge.s32.totalorder %v497, 96
    %vm749 = vcmp.ge.s32.totalorder %v498, 96
    %vm750 = vcmp.ge.s32.totalorder %v499, 96
    %vm751 = vcmp.ge.s32.totalorder %v500, 96
    %vm752 = vcmp.ge.s32.totalorder %v501, 96
    %vm753 = vcmp.ge.s32.totalorder %v502, 96
    %vm754 = vcmp.ge.s32.totalorder %v503, 96
    %v755 = vsub.s32 %v488, 96
    %v756 = vsub.s32 %v489, 96
    %v757 = vsub.s32 %v490, 96
    %v758 = vsub.s32 %v491, 96
    %v759 = vsub.s32 %v492, 96
    %v760 = vsub.s32 %v493, 96
    %v761 = vsub.s32 %v494, 96
    %v762 = vsub.s32 %v495, 96
    %v763 = vsub.s32 %v496, 96
    %v764 = vsub.s32 %v497, 96
    %v765 = vsub.s32 %v498, 96
    %v766 = vsub.s32 %v499, 96
    %v767 = vsub.s32 %v501, 96
    %v768 = vsub.s32 %v502, 96
    %v769 = vsub.s32 %v503, 96
    %v770 = vsel %vm739, %v755, %v723
    %v771 = vsel %vm740, %v756, %v724
    %v772 = vsel %vm741, %v757, %v725
    %v773 = vsel %vm742, %v758, %v726
    %v774 = vsel %vm743, %v759, %v727
    %v775 = vsel %vm744, %v760, %v728
    %v776 = vsel %vm745, %v761, %v729
    %v777 = vsel %vm746, %v762, %v730
    %v778 = vsel %vm747, %v763, %v731
    %v779 = vsel %vm748, %v764, %v732
    %v780 = vsel %vm749, %v765, %v733
    %v781 = vsel %vm750, %v766, %v734
    %v782 = vsel %vm751, %v488, %v735
    %v783 = vsel %vm752, %v767, %v736
    %v784 = vsel %vm753, %v768, %v737
    %v785 = vsel %vm754, %v769, %v738
    %vm786 = vcmp.ge.s32.totalorder %v488, 112
    %vm787 = vcmp.ge.s32.totalorder %v489, 112
    %vm788 = vcmp.ge.s32.totalorder %v490, 112
    %vm789 = vcmp.ge.s32.totalorder %v491, 112
    %vm790 = vcmp.ge.s32.totalorder %v492, 112
    %vm791 = vcmp.ge.s32.totalorder %v493, 112
    %vm792 = vcmp.ge.s32.totalorder %v494, 112
    %vm793 = vcmp.ge.s32.totalorder %v495, 112
    %vm794 = vcmp.ge.s32.totalorder %v496, 112
    %vm795 = vcmp.ge.s32.totalorder %v497, 112
    %vm796 = vcmp.ge.s32.totalorder %v498, 112
    %vm797 = vcmp.ge.s32.totalorder %v499, 112
    %vm798 = vcmp.ge.s32.totalorder %v500, 112
    %vm799 = vcmp.ge.s32.totalorder %v501, 112
    %vm800 = vcmp.ge.s32.totalorder %v502, 112
    %vm801 = vcmp.ge.s32.totalorder %v503, 112
    %v802 = vsub.s32 %v488, 112
    %v803 = vsub.s32 %v489, 112
    %v804 = vsub.s32 %v490, 112
    %v805 = vsub.s32 %v491, 112
    %v806 = vsub.s32 %v492, 112
    %v807 = vsub.s32 %v493, 112
    %v808 = vsub.s32 %v494, 112
    %v809 = vsub.s32 %v495, 112
    %v810 = vsub.s32 %v496, 112
    %v811 = vsub.s32 %v497, 112
    %v812 = vsub.s32 %v498, 112
    %v813 = vsub.s32 %v499, 112
    %v814 = vsub.s32 %v500, 112
    %v815 = vsub.s32 %v501, 112
    %v816 = vsub.s32 %v503, 112
    %v817 = vsel %vm786, %v802, %v770
    %v818 = vsel %vm787, %v803, %v771
    %v819 = vsel %vm788, %v804, %v772
    %v820 = vsel %vm789, %v805, %v773
    %v821 = vsel %vm790, %v806, %v774
    %v822 = vsel %vm791, %v807, %v775
    %v823 = vsel %vm792, %v808, %v776
    %v824 = vsel %vm793, %v809, %v777
    %v825 = vsel %vm794, %v810, %v778
    %v826 = vsel %vm795, %v811, %v779
    %v827 = vsel %vm796, %v812, %v780
    %v828 = vsel %vm797, %v813, %v781
    %v829 = vsel %vm798, %v814, %v782
    %v830 = vsel %vm799, %v815, %v783
    %v831 = vsel %vm800, %v488, %v784
    %v832 = vsel %vm801, %v816, %v785
    %v833 = vmax.f32 %v409, 0.0
    %v834 = vmax.f32 %v414, 0.0
    %v835 = vmax.f32 %v419, 0.0
    %v836 = vmax.f32 %v424, 0.0
    %v837 = vmax.f32 %v429, 0.0
    %v838 = vmax.f32 %v434, 0.0
    %v839 = vmax.f32 %v439, 0.0
    %v840 = vmax.f32 %v444, 0.0
    %v841 = vmax.f32 %v449, 0.0
    %v842 = vmax.f32 %v454, 0.0
    %v843 = vmax.f32 %v459, 0.0
    %v844 = vmax.f32 %v464, 0.0
    %v845 = vmax.f32 %v469, 0.0
    %v846 = vmax.f32 %v474, 0.0
    %v847 = vmax.f32 %v479, 0.0
    %v848 = vmax.f32 %v484, 0.0
    %vm849 = vcmp.ge.s32.totalorder %v817, 1
    %vm850 = vcmp.ge.s32.totalorder %v818, 1
    %vm851 = vcmp.ge.s32.totalorder %v819, 1
    %vm852 = vcmp.ge.s32.totalorder %v820, 1
    %vm853 = vcmp.ge.s32.totalorder %v821, 1
    %vm854 = vcmp.ge.s32.totalorder %v822, 1
    %vm855 = vcmp.ge.s32.totalorder %v823, 1
    %vm856 = vcmp.ge.s32.totalorder %v824, 1
    %vm857 = vcmp.ge.s32.totalorder %v825, 1
    %vm858 = vcmp.ge.s32.totalorder %v826, 1
    %vm859 = vcmp.ge.s32.totalorder %v827, 1
    %vm860 = vcmp.ge.s32.totalorder %v828, 1
    %vm861 = vcmp.ge.s32.totalorder %v829, 1
    %vm862 = vcmp.ge.s32.totalorder %v830, 1
    %vm863 = vcmp.ge.s32.totalorder %v831, 1
    %vm864 = vcmp.ge.s32.totalorder %v832, 1
    %v866 = vrot.slane %v848, 7
    %vm883 = vcmask 1040384
    %v884 = vrot.slane %v833, 7
    %v885 = vrot.slane %v834, 7
    %v886 = vsel %vm883, %v884, %v885
    %v887 = vrot.slane %v835, 7
    %v888 = vsel %vm883, %v885, %v887
    %v889 = vrot.slane %v836, 7
    %v890 = vsel %vm883, %v887, %v889
    %v891 = vrot.slane %v837, 7
    %v892 = vsel %vm883, %v889, %v891
    %v893 = vrot.slane %v838, 7
    %v894 = vsel %vm883, %v891, %v893
    %v895 = vrot.slane %v839, 7
    %v896 = vsel %vm883, %v893, %v895
    %v897 = vrot.slane %v840, 7
    %v898 = vsel %vm883, %v895, %v897
    %v899 = vrot.slane %v841, 7
    %v900 = vsel %vm883, %v897, %v899
    %v901 = vrot.slane %v842, 7
    %v902 = vsel %vm883, %v899, %v901
    %v903 = vrot.slane %v843, 7
    %v904 = vsel %vm883, %v901, %v903
    %v905 = vrot.slane %v844, 7
    %v906 = vsel %vm883, %v903, %v905
    %v907 = vrot.slane %v845, 7
    %v908 = vsel %vm883, %v905, %v907
    %v909 = vrot.slane %v846, 7
    %v910 = vsel %vm883, %v907, %v909
    %v911 = vrot.slane %v847, 7
    %v912 = vsel %vm883, %v909, %v911
    %v913 = vsel %vm883, %v911, %v866
    %v930 = vsel %vm883, %v866, %v884
    %v931 = vsel %vm849, %v930, 0.0
    %v932 = vsel %vm850, %v886, 0.0
    %v933 = vsel %vm851, %v888, 0.0
    %v934 = vsel %vm852, %v890, 0.0
    %v935 = vsel %vm853, %v892, 0.0
    %v936 = vsel %vm854, %v894, 0.0
    %v937 = vsel %vm855, %v896, 0.0
    %v938 = vsel %vm856, %v898, 0.0
    %v939 = vsel %vm857, %v900, 0.0
    %v940 = vsel %vm858, %v902, 0.0
    %v941 = vsel %vm859, %v904, 0.0
    %v942 = vsel %vm860, %v906, 0.0
    %v943 = vsel %vm861, %v908, 0.0
    %v944 = vsel %vm862, %v910, 0.0
    %v945 = vsel %vm863, %v912, 0.0
    %v946 = vsel %vm864, %v913, 0.0
    %vm947 = vcmp.le.s32.totalorder %v817, 12
    %vm948 = vcmp.le.s32.totalorder %v818, 12
    %vm949 = vcmp.le.s32.totalorder %v819, 12
    %vm950 = vcmp.le.s32.totalorder %v820, 12
    %vm951 = vcmp.le.s32.totalorder %v821, 12
    %vm952 = vcmp.le.s32.totalorder %v822, 12
    %vm953 = vcmp.le.s32.totalorder %v823, 12
    %vm954 = vcmp.le.s32.totalorder %v824, 12
    %vm955 = vcmp.le.s32.totalorder %v825, 12
    %vm956 = vcmp.le.s32.totalorder %v826, 12
    %vm957 = vcmp.le.s32.totalorder %v827, 12
    %vm958 = vcmp.le.s32.totalorder %v828, 12
    %vm959 = vcmp.le.s32.totalorder %v829, 12
    %vm960 = vcmp.le.s32.totalorder %v830, 12
    %vm961 = vcmp.le.s32.totalorder %v831, 12
    %vm962 = vcmp.le.s32.totalorder %v832, 12
    %v963 = vrot.slane %v833, 1
    %v964 = vrot.slane %v834, 1
    %v965 = vsel %vm85, %v963, %v964
    %v966 = vrot.slane %v835, 1
    %v967 = vsel %vm85, %v964, %v966
    %v968 = vrot.slane %v836, 1
    %v969 = vsel %vm85, %v966, %v968
    %v970 = vrot.slane %v837, 1
    %v971 = vsel %vm85, %v968, %v970
    %v972 = vrot.slane %v838, 1
    %v973 = vsel %vm85, %v970, %v972
    %v974 = vrot.slane %v839, 1
    %v975 = vsel %vm85, %v972, %v974
    %v976 = vrot.slane %v840, 1
    %v977 = vsel %vm85, %v974, %v976
    %v978 = vrot.slane %v841, 1
    %v979 = vsel %vm85, %v976, %v978
    %v980 = vrot.slane %v842, 1
    %v981 = vsel %vm85, %v978, %v980
    %v982 = vrot.slane %v843, 1
    %v983 = vsel %vm85, %v980, %v982
    %v984 = vrot.slane %v844, 1
    %v985 = vsel %vm85, %v982, %v984
    %v986 = vrot.slane %v845, 1
    %v987 = vsel %vm85, %v984, %v986
    %v988 = vrot.slane %v846, 1
    %v989 = vsel %vm85, %v986, %v988
    %v990 = vrot.slane %v847, 1
    %v991 = vsel %vm85, %v988, %v990
    %v992 = vrot.slane %v848, 1
    %v993 = vsel %vm85, %v990, %v992
    %v1011 = vsel %vm85, %v992, %v963
    %v1012 = vsel %vm947, %v965, 0.0
    %v1013 = vsel %vm948, %v967, 0.0
    %v1014 = vsel %vm949, %v969, 0.0
    %v1015 = vsel %vm950, %v971, 0.0
    %v1016 = vsel %vm951, %v973, 0.0
    %v1017 = vsel %vm952, %v975, 0.0
    %v1018 = vsel %vm953, %v977, 0.0
    %v1019 = vsel %vm954, %v979, 0.0
    %v1020 = vsel %vm955, %v981, 0.0
    %v1021 = vsel %vm956, %v983, 0.0
    %v1022 = vsel %vm957, %v985, 0.0
    %v1023 = vsel %vm958, %v987, 0.0
    %v1024 = vsel %vm959, %v989, 0.0
    %v1025 = vsel %vm960, %v991, 0.0
    %v1026 = vsel %vm961, %v993, 0.0
    %v1027 = vsel %vm962, %v1011, 0.0
    %1028 = vrot.lane.b32.xlu0 %v833, 32
    %v1029 = vpop.permute.xlu0 %1028
    %1030 = vrot.lane.b32.xlu0 %v834, 32
    %v1031 = vpop.permute.xlu0 %1030
    %1032 = vrot.lane.b32.xlu0 %v835, 32
    %v1033 = vpop.permute.xlu0 %1032
    %1034 = vrot.lane.b32.xlu0 %v836, 32
    %v1035 = vpop.permute.xlu0 %1034
    %1036 = vrot.lane.b32.xlu0 %v837, 32
    %v1037 = vpop.permute.xlu0 %1036
    %1038 = vrot.lane.b32.xlu0 %v838, 32
    %v1039 = vpop.permute.xlu0 %1038
    %1040 = vrot.lane.b32.xlu0 %v839, 32
    %v1041 = vpop.permute.xlu0 %1040
    %1042 = vrot.lane.b32.xlu0 %v840, 32
    %v1043 = vpop.permute.xlu0 %1042
    %1044 = vrot.lane.b32.xlu0 %v841, 32
    %v1045 = vpop.permute.xlu0 %1044
    %1046 = vrot.lane.b32.xlu0 %v842, 32
    %v1047 = vpop.permute.xlu0 %1046
    %1048 = vrot.lane.b32.xlu0 %v843, 32
    %v1049 = vpop.permute.xlu0 %1048
    %1050 = vrot.lane.b32.xlu0 %v844, 32
    %v1051 = vpop.permute.xlu0 %1050
    %1052 = vrot.lane.b32.xlu0 %v845, 32
    %v1053 = vpop.permute.xlu0 %1052
    %1054 = vrot.lane.b32.xlu0 %v846, 32
    %v1055 = vpop.permute.xlu0 %1054
    %1056 = vrot.lane.b32.xlu0 %v847, 32
    %v1057 = vpop.permute.xlu0 %1056
    %1058 = vrot.lane.b32.xlu0 %v848, 32
    %v1059 = vpop.permute.xlu0 %1058
    %1092 = vrot.lane.b32.xlu0 %v1012, 64
    %v1093 = vpop.permute.xlu0 %1092
    %1094 = vrot.lane.b32.xlu0 %v1013, 64
    %v1095 = vpop.permute.xlu0 %1094
    %1096 = vrot.lane.b32.xlu0 %v1014, 64
    %v1097 = vpop.permute.xlu0 %1096
    %1098 = vrot.lane.b32.xlu0 %v1015, 64
    %v1099 = vpop.permute.xlu0 %1098
    %1100 = vrot.lane.b32.xlu0 %v1016, 64
    %v1101 = vpop.permute.xlu0 %1100
    %1102 = vrot.lane.b32.xlu0 %v1017, 64
    %v1103 = vpop.permute.xlu0 %1102
    %1104 = vrot.lane.b32.xlu0 %v1018, 64
    %v1105 = vpop.permute.xlu0 %1104
    %1106 = vrot.lane.b32.xlu0 %v1019, 64
    %v1107 = vpop.permute.xlu0 %1106
    %1108 = vrot.lane.b32.xlu0 %v1020, 64
    %v1109 = vpop.permute.xlu0 %1108
    %1110 = vrot.lane.b32.xlu0 %v1021, 64
    %v1111 = vpop.permute.xlu0 %1110
    %1112 = vrot.lane.b32.xlu0 %v1022, 64
    %v1113 = vpop.permute.xlu0 %1112
    %1114 = vrot.lane.b32.xlu0 %v1023, 64
    %v1115 = vpop.permute.xlu0 %1114
    %1116 = vrot.lane.b32.xlu0 %v1024, 64
    %v1117 = vpop.permute.xlu0 %1116
    %1118 = vrot.lane.b32.xlu0 %v1025, 64
    %v1119 = vpop.permute.xlu0 %1118
    %1120 = vrot.lane.b32.xlu0 %v1026, 64
    %v1121 = vpop.permute.xlu0 %1120
    %1122 = vrot.lane.b32.xlu0 %v1027, 64
    %v1123 = vpop.permute.xlu0 %1122
    %v1140 = vsel %vm253, %v931, %v1029
    %v1141 = vsel %vm253, %v932, %v1031
    %v1142 = vsel %vm253, %v933, %v1033
    %v1143 = vsel %vm253, %v934, %v1035
    %v1144 = vsel %vm253, %v935, %v1037
    %v1145 = vsel %vm253, %v936, %v1039
    %v1146 = vsel %vm253, %v937, %v1041
    %v1147 = vsel %vm253, %v938, %v1043
    %v1148 = vsel %vm253, %v939, %v1045
    %v1149 = vsel %vm253, %v940, %v1047
    %v1150 = vsel %vm253, %v941, %v1049
    %v1151 = vsel %vm253, %v942, %v1051
    %v1152 = vsel %vm253, %v943, %v1053
    %v1153 = vsel %vm253, %v944, %v1055
    %v1154 = vsel %vm253, %v945, %v1057
    %v1155 = vsel %vm253, %v946, %v1059
    %v1156 = vsel %vm270, %v1140, %v1093
    %v1157 = vsel %vm270, %v1141, %v1095
    %v1158 = vsel %vm270, %v1142, %v1097
    %v1159 = vsel %vm270, %v1143, %v1099
    %v1160 = vsel %vm270, %v1144, %v1101
    %v1161 = vsel %vm270, %v1145, %v1103
    %v1162 = vsel %vm270, %v1146, %v1105
    %v1163 = vsel %vm270, %v1147, %v1107
    %v1164 = vsel %vm270, %v1148, %v1109
    %v1165 = vsel %vm270, %v1149, %v1111
    %v1166 = vsel %vm270, %v1150, %v1113
    %v1167 = vsel %vm270, %v1151, %v1115
    %v1168 = vsel %vm270, %v1152, %v1117
    %v1169 = vsel %vm270, %v1153, %v1119
    %v1170 = vsel %vm270, %v1154, %v1121
    %v1171 = vsel %vm270, %v1155, %v1123
    %v1173 = vlaneseq
    %v1174 = vshrl.u32 %v1173, 7
    %v1175 = vsub.s32 0, %v1174
    %v1176 = vrot.slane %v52, %v1175
    %v1179 = vsel %vm293, %v1156, 0
    %v1182 = vsel %vm293, %v1157, 0
    %v1185 = vsel %vm293, %v1158, 0
    %v1188 = vsel %vm293, %v1159, 0
    %v1191 = vsel %vm293, %v1160, 0
    %v1194 = vsel %vm293, %v1161, 0
    %v1197 = vsel %vm293, %v1162, 0
    %v1200 = vsel %vm293, %v1163, 0
    %v1203 = vsel %vm293, %v1164, 0
    %v1206 = vsel %vm293, %v1165, 0
    %v1209 = vsel %vm293, %v1166, 0
    %v1212 = vsel %vm293, %v1167, 0
    %v1215 = vsel %vm293, %v1168, 0
    %v1218 = vsel %vm293, %v1169, 0
    %v1221 = vsel %vm293, %v1170, 0
    %v1224 = vsel %vm293, %v1171, 0
    %1226 = vmatprep.subr.mxu0 0.0
    %1227 = vmatpush1.msra.mxu0 0.0
    %1228 = vmatprep.subr.mxu0 0.0
    %1229 = vmatpush1.msra.mxu0 0.0
    %1230 = vmatprep.subr.mxu0 0.0
    %1231 = vmatpush1.msra.mxu0 0.0
    %1232 = vmatprep.subr.mxu0 0.0
    %1233 = vmatpush1.msra.mxu0 0.0
    %1234 = vmatprep.subr.mxu0 0.0
    %1235 = vmatpush1.msra.mxu0 %v51
    %1236 = vmatprep.subr.mxu0 0.0
    %1237 = vmatpush1.msra.mxu0 %v50
    %1238 = vmatprep.subr.mxu0 0.0
    %1239 = vmatpush1.msra.mxu0 %v49
    %1240 = vmatprep.subr.mxu0 0.0
    %1241 = vmatpush1.msra.mxu0 %v48
    %1242 = vmatprep.subr.mxu0 0.0
    %1243 = vmatpush1.msra.mxu0 %v47
    %1244 = vmatprep.subr.mxu0 0.0
    %1245 = vmatpush1.msra.mxu0 %v46
    %1246 = vmatprep.subr.mxu0 0.0
    %1247 = vmatpush1.msra.mxu0 %v45
    %1248 = vmatprep.subr.mxu0 0.0
    %1249 = vmatpush1.msra.mxu0 %v44
    %1250 = vmatprep.subr.mxu0 0.0
    %1251 = vmatpush1.msra.mxu0 %v43
    %1252 = vmatprep.subr.mxu0 0.0
    %1253 = vmatpush1.msra.mxu0 %v42
    %1254 = vmatprep.subr.mxu0 0.0
    %1255 = vmatpush1.msra.mxu0 %v41
    %1256 = vmatprep.subr.mxu0 0.0
    %1257 = vmatpush1.msra.mxu0 %v40
    %1258 = vmatprep.subr.mxu0 0.0
    %1259 = vmatpush2.msra.mxu0 0.0
    %1260 = vmatprep.subr.mxu0 0.0
    %1261 = vmatpush2.msra.mxu0 0.0
    %1262 = vmatprep.subr.mxu0 0.0
    %1263 = vmatpush2.msra.mxu0 0.0
    %1264 = vmatprep.subr.mxu0 0.0
    %1265 = vmatpush2.msra.mxu0 0.0
    %1266 = vmatprep.subr.mxu0 0.0
    %1267 = vmatpush2.msra.mxu0 0.0
    %1268 = vmatprep.subr.mxu0 0.0
    %1269 = vmatpush2.msra.mxu0 0.0
    %1270 = vmatprep.subr.mxu0 0.0
    %1271 = vmatpush2.msra.mxu0 0.0
    %1272 = vmatprep.subr.mxu0 0.0
    %1273 = vmatpush2.msra.mxu0 0.0
    %1274 = vmatprep.subr.mxu0 0.0
    %1275 = vmatpush2.msra.mxu0 0.0
    %1276 = vmatprep.subr.mxu0 0.0
    %1277 = vmatpush2.msra.mxu0 0.0
    %1278 = vmatprep.subr.mxu0 0.0
    %1279 = vmatpush2.msra.mxu0 0.0
    %1280 = vmatprep.subr.mxu0 0.0
    %1281 = vmatpush2.msra.mxu0 0.0
    %1282 = vmatprep.subr.mxu0 0.0
    %1283 = vmatpush2.msra.mxu0 0.0
    %1284 = vmatprep.subr.mxu0 0.0
    %1285 = vmatpush2.msra.mxu0 0.0
    %1286 = vmatprep.subr.mxu0 0.0
    %1287 = vmatpush2.msra.mxu0 0.0
    %1288 = vmatprep.subr.mxu0 0.0
    %1289 = vmatpush2.msra.mxu0 0.0
    %1290 = vmatprep.mubr.f32.mxu0 0.0
    %1291 = vmatmul.mubr.f32.gmra.mxu0 %v1179
    %v1292 = vpop.f32.mrf.mxu0
    %v1293 = vadd.f32 %v1176, %v1292
    %v1294 = vpop.f32.mrf.mxu0
    %1295 = vmatprep.mubr.f32.mxu0 0.0
    %1296 = vmatmul.mubr.f32.gmra.mxu0 %v1182
    %v1297 = vpop.f32.mrf.mxu0
    %v1298 = vadd.f32 %v1176, %v1297
    %v1299 = vpop.f32.mrf.mxu0
    %1300 = vmatprep.mubr.f32.mxu0 0.0
    %1301 = vmatmul.mubr.f32.gmra.mxu0 %v1185
    %v1302 = vpop.f32.mrf.mxu0
    %v1303 = vadd.f32 %v1176, %v1302
    %v1304 = vpop.f32.mrf.mxu0
    %1305 = vmatprep.mubr.f32.mxu0 0.0
    %1306 = vmatmul.mubr.f32.gmra.mxu0 %v1188
    %v1307 = vpop.f32.mrf.mxu0
    %v1308 = vadd.f32 %v1176, %v1307
    %v1309 = vpop.f32.mrf.mxu0
    %1310 = vmatprep.mubr.f32.mxu0 0.0
    %1311 = vmatmul.mubr.f32.gmra.mxu0 %v1191
    %v1312 = vpop.f32.mrf.mxu0
    %v1313 = vadd.f32 %v1176, %v1312
    %v1314 = vpop.f32.mrf.mxu0
    %1315 = vmatprep.mubr.f32.mxu0 0.0
    %1316 = vmatmul.mubr.f32.gmra.mxu0 %v1194
    %v1317 = vpop.f32.mrf.mxu0
    %v1318 = vadd.f32 %v1176, %v1317
    %v1319 = vpop.f32.mrf.mxu0
    %1320 = vmatprep.mubr.f32.mxu0 0.0
    %1321 = vmatmul.mubr.f32.gmra.mxu0 %v1197
    %v1322 = vpop.f32.mrf.mxu0
    %v1323 = vadd.f32 %v1176, %v1322
    %v1324 = vpop.f32.mrf.mxu0
    %1325 = vmatprep.mubr.f32.mxu0 0.0
    %1326 = vmatmul.mubr.f32.gmra.mxu0 %v1200
    %v1327 = vpop.f32.mrf.mxu0
    %v1328 = vadd.f32 %v1176, %v1327
    %v1329 = vpop.f32.mrf.mxu0
    %1330 = vmatprep.mubr.f32.mxu0 0.0
    %1331 = vmatmul.mubr.f32.gmra.mxu0 %v1203
    %v1332 = vpop.f32.mrf.mxu0
    %v1333 = vadd.f32 %v1176, %v1332
    %v1334 = vpop.f32.mrf.mxu0
    %1335 = vmatprep.mubr.f32.mxu0 0.0
    %1336 = vmatmul.mubr.f32.gmra.mxu0 %v1206
    %v1337 = vpop.f32.mrf.mxu0
    %v1338 = vadd.f32 %v1176, %v1337
    %v1339 = vpop.f32.mrf.mxu0
    %1340 = vmatprep.mubr.f32.mxu0 0.0
    %1341 = vmatmul.mubr.f32.gmra.mxu0 %v1209
    %v1342 = vpop.f32.mrf.mxu0
    %v1343 = vadd.f32 %v1176, %v1342
    %v1344 = vpop.f32.mrf.mxu0
    %1345 = vmatprep.mubr.f32.mxu0 0.0
    %1346 = vmatmul.mubr.f32.gmra.mxu0 %v1212
    %v1347 = vpop.f32.mrf.mxu0
    %v1348 = vadd.f32 %v1176, %v1347
    %v1349 = vpop.f32.mrf.mxu0
    %1350 = vmatprep.mubr.f32.mxu0 0.0
    %1351 = vmatmul.mubr.f32.gmra.mxu0 %v1215
    %v1352 = vpop.f32.mrf.mxu0
    %v1353 = vadd.f32 %v1176, %v1352
    %v1354 = vpop.f32.mrf.mxu0
    %1355 = vmatprep.mubr.f32.mxu0 0.0
    %1356 = vmatmul.mubr.f32.gmra.mxu0 %v1218
    %v1357 = vpop.f32.mrf.mxu0
    %v1358 = vadd.f32 %v1176, %v1357
    %v1359 = vpop.f32.mrf.mxu0
    %1360 = vmatprep.mubr.f32.mxu0 0.0
    %1361 = vmatmul.mubr.f32.gmra.mxu0 %v1221
    %v1362 = vpop.f32.mrf.mxu0
    %v1363 = vadd.f32 %v1176, %v1362
    %v1364 = vpop.f32.mrf.mxu0
    %1365 = vmatprep.mubr.f32.mxu0 0.0
    %1366 = vmatmul.mubr.f32.gmra.mxu0 %v1224
    %v1367 = vpop.f32.mrf.mxu0
    %v1368 = vadd.f32 %v1176, %v1367
    %v1369 = vpop.f32.mrf.mxu0
    %1370 = vdwg.mxu0
    %v1371 = vmax.f32 %v1293, 0.0
    %v1372 = vmax.f32 %v1298, 0.0
    %v1373 = vmax.f32 %v1303, 0.0
    %v1374 = vmax.f32 %v1308, 0.0
    %v1375 = vmax.f32 %v1313, 0.0
    %v1376 = vmax.f32 %v1318, 0.0
    %v1377 = vmax.f32 %v1323, 0.0
    %v1378 = vmax.f32 %v1328, 0.0
    %v1379 = vmax.f32 %v1333, 0.0
    %v1380 = vmax.f32 %v1338, 0.0
    %v1381 = vmax.f32 %v1343, 0.0
    %v1382 = vmax.f32 %v1348, 0.0
    %v1383 = vmax.f32 %v1353, 0.0
    %v1384 = vmax.f32 %v1358, 0.0
    %v1385 = vmax.f32 %v1363, 0.0
    %v1386 = vmax.f32 %v1368, 0.0
    %v1388 = vrot.slane %v1386, 7
    %v1405 = vrot.slane %v1371, 7
    %v1406 = vrot.slane %v1372, 7
    %v1407 = vsel %vm883, %v1405, %v1406
    %v1408 = vrot.slane %v1373, 7
    %v1409 = vsel %vm883, %v1406, %v1408
    %v1410 = vrot.slane %v1374, 7
    %v1411 = vsel %vm883, %v1408, %v1410
    %v1412 = vrot.slane %v1375, 7
    %v1413 = vsel %vm883, %v1410, %v1412
    %v1414 = vrot.slane %v1376, 7
    %v1415 = vsel %vm883, %v1412, %v1414
    %v1416 = vrot.slane %v1377, 7
    %v1417 = vsel %vm883, %v1414, %v1416
    %v1418 = vrot.slane %v1378, 7
    %v1419 = vsel %vm883, %v1416, %v1418
    %v1420 = vrot.slane %v1379, 7
    %v1421 = vsel %vm883, %v1418, %v1420
    %v1422 = vrot.slane %v1380, 7
    %v1423 = vsel %vm883, %v1420, %v1422
    %v1424 = vrot.slane %v1381, 7
    %v1425 = vsel %vm883, %v1422, %v1424
    %v1426 = vrot.slane %v1382, 7
    %v1427 = vsel %vm883, %v1424, %v1426
    %v1428 = vrot.slane %v1383, 7
    %v1429 = vsel %vm883, %v1426, %v1428
    %v1430 = vrot.slane %v1384, 7
    %v1431 = vsel %vm883, %v1428, %v1430
    %v1432 = vrot.slane %v1385, 7
    %v1433 = vsel %vm883, %v1430, %v1432
    %v1434 = vsel %vm883, %v1432, %v1388
    %v1451 = vsel %vm883, %v1388, %v1405
    %v1452 = vsel %vm849, %v1451, 0.0
    %v1453 = vsel %vm850, %v1407, 0.0
    %v1454 = vsel %vm851, %v1409, 0.0
    %v1455 = vsel %vm852, %v1411, 0.0
    %v1456 = vsel %vm853, %v1413, 0.0
    %v1457 = vsel %vm854, %v1415, 0.0
    %v1458 = vsel %vm855, %v1417, 0.0
    %v1459 = vsel %vm856, %v1419, 0.0
    %v1460 = vsel %vm857, %v1421, 0.0
    %v1461 = vsel %vm858, %v1423, 0.0
    %v1462 = vsel %vm859, %v1425, 0.0
    %v1463 = vsel %vm860, %v1427, 0.0
    %v1464 = vsel %vm861, %v1429, 0.0
    %v1465 = vsel %vm862, %v1431, 0.0
    %v1466 = vsel %vm863, %v1433, 0.0
    %v1467 = vsel %vm864, %v1434, 0.0
    %v1468 = vrot.slane %v1371, 1
    %v1469 = vrot.slane %v1372, 1
    %v1470 = vsel %vm85, %v1468, %v1469
    %v1471 = vrot.slane %v1373, 1
    %v1472 = vsel %vm85, %v1469, %v1471
    %v1473 = vrot.slane %v1374, 1
    %v1474 = vsel %vm85, %v1471, %v1473
    %v1475 = vrot.slane %v1375, 1
    %v1476 = vsel %vm85, %v1473, %v1475
    %v1477 = vrot.slane %v1376, 1
    %v1478 = vsel %vm85, %v1475, %v1477
    %v1479 = vrot.slane %v1377, 1
    %v1480 = vsel %vm85, %v1477, %v1479
    %v1481 = vrot.slane %v1378, 1
    %v1482 = vsel %vm85, %v1479, %v1481
    %v1483 = vrot.slane %v1379, 1
    %v1484 = vsel %vm85, %v1481, %v1483
    %v1485 = vrot.slane %v1380, 1
    %v1486 = vsel %vm85, %v1483, %v1485
    %v1487 = vrot.slane %v1381, 1
    %v1488 = vsel %vm85, %v1485, %v1487
    %v1489 = vrot.slane %v1382, 1
    %v1490 = vsel %vm85, %v1487, %v1489
    %v1491 = vrot.slane %v1383, 1
    %v1492 = vsel %vm85, %v1489, %v1491
    %v1493 = vrot.slane %v1384, 1
    %v1494 = vsel %vm85, %v1491, %v1493
    %v1495 = vrot.slane %v1385, 1
    %v1496 = vsel %vm85, %v1493, %v1495
    %v1497 = vrot.slane %v1386, 1
    %v1498 = vsel %vm85, %v1495, %v1497
    %v1516 = vsel %vm85, %v1497, %v1468
    %v1517 = vsel %vm947, %v1470, 0.0
    %v1518 = vsel %vm948, %v1472, 0.0
    %v1519 = vsel %vm949, %v1474, 0.0
    %v1520 = vsel %vm950, %v1476, 0.0
    %v1521 = vsel %vm951, %v1478, 0.0
    %v1522 = vsel %vm952, %v1480, 0.0
    %v1523 = vsel %vm953, %v1482, 0.0
    %v1524 = vsel %vm954, %v1484, 0.0
    %v1525 = vsel %vm955, %v1486, 0.0
    %v1526 = vsel %vm956, %v1488, 0.0
    %v1527 = vsel %vm957, %v1490, 0.0
    %v1528 = vsel %vm958, %v1492, 0.0
    %v1529 = vsel %vm959, %v1494, 0.0
    %v1530 = vsel %vm960, %v1496, 0.0
    %v1531 = vsel %vm961, %v1498, 0.0
    %v1532 = vsel %vm962, %v1516, 0.0
    %1533 = vrot.lane.b32.xlu0 %v1371, 32
    %v1534 = vpop.permute.xlu0 %1533
    %1535 = vrot.lane.b32.xlu0 %v1372, 32
    %v1536 = vpop.permute.xlu0 %1535
    %1537 = vrot.lane.b32.xlu0 %v1373, 32
    %v1538 = vpop.permute.xlu0 %1537
    %1539 = vrot.lane.b32.xlu0 %v1374, 32
    %v1540 = vpop.permute.xlu0 %1539
    %1541 = vrot.lane.b32.xlu0 %v1375, 32
    %v1542 = vpop.permute.xlu0 %1541
    %1543 = vrot.lane.b32.xlu0 %v1376, 32
    %v1544 = vpop.permute.xlu0 %1543
    %1545 = vrot.lane.b32.xlu0 %v1377, 32
    %v1546 = vpop.permute.xlu0 %1545
    %1547 = vrot.lane.b32.xlu0 %v1378, 32
    %v1548 = vpop.permute.xlu0 %1547
    %1549 = vrot.lane.b32.xlu0 %v1379, 32
    %v1550 = vpop.permute.xlu0 %1549
    %1551 = vrot.lane.b32.xlu0 %v1380, 32
    %v1552 = vpop.permute.xlu0 %1551
    %1553 = vrot.lane.b32.xlu0 %v1381, 32
    %v1554 = vpop.permute.xlu0 %1553
    %1555 = vrot.lane.b32.xlu0 %v1382, 32
    %v1556 = vpop.permute.xlu0 %1555
    %1557 = vrot.lane.b32.xlu0 %v1383, 32
    %v1558 = vpop.permute.xlu0 %1557
    %1559 = vrot.lane.b32.xlu0 %v1384, 32
    %v1560 = vpop.permute.xlu0 %1559
    %1561 = vrot.lane.b32.xlu0 %v1385, 32
    %v1562 = vpop.permute.xlu0 %1561
    %1563 = vrot.lane.b32.xlu0 %v1386, 32
    %v1564 = vpop.permute.xlu0 %1563
    %1597 = vrot.lane.b32.xlu0 %v1517, 64
    %v1598 = vpop.permute.xlu0 %1597
    %1599 = vrot.lane.b32.xlu0 %v1518, 64
    %v1600 = vpop.permute.xlu0 %1599
    %1601 = vrot.lane.b32.xlu0 %v1519, 64
    %v1602 = vpop.permute.xlu0 %1601
    %1603 = vrot.lane.b32.xlu0 %v1520, 64
    %v1604 = vpop.permute.xlu0 %1603
    %1605 = vrot.lane.b32.xlu0 %v1521, 64
    %v1606 = vpop.permute.xlu0 %1605
    %1607 = vrot.lane.b32.xlu0 %v1522, 64
    %v1608 = vpop.permute.xlu0 %1607
    %1609 = vrot.lane.b32.xlu0 %v1523, 64
    %v1610 = vpop.permute.xlu0 %1609
    %1611 = vrot.lane.b32.xlu0 %v1524, 64
    %v1612 = vpop.permute.xlu0 %1611
    %1613 = vrot.lane.b32.xlu0 %v1525, 64
    %v1614 = vpop.permute.xlu0 %1613
    %1615 = vrot.lane.b32.xlu0 %v1526, 64
    %v1616 = vpop.permute.xlu0 %1615
    %1617 = vrot.lane.b32.xlu0 %v1527, 64
    %v1618 = vpop.permute.xlu0 %1617
    %1619 = vrot.lane.b32.xlu0 %v1528, 64
    %v1620 = vpop.permute.xlu0 %1619
    %1621 = vrot.lane.b32.xlu0 %v1529, 64
    %v1622 = vpop.permute.xlu0 %1621
    %1623 = vrot.lane.b32.xlu0 %v1530, 64
    %v1624 = vpop.permute.xlu0 %1623
    %1625 = vrot.lane.b32.xlu0 %v1531, 64
    %v1626 = vpop.permute.xlu0 %1625
    %1627 = vrot.lane.b32.xlu0 %v1532, 64
    %v1628 = vpop.permute.xlu0 %1627
    %v1645 = vsel %vm253, %v1452, %v1534
    %v1646 = vsel %vm253, %v1453, %v1536
    %v1647 = vsel %vm253, %v1454, %v1538
    %v1648 = vsel %vm253, %v1455, %v1540
    %v1649 = vsel %vm253, %v1456, %v1542
    %v1650 = vsel %vm253, %v1457, %v1544
    %v1651 = vsel %vm253, %v1458, %v1546
    %v1652 = vsel %vm253, %v1459, %v1548
    %v1653 = vsel %vm253, %v1460, %v1550
    %v1654 = vsel %vm253, %v1461, %v1552
    %v1655 = vsel %vm253, %v1462, %v1554
    %v1656 = vsel %vm253, %v1463, %v1556
    %v1657 = vsel %vm253, %v1464, %v1558
    %v1658 = vsel %vm253, %v1465, %v1560
    %v1659 = vsel %vm253, %v1466, %v1562
    %v1660 = vsel %vm253, %v1467, %v1564
    %v1661 = vsel %vm270, %v1645, %v1598
    %v1662 = vsel %vm270, %v1646, %v1600
    %v1663 = vsel %vm270, %v1647, %v1602
    %v1664 = vsel %vm270, %v1648, %v1604
    %v1665 = vsel %vm270, %v1649, %v1606
    %v1666 = vsel %vm270, %v1650, %v1608
    %v1667 = vsel %vm270, %v1651, %v1610
    %v1668 = vsel %vm270, %v1652, %v1612
    %v1669 = vsel %vm270, %v1653, %v1614
    %v1670 = vsel %vm270, %v1654, %v1616
    %v1671 = vsel %vm270, %v1655, %v1618
    %v1672 = vsel %vm270, %v1656, %v1620
    %v1673 = vsel %vm270, %v1657, %v1622
    %v1674 = vsel %vm270, %v1658, %v1624
    %v1675 = vsel %vm270, %v1659, %v1626
    %v1676 = vsel %vm270, %v1660, %v1628
    %v1678 = vsel %vm293, %v1661, 0
    %v1681 = vsel %vm293, %v1662, 0
    %v1684 = vsel %vm293, %v1663, 0
    %v1687 = vsel %vm293, %v1664, 0
    %v1690 = vsel %vm293, %v1665, 0
    %v1693 = vsel %vm293, %v1666, 0
    %v1696 = vsel %vm293, %v1667, 0
    %v1699 = vsel %vm293, %v1668, 0
    %v1702 = vsel %vm293, %v1669, 0
    %v1705 = vsel %vm293, %v1670, 0
    %v1708 = vsel %vm293, %v1671, 0
    %v1711 = vsel %vm293, %v1672, 0
    %v1714 = vsel %vm293, %v1673, 0
    %v1717 = vsel %vm293, %v1674, 0
    %v1720 = vsel %vm293, %v1675, 0
    %v1723 = vsel %vm293, %v1676, 0
    %1725 = vmatprep.subr.mxu0 0.0
    %1726 = vmatpush1.msra.mxu0 0.0
    %1727 = vmatprep.subr.mxu0 0.0
    %1728 = vmatpush1.msra.mxu0 0.0
    %1729 = vmatprep.subr.mxu0 0.0
    %1730 = vmatpush1.msra.mxu0 0.0
    %1731 = vmatprep.subr.mxu0 0.0
    %1732 = vmatpush1.msra.mxu0 0.0
    %1733 = vmatprep.subr.mxu0 0.0
    %1734 = vmatpush1.msra.mxu0 %v51
    %1735 = vmatprep.subr.mxu0 0.0
    %1736 = vmatpush1.msra.mxu0 %v50
    %1737 = vmatprep.subr.mxu0 0.0
    %1738 = vmatpush1.msra.mxu0 %v49
    %1739 = vmatprep.subr.mxu0 0.0
    %1740 = vmatpush1.msra.mxu0 %v48
    %1741 = vmatprep.subr.mxu0 0.0
    %1742 = vmatpush1.msra.mxu0 %v47
    %1743 = vmatprep.subr.mxu0 0.0
    %1744 = vmatpush1.msra.mxu0 %v46
    %1745 = vmatprep.subr.mxu0 0.0
    %1746 = vmatpush1.msra.mxu0 %v45
    %1747 = vmatprep.subr.mxu0 0.0
    %1748 = vmatpush1.msra.mxu0 %v44
    %1749 = vmatprep.subr.mxu0 0.0
    %1750 = vmatpush1.msra.mxu0 %v43
    %1751 = vmatprep.subr.mxu0 0.0
    %1752 = vmatpush1.msra.mxu0 %v42
    %1753 = vmatprep.subr.mxu0 0.0
    %1754 = vmatpush1.msra.mxu0 %v41
    %1755 = vmatprep.subr.mxu0 0.0
    %1756 = vmatpush1.msra.mxu0 %v40
    %1757 = vmatprep.subr.mxu0 0.0
    %1758 = vmatpush2.msra.mxu0 0.0
    %1759 = vmatprep.subr.mxu0 0.0
    %1760 = vmatpush2.msra.mxu0 0.0
    %1761 = vmatprep.subr.mxu0 0.0
    %1762 = vmatpush2.msra.mxu0 0.0
    %1763 = vmatprep.subr.mxu0 0.0
    %1764 = vmatpush2.msra.mxu0 0.0
    %1765 = vmatprep.subr.mxu0 0.0
    %1766 = vmatpush2.msra.mxu0 0.0
    %1767 = vmatprep.subr.mxu0 0.0
    %1768 = vmatpush2.msra.mxu0 0.0
    %1769 = vmatprep.subr.mxu0 0.0
    %1770 = vmatpush2.msra.mxu0 0.0
    %1771 = vmatprep.subr.mxu0 0.0
    %1772 = vmatpush2.msra.mxu0 0.0
    %1773 = vmatprep.subr.mxu0 0.0
    %1774 = vmatpush2.msra.mxu0 0.0
    %1775 = vmatprep.subr.mxu0 0.0
    %1776 = vmatpush2.msra.mxu0 0.0
    %1777 = vmatprep.subr.mxu0 0.0
    %1778 = vmatpush2.msra.mxu0 0.0
    %1779 = vmatprep.subr.mxu0 0.0
    %1780 = vmatpush2.msra.mxu0 0.0
    %1781 = vmatprep.subr.mxu0 0.0
    %1782 = vmatpush2.msra.mxu0 0.0
    %1783 = vmatprep.subr.mxu0 0.0
    %1784 = vmatpush2.msra.mxu0 0.0
    %1785 = vmatprep.subr.mxu0 0.0
    %1786 = vmatpush2.msra.mxu0 0.0
    %1787 = vmatprep.subr.mxu0 0.0
    %1788 = vmatpush2.msra.mxu0 0.0
    %1789 = vmatprep.mubr.f32.mxu0 0.0
    %1790 = vmatmul.mubr.f32.gmra.mxu0 %v1678
    %v1791 = vpop.f32.mrf.mxu0
    %v1792 = vadd.f32 %v1176, %v1791
    %v1793 = vpop.f32.mrf.mxu0
    %1794 = vmatprep.mubr.f32.mxu0 0.0
    %1795 = vmatmul.mubr.f32.gmra.mxu0 %v1681
    %v1796 = vpop.f32.mrf.mxu0
    %v1797 = vadd.f32 %v1176, %v1796
    %v1798 = vpop.f32.mrf.mxu0
    %1799 = vmatprep.mubr.f32.mxu0 0.0
    %1800 = vmatmul.mubr.f32.gmra.mxu0 %v1684
    %v1801 = vpop.f32.mrf.mxu0
    %v1802 = vadd.f32 %v1176, %v1801
    %v1803 = vpop.f32.mrf.mxu0
    %1804 = vmatprep.mubr.f32.mxu0 0.0
    %1805 = vmatmul.mubr.f32.gmra.mxu0 %v1687
    %v1806 = vpop.f32.mrf.mxu0
    %v1807 = vadd.f32 %v1176, %v1806
    %v1808 = vpop.f32.mrf.mxu0
    %1809 = vmatprep.mubr.f32.mxu0 0.0
    %1810 = vmatmul.mubr.f32.gmra.mxu0 %v1690
    %v1811 = vpop.f32.mrf.mxu0
    %v1812 = vadd.f32 %v1176, %v1811
    %v1813 = vpop.f32.mrf.mxu0
    %1814 = vmatprep.mubr.f32.mxu0 0.0
    %1815 = vmatmul.mubr.f32.gmra.mxu0 %v1693
    %v1816 = vpop.f32.mrf.mxu0
    %v1817 = vadd.f32 %v1176, %v1816
    %v1818 = vpop.f32.mrf.mxu0
    %1819 = vmatprep.mubr.f32.mxu0 0.0
    %1820 = vmatmul.mubr.f32.gmra.mxu0 %v1696
    %v1821 = vpop.f32.mrf.mxu0
    %v1822 = vadd.f32 %v1176, %v1821
    %v1823 = vpop.f32.mrf.mxu0
    %1824 = vmatprep.mubr.f32.mxu0 0.0
    %1825 = vmatmul.mubr.f32.gmra.mxu0 %v1699
    %v1826 = vpop.f32.mrf.mxu0
    %v1827 = vadd.f32 %v1176, %v1826
    %v1828 = vpop.f32.mrf.mxu0
    %1829 = vmatprep.mubr.f32.mxu0 0.0
    %1830 = vmatmul.mubr.f32.gmra.mxu0 %v1702
    %v1831 = vpop.f32.mrf.mxu0
    %v1832 = vadd.f32 %v1176, %v1831
    %v1833 = vpop.f32.mrf.mxu0
    %1834 = vmatprep.mubr.f32.mxu0 0.0
    %1835 = vmatmul.mubr.f32.gmra.mxu0 %v1705
    %v1836 = vpop.f32.mrf.mxu0
    %v1837 = vadd.f32 %v1176, %v1836
    %v1838 = vpop.f32.mrf.mxu0
    %1839 = vmatprep.mubr.f32.mxu0 0.0
    %1840 = vmatmul.mubr.f32.gmra.mxu0 %v1708
    %v1841 = vpop.f32.mrf.mxu0
    %v1842 = vadd.f32 %v1176, %v1841
    %v1843 = vpop.f32.mrf.mxu0
    %1844 = vmatprep.mubr.f32.mxu0 0.0
    %1845 = vmatmul.mubr.f32.gmra.mxu0 %v1711
    %v1846 = vpop.f32.mrf.mxu0
    %v1847 = vadd.f32 %v1176, %v1846
    %v1848 = vpop.f32.mrf.mxu0
    %1849 = vmatprep.mubr.f32.mxu0 0.0
    %1850 = vmatmul.mubr.f32.gmra.mxu0 %v1714
    %v1851 = vpop.f32.mrf.mxu0
    %v1852 = vadd.f32 %v1176, %v1851
    %v1853 = vpop.f32.mrf.mxu0
    %1854 = vmatprep.mubr.f32.mxu0 0.0
    %1855 = vmatmul.mubr.f32.gmra.mxu0 %v1717
    %v1856 = vpop.f32.mrf.mxu0
    %v1857 = vadd.f32 %v1176, %v1856
    %v1858 = vpop.f32.mrf.mxu0
    %1859 = vmatprep.mubr.f32.mxu0 0.0
    %1860 = vmatmul.mubr.f32.gmra.mxu0 %v1720
    %v1861 = vpop.f32.mrf.mxu0
    %v1862 = vadd.f32 %v1176, %v1861
    %v1863 = vpop.f32.mrf.mxu0
    %1864 = vmatprep.mubr.f32.mxu0 0.0
    %1865 = vmatmul.mubr.f32.gmra.mxu0 %v1723
    %v1866 = vpop.f32.mrf.mxu0
    %v1867 = vadd.f32 %v1176, %v1866
    %v1868 = vpop.f32.mrf.mxu0
    %1869 = vdwg.mxu0
    %v1870 = vadd.f32 %v1792, %v409
    %v1871 = vadd.f32 %v1797, %v414
    %v1872 = vadd.f32 %v1802, %v419
    %v1873 = vadd.f32 %v1807, %v424
    %v1874 = vadd.f32 %v1812, %v429
    %v1875 = vadd.f32 %v1817, %v434
    %v1876 = vadd.f32 %v1822, %v439
    %v1877 = vadd.f32 %v1827, %v444
    %v1878 = vadd.f32 %v1832, %v449
    %v1879 = vadd.f32 %v1837, %v454
    %v1880 = vadd.f32 %v1842, %v459
    %v1881 = vadd.f32 %v1847, %v464
    %v1882 = vadd.f32 %v1852, %v469
    %v1883 = vadd.f32 %v1857, %v474
    %v1884 = vadd.f32 %v1862, %v479
    %v1885 = vadd.f32 %v1867, %v484
    %v1902 = vrot.slane %v1870, 1
    %v1903 = vrot.slane %v1871, 1
    %v1904 = vsel %vm85, %v1902, %v1903
    %v1905 = vrot.slane %v1872, 1
    %v1906 = vsel %vm85, %v1903, %v1905
    %v1907 = vrot.slane %v1873, 1
    %v1908 = vsel %vm85, %v1905, %v1907
    %v1909 = vrot.slane %v1874, 1
    %v1910 = vsel %vm85, %v1907, %v1909
    %v1911 = vrot.slane %v1875, 1
    %v1912 = vsel %vm85, %v1909, %v1911
    %v1913 = vrot.slane %v1876, 1
    %v1914 = vsel %vm85, %v1911, %v1913
    %v1915 = vrot.slane %v1877, 1
    %v1916 = vsel %vm85, %v1913, %v1915
    %v1917 = vrot.slane %v1878, 1
    %v1918 = vsel %vm85, %v1915, %v1917
    %v1919 = vrot.slane %v1879, 1
    %v1920 = vsel %vm85, %v1917, %v1919
    %v1921 = vrot.slane %v1880, 1
    %v1922 = vsel %vm85, %v1919, %v1921
    %v1923 = vrot.slane %v1881, 1
    %v1924 = vsel %vm85, %v1921, %v1923
    %v1925 = vrot.slane %v1882, 1
    %v1926 = vsel %vm85, %v1923, %v1925
    %v1927 = vrot.slane %v1883, 1
    %v1928 = vsel %vm85, %v1925, %v1927
    %v1929 = vrot.slane %v1884, 1
    %v1930 = vsel %vm85, %v1927, %v1929
    %v1931 = vrot.slane %v1885, 1
    %v1932 = vsel %vm85, %v1929, %v1931
    %v1950 = vsel %vm85, %v1931, %v1902
    %v1951 = vsel %vm947, %v1904, 0.0
    %v1952 = vsel %vm948, %v1906, 0.0
    %v1953 = vsel %vm949, %v1908, 0.0
    %v1954 = vsel %vm950, %v1910, 0.0
    %v1955 = vsel %vm951, %v1912, 0.0
    %v1956 = vsel %vm952, %v1914, 0.0
    %v1957 = vsel %vm953, %v1916, 0.0
    %v1958 = vsel %vm954, %v1918, 0.0
    %v1959 = vsel %vm955, %v1920, 0.0
    %v1960 = vsel %vm956, %v1922, 0.0
    %v1961 = vsel %vm957, %v1924, 0.0
    %v1962 = vsel %vm958, %v1926, 0.0
    %v1963 = vsel %vm959, %v1928, 0.0
    %v1964 = vsel %vm960, %v1930, 0.0
    %v1965 = vsel %vm961, %v1932, 0.0
    %v1966 = vsel %vm962, %v1950, 0.0
    %vm1967 = vcmp.le.s32.totalorder %v817, 11
    %vm1968 = vcmp.le.s32.totalorder %v818, 11
    %vm1969 = vcmp.le.s32.totalorder %v819, 11
    %vm1970 = vcmp.le.s32.totalorder %v820, 11
    %vm1971 = vcmp.le.s32.totalorder %v821, 11
    %vm1972 = vcmp.le.s32.totalorder %v822, 11
    %vm1973 = vcmp.le.s32.totalorder %v823, 11
    %vm1974 = vcmp.le.s32.totalorder %v824, 11
    %vm1975 = vcmp.le.s32.totalorder %v825, 11
    %vm1976 = vcmp.le.s32.totalorder %v826, 11
    %vm1977 = vcmp.le.s32.totalorder %v827, 11
    %vm1978 = vcmp.le.s32.totalorder %v828, 11
    %vm1979 = vcmp.le.s32.totalorder %v829, 11
    %vm1980 = vcmp.le.s32.totalorder %v830, 11
    %vm1981 = vcmp.le.s32.totalorder %v831, 11
    %vm1982 = vcmp.le.s32.totalorder %v832, 11
    %v1983 = vrot.slane %v1870, 2
    %v1984 = vrot.slane %v1871, 2
    %v1985 = vsel %vm120, %v1983, %v1984
    %v1986 = vrot.slane %v1872, 2
    %v1987 = vsel %vm120, %v1984, %v1986
    %v1988 = vrot.slane %v1873, 2
    %v1989 = vsel %vm120, %v1986, %v1988
    %v1990 = vrot.slane %v1874, 2
    %v1991 = vsel %vm120, %v1988, %v1990
    %v1992 = vrot.slane %v1875, 2
    %v1993 = vsel %vm120, %v1990, %v1992
    %v1994 = vrot.slane %v1876, 2
    %v1995 = vsel %vm120, %v1992, %v1994
    %v1996 = vrot.slane %v1877, 2
    %v1997 = vsel %vm120, %v1994, %v1996
    %v1998 = vrot.slane %v1878, 2
    %v1999 = vsel %vm120, %v1996, %v1998
    %v2000 = vrot.slane %v1879, 2
    %v2001 = vsel %vm120, %v1998, %v2000
    %v2002 = vrot.slane %v1880, 2
    %v2003 = vsel %vm120, %v2000, %v2002
    %v2004 = vrot.slane %v1881, 2
    %v2005 = vsel %vm120, %v2002, %v2004
    %v2006 = vrot.slane %v1882, 2
    %v2007 = vsel %vm120, %v2004, %v2006
    %v2008 = vrot.slane %v1883, 2
    %v2009 = vsel %vm120, %v2006, %v2008
    %v2010 = vrot.slane %v1884, 2
    %v2011 = vsel %vm120, %v2008, %v2010
    %v2012 = vrot.slane %v1885, 2
    %v2013 = vsel %vm120, %v2010, %v2012
    %v2031 = vsel %vm120, %v2012, %v1983
    %v2032 = vsel %vm1967, %v1985, 0.0
    %v2033 = vsel %vm1968, %v1987, 0.0
    %v2034 = vsel %vm1969, %v1989, 0.0
    %v2035 = vsel %vm1970, %v1991, 0.0
    %v2036 = vsel %vm1971, %v1993, 0.0
    %v2037 = vsel %vm1972, %v1995, 0.0
    %v2038 = vsel %vm1973, %v1997, 0.0
    %v2039 = vsel %vm1974, %v1999, 0.0
    %v2040 = vsel %vm1975, %v2001, 0.0
    %v2041 = vsel %vm1976, %v2003, 0.0
    %v2042 = vsel %vm1977, %v2005, 0.0
    %v2043 = vsel %vm1978, %v2007, 0.0
    %v2044 = vsel %vm1979, %v2009, 0.0
    %v2045 = vsel %vm1980, %v2011, 0.0
    %v2046 = vsel %vm1981, %v2013, 0.0
    %v2047 = vsel %vm1982, %v2031, 0.0
    %v2048 = vmax.f32 %v1870, %v1951
    %v2049 = vmax.f32 %v1871, %v1952
    %v2050 = vmax.f32 %v1872, %v1953
    %v2051 = vmax.f32 %v1873, %v1954
    %v2052 = vmax.f32 %v1874, %v1955
    %v2053 = vmax.f32 %v1875, %v1956
    %v2054 = vmax.f32 %v1876, %v1957
    %v2055 = vmax.f32 %v1877, %v1958
    %v2056 = vmax.f32 %v1878, %v1959
    %v2057 = vmax.f32 %v1879, %v1960
    %v2058 = vmax.f32 %v1880, %v1961
    %v2059 = vmax.f32 %v1881, %v1962
    %v2060 = vmax.f32 %v1882, %v1963
    %v2061 = vmax.f32 %v1883, %v1964
    %v2062 = vmax.f32 %v1884, %v1965
    %v2063 = vmax.f32 %v1885, %v1966
    %v2064 = vmax.f32 %v2048, %v2032
    %v2065 = vmax.f32 %v2049, %v2033
    %v2066 = vmax.f32 %v2050, %v2034
    %v2067 = vmax.f32 %v2051, %v2035
    %v2068 = vmax.f32 %v2052, %v2036
    %v2069 = vmax.f32 %v2053, %v2037
    %v2070 = vmax.f32 %v2054, %v2038
    %v2071 = vmax.f32 %v2055, %v2039
    %v2072 = vmax.f32 %v2056, %v2040
    %v2073 = vmax.f32 %v2057, %v2041
    %v2074 = vmax.f32 %v2058, %v2042
    %v2075 = vmax.f32 %v2059, %v2043
    %v2076 = vmax.f32 %v2060, %v2044
    %v2077 = vmax.f32 %v2061, %v2045
    %v2078 = vmax.f32 %v2062, %v2046
    %v2079 = vmax.f32 %v2063, %v2047
    %v2080 = vlaneseq
    %v2081 = vand.u32 %v2080, 127
    %vm2082 = vcmp.ge.s32.totalorder %v488, 7
    %vm2083 = vcmp.ge.s32.totalorder %v489, 7
    %vm2084 = vcmp.ge.s32.totalorder %v490, 7
    %vm2085 = vcmp.ge.s32.totalorder %v491, 7
    %vm2086 = vcmp.ge.s32.totalorder %v492, 7
    %vm2087 = vcmp.ge.s32.totalorder %v493, 7
    %vm2088 = vcmp.ge.s32.totalorder %v494, 7
    %v2089 = vsel %vm2082, 1, 0
    %v2090 = vsel %vm2083, 1, 0
    %v2091 = vsel %vm2084, 1, 0
    %v2092 = vsel %vm2085, 1, 0
    %v2093 = vsel %vm2086, 1, 0
    %v2094 = vsel %vm2087, 1, 0
    %v2095 = vsel %vm2088, 1, 0
    %vm2096 = vcmp.ge.s32.totalorder %v488, 14
    %vm2097 = vcmp.ge.s32.totalorder %v489, 14
    %vm2098 = vcmp.ge.s32.totalorder %v490, 14
    %vm2099 = vcmp.ge.s32.totalorder %v491, 14
    %vm2100 = vcmp.ge.s32.totalorder %v492, 14
    %vm2101 = vcmp.ge.s32.totalorder %v493, 14
    %vm2102 = vcmp.ge.s32.totalorder %v494, 14
    %v2103 = vsel %vm2096, 1, 0
    %v2104 = vsel %vm2097, 1, 0
    %v2105 = vsel %vm2098, 1, 0
    %v2106 = vsel %vm2099, 1, 0
    %v2107 = vsel %vm2100, 1, 0
    %v2108 = vsel %vm2101, 1, 0
    %v2109 = vsel %vm2102, 1, 0
    %v2110 = vadd.s32 %v2089, %v2103
    %v2111 = vadd.s32 %v2090, %v2104
    %v2112 = vadd.s32 %v2091, %v2105
    %v2113 = vadd.s32 %v2092, %v2106
    %v2114 = vadd.s32 %v2093, %v2107
    %v2115 = vadd.s32 %v2094, %v2108
    %v2116 = vadd.s32 %v2095, %v2109
    %vm2117 = vcmp.ge.s32.totalorder %v488, 21
    %vm2118 = vcmp.ge.s32.totalorder %v489, 21
    %vm2119 = vcmp.ge.s32.totalorder %v490, 21
    %vm2120 = vcmp.ge.s32.totalorder %v491, 21
    %vm2121 = vcmp.ge.s32.totalorder %v492, 21
    %vm2122 = vcmp.ge.s32.totalorder %v493, 21
    %vm2123 = vcmp.ge.s32.totalorder %v494, 21
    %v2124 = vsel %vm2117, 1, 0
    %v2125 = vsel %vm2118, 1, 0
    %v2126 = vsel %vm2119, 1, 0
    %v2127 = vsel %vm2120, 1, 0
    %v2128 = vsel %vm2121, 1, 0
    %v2129 = vsel %vm2122, 1, 0
    %v2130 = vsel %vm2123, 1, 0
    %v2131 = vadd.s32 %v2110, %v2124
    %v2132 = vadd.s32 %v2111, %v2125
    %v2133 = vadd.s32 %v2112, %v2126
    %v2134 = vadd.s32 %v2113, %v2127
    %v2135 = vadd.s32 %v2114, %v2128
    %v2136 = vadd.s32 %v2115, %v2129
    %v2137 = vadd.s32 %v2116, %v2130
    %vm2138 = vcmp.ge.s32.totalorder %v488, 28
    %vm2139 = vcmp.ge.s32.totalorder %v489, 28
    %vm2140 = vcmp.ge.s32.totalorder %v490, 28
    %vm2141 = vcmp.ge.s32.totalorder %v491, 28
    %vm2142 = vcmp.ge.s32.totalorder %v492, 28
    %vm2143 = vcmp.ge.s32.totalorder %v493, 28
    %vm2144 = vcmp.ge.s32.totalorder %v494, 28
    %v2145 = vsel %vm2138, 1, 0
    %v2146 = vsel %vm2139, 1, 0
    %v2147 = vsel %vm2140, 1, 0
    %v2148 = vsel %vm2141, 1, 0
    %v2149 = vsel %vm2142, 1, 0
    %v2150 = vsel %vm2143, 1, 0
    %v2151 = vsel %vm2144, 1, 0
    %v2152 = vadd.s32 %v2131, %v2145
    %v2153 = vadd.s32 %v2132, %v2146
    %v2154 = vadd.s32 %v2133, %v2147
    %v2155 = vadd.s32 %v2134, %v2148
    %v2156 = vadd.s32 %v2135, %v2149
    %v2157 = vadd.s32 %v2136, %v2150
    %v2158 = vadd.s32 %v2137, %v2151
    %vm2159 = vcmp.ge.s32.totalorder %v488, 35
    %vm2160 = vcmp.ge.s32.totalorder %v489, 35
    %vm2161 = vcmp.ge.s32.totalorder %v490, 35
    %vm2162 = vcmp.ge.s32.totalorder %v491, 35
    %vm2163 = vcmp.ge.s32.totalorder %v492, 35
    %vm2164 = vcmp.ge.s32.totalorder %v493, 35
    %vm2165 = vcmp.ge.s32.totalorder %v494, 35
    %v2166 = vsel %vm2159, 1, 0
    %v2167 = vsel %vm2160, 1, 0
    %v2168 = vsel %vm2161, 1, 0
    %v2169 = vsel %vm2162, 1, 0
    %v2170 = vsel %vm2163, 1, 0
    %v2171 = vsel %vm2164, 1, 0
    %v2172 = vsel %vm2165, 1, 0
    %v2173 = vadd.s32 %v2152, %v2166
    %v2174 = vadd.s32 %v2153, %v2167
    %v2175 = vadd.s32 %v2154, %v2168
    %v2176 = vadd.s32 %v2155, %v2169
    %v2177 = vadd.s32 %v2156, %v2170
    %v2178 = vadd.s32 %v2157, %v2171
    %v2179 = vadd.s32 %v2158, %v2172
    %vm2180 = vcmp.ge.s32.totalorder %v488, 42
    %vm2181 = vcmp.ge.s32.totalorder %v489, 42
    %vm2182 = vcmp.ge.s32.totalorder %v490, 42
    %vm2183 = vcmp.ge.s32.totalorder %v491, 42
    %vm2184 = vcmp.ge.s32.totalorder %v492, 42
    %vm2185 = vcmp.ge.s32.totalorder %v493, 42
    %vm2186 = vcmp.ge.s32.totalorder %v494, 42
    %v2187 = vsel %vm2180, 1, 0
    %v2188 = vsel %vm2181, 1, 0
    %v2189 = vsel %vm2182, 1, 0
    %v2190 = vsel %vm2183, 1, 0
    %v2191 = vsel %vm2184, 1, 0
    %v2192 = vsel %vm2185, 1, 0
    %v2193 = vsel %vm2186, 1, 0
    %v2194 = vadd.s32 %v2173, %v2187
    %v2195 = vadd.s32 %v2174, %v2188
    %v2196 = vadd.s32 %v2175, %v2189
    %v2197 = vadd.s32 %v2176, %v2190
    %v2198 = vadd.s32 %v2177, %v2191
    %v2199 = vadd.s32 %v2178, %v2192
    %v2200 = vadd.s32 %v2179, %v2193
    %vm2201 = vcmp.ge.s32.totalorder %v488, 49
    %vm2202 = vcmp.ge.s32.totalorder %v489, 49
    %vm2203 = vcmp.ge.s32.totalorder %v490, 49
    %vm2204 = vcmp.ge.s32.totalorder %v491, 49
    %vm2205 = vcmp.ge.s32.totalorder %v492, 49
    %vm2206 = vcmp.ge.s32.totalorder %v493, 49
    %vm2207 = vcmp.ge.s32.totalorder %v494, 49
    %v2208 = vsel %vm2201, 1, 0
    %v2209 = vsel %vm2202, 1, 0
    %v2210 = vsel %vm2203, 1, 0
    %v2211 = vsel %vm2204, 1, 0
    %v2212 = vsel %vm2205, 1, 0
    %v2213 = vsel %vm2206, 1, 0
    %v2214 = vsel %vm2207, 1, 0
    %v2215 = vadd.s32 %v2194, %v2208
    %v2216 = vadd.s32 %v2195, %v2209
    %v2217 = vadd.s32 %v2196, %v2210
    %v2218 = vadd.s32 %v2197, %v2211
    %v2219 = vadd.s32 %v2198, %v2212
    %v2220 = vadd.s32 %v2199, %v2213
    %v2221 = vadd.s32 %v2200, %v2214
    %v2222 = vmul.u32 %v488, 2
    %v2223 = vmul.u32 %v489, 2
    %v2224 = vmul.u32 %v490, 2
    %v2225 = vmul.u32 %v491, 2
    %v2226 = vmul.u32 %v492, 2
    %v2227 = vmul.u32 %v493, 2
    %v2228 = vmul.u32 %v494, 2
    %v2229 = vmul.u32 %v2215, 2
    %v2230 = vmul.u32 %v2216, 2
    %v2231 = vmul.u32 %v2217, 2
    %v2232 = vmul.u32 %v2218, 2
    %v2233 = vmul.u32 %v2219, 2
    %v2234 = vmul.u32 %v2220, 2
    %v2235 = vmul.u32 %v2221, 2
    %v2236 = vadd.s32 %v2222, %v2229
    %v2237 = vadd.s32 %v2223, %v2230
    %v2238 = vadd.s32 %v2224, %v2231
    %v2239 = vadd.s32 %v2225, %v2232
    %v2240 = vadd.s32 %v2226, %v2233
    %v2241 = vadd.s32 %v2227, %v2234
    %v2242 = vadd.s32 %v2228, %v2235
    %vm2243 = vcmp.eq.s32.totalorder %v2081, %v2236
    %vm2244 = vcmp.eq.s32.totalorder %v2081, %v2237
    %vm2245 = vcmp.eq.s32.totalorder %v2081, %v2238
    %vm2246 = vcmp.eq.s32.totalorder %v2081, %v2239
    %vm2247 = vcmp.eq.s32.totalorder %v2081, %v2240
    %vm2248 = vcmp.eq.s32.totalorder %v2081, %v2241
    %vm2249 = vcmp.eq.s32.totalorder %v2081, %v2242
    %v2250 = vsel %vm2243, 1, 0
    %v2251 = vsel %vm2244, 1, 0
    %v2252 = vsel %vm2245, 1, 0
    %v2253 = vsel %vm2246, 1, 0
    %v2254 = vsel %vm2247, 1, 0
    %v2255 = vsel %vm2248, 1, 0
    %v2256 = vsel %vm2249, 1, 0
    %v2257 = vcvt.s32.f32 %v2250
    %v2258 = vcvt.s32.f32 %v2251
    %v2259 = vcvt.s32.f32 %v2252
    %v2260 = vcvt.s32.f32 %v2253
    %v2261 = vcvt.s32.f32 %v2254
    %v2262 = vcvt.s32.f32 %v2255
    %v2263 = vcvt.s32.f32 %v2256
    %2264 = vmatprep.subr.mxu0 0.0
    %2265 = vmatpush1.msra.mxu0 %v2079
    %2266 = vmatprep.subr.mxu0 0.0
    %2267 = vmatpush1.msra.mxu0 %v2078
    %2268 = vmatprep.subr.mxu0 0.0
    %2269 = vmatpush1.msra.mxu0 %v2077
    %2270 = vmatprep.subr.mxu0 0.0
    %2271 = vmatpush1.msra.mxu0 %v2076
    %2272 = vmatprep.subr.mxu0 0.0
    %2273 = vmatpush1.msra.mxu0 %v2075
    %2274 = vmatprep.subr.mxu0 0.0
    %2275 = vmatpush1.msra.mxu0 %v2074
    %2276 = vmatprep.subr.mxu0 0.0
    %2277 = vmatpush1.msra.mxu0 %v2073
    %2278 = vmatprep.subr.mxu0 0.0
    %2279 = vmatpush1.msra.mxu0 %v2072
    %2280 = vmatprep.subr.mxu0 0.0
    %2281 = vmatpush1.msra.mxu0 %v2071
    %2282 = vmatprep.subr.mxu0 0.0
    %2283 = vmatpush1.msra.mxu0 %v2070
    %2284 = vmatprep.subr.mxu0 0.0
    %2285 = vmatpush1.msra.mxu0 %v2069
    %2286 = vmatprep.subr.mxu0 0.0
    %2287 = vmatpush1.msra.mxu0 %v2068
    %2288 = vmatprep.subr.mxu0 0.0
    %2289 = vmatpush1.msra.mxu0 %v2067
    %2290 = vmatprep.subr.mxu0 0.0
    %2291 = vmatpush1.msra.mxu0 %v2066
    %2292 = vmatprep.subr.mxu0 0.0
    %2293 = vmatpush1.msra.mxu0 %v2065
    %2294 = vmatprep.subr.mxu0 0.0
    %2295 = vmatpush1.msra.mxu0 %v2064
    %2296 = vmatprep.subr.mxu0 0.0
    %2297 = vmatpush2.msra.mxu0 0.0
    %2298 = vmatprep.subr.mxu0 0.0
    %2299 = vmatpush2.msra.mxu0 0.0
    %2300 = vmatprep.subr.mxu0 0.0
    %2301 = vmatpush2.msra.mxu0 0.0
    %2302 = vmatprep.subr.mxu0 0.0
    %2303 = vmatpush2.msra.mxu0 0.0
    %2304 = vmatprep.subr.mxu0 0.0
    %2305 = vmatpush2.msra.mxu0 0.0
    %2306 = vmatprep.subr.mxu0 0.0
    %2307 = vmatpush2.msra.mxu0 0.0
    %2308 = vmatprep.subr.mxu0 0.0
    %2309 = vmatpush2.msra.mxu0 0.0
    %2310 = vmatprep.subr.mxu0 0.0
    %2311 = vmatpush2.msra.mxu0 0.0
    %2312 = vmatprep.subr.mxu0 0.0
    %2313 = vmatpush2.msra.mxu0 0.0
    %2314 = vmatprep.subr.mxu0 0.0
    %2315 = vmatpush2.msra.mxu0 0.0
    %2316 = vmatprep.subr.mxu0 0.0
    %2317 = vmatpush2.msra.mxu0 0.0
    %2318 = vmatprep.subr.mxu0 0.0
    %2319 = vmatpush2.msra.mxu0 0.0
    %2320 = vmatprep.subr.mxu0 0.0
    %2321 = vmatpush2.msra.mxu0 0.0
    %2322 = vmatprep.subr.mxu0 0.0
    %2323 = vmatpush2.msra.mxu0 0.0
    %2324 = vmatprep.subr.mxu0 0.0
    %2325 = vmatpush2.msra.mxu0 0.0
    %2326 = vmatprep.subr.mxu0 0.0
    %2327 = vmatpush2.msra.mxu0 0.0
    %2328 = vmatprep.mubr.f32.mxu0 0.0
    %2329 = vmatmul.mubr.f32.gmra.mxu0 %v2257
    %v2330 = vpop.f32.mrf.mxu0
    %v2331 = vadd.f32 0.0, %v2330
    %v2332 = vpop.f32.mrf.mxu0
    %2333 = vmatprep.mubr.f32.mxu0 0.0
    %2334 = vmatmul.mubr.f32.gmra.mxu0 %v2258
    %v2335 = vpop.f32.mrf.mxu0
    %v2336 = vadd.f32 0.0, %v2335
    %v2337 = vpop.f32.mrf.mxu0
    %2338 = vmatprep.mubr.f32.mxu0 0.0
    %2339 = vmatmul.mubr.f32.gmra.mxu0 %v2259
    %v2340 = vpop.f32.mrf.mxu0
    %v2341 = vadd.f32 0.0, %v2340
    %v2342 = vpop.f32.mrf.mxu0
    %2343 = vmatprep.mubr.f32.mxu0 0.0
    %2344 = vmatmul.mubr.f32.gmra.mxu0 %v2260
    %v2345 = vpop.f32.mrf.mxu0
    %v2346 = vadd.f32 0.0, %v2345
    %v2347 = vpop.f32.mrf.mxu0
    %2348 = vmatprep.mubr.f32.mxu0 0.0
    %2349 = vmatmul.mubr.f32.gmra.mxu0 %v2261
    %v2350 = vpop.f32.mrf.mxu0
    %v2351 = vadd.f32 0.0, %v2350
    %v2352 = vpop.f32.mrf.mxu0
    %2353 = vmatprep.mubr.f32.mxu0 0.0
    %2354 = vmatmul.mubr.f32.gmra.mxu0 %v2262
    %v2355 = vpop.f32.mrf.mxu0
    %v2356 = vadd.f32 0.0, %v2355
    %v2357 = vpop.f32.mrf.mxu0
    %2358 = vmatprep.mubr.f32.mxu0 0.0
    %2359 = vmatmul.mubr.f32.gmra.mxu0 %v2263
    %v2360 = vpop.f32.mrf.mxu0
    %v2361 = vadd.f32 0.0, %v2360
    %v2362 = vpop.f32.mrf.mxu0
    %2363 = vdwg.mxu0
    %v2364 = vsub.s32 %v488, 7
    %v2365 = vsub.s32 %v489, 7
    %v2366 = vsub.s32 %v490, 7
    %v2367 = vsub.s32 %v491, 7
    %v2368 = vsub.s32 %v492, 7
    %v2369 = vsub.s32 %v493, 7
    %v2370 = vsub.s32 %v494, 7
    %v2371 = vsel %vm2082, %v2364, %v488
    %v2372 = vsel %vm2083, %v2365, %v489
    %v2373 = vsel %vm2084, %v2366, %v490
    %v2374 = vsel %vm2085, %v2367, %v491
    %v2375 = vsel %vm2086, %v2368, %v492
    %v2376 = vsel %vm2087, %v2369, %v493
    %v2377 = vsel %vm2088, %v2370, %v494
    %v2378 = vsub.s32 %v488, 14
    %v2379 = vsub.s32 %v489, 14
    %v2380 = vsub.s32 %v490, 14
    %v2381 = vsub.s32 %v491, 14
    %v2382 = vsub.s32 %v492, 14
    %v2383 = vsub.s32 %v493, 14
    %v2384 = vsub.s32 %v494, 14
    %v2385 = vsel %vm2096, %v2378, %v2371
    %v2386 = vsel %vm2097, %v2379, %v2372
    %v2387 = vsel %vm2098, %v2380, %v2373
    %v2388 = vsel %vm2099, %v2381, %v2374
    %v2389 = vsel %vm2100, %v2382, %v2375
    %v2390 = vsel %vm2101, %v2383, %v2376
    %v2391 = vsel %vm2102, %v2384, %v2377
    %v2392 = vsub.s32 %v488, 21
    %v2393 = vsub.s32 %v489, 21
    %v2394 = vsub.s32 %v490, 21
    %v2395 = vsub.s32 %v491, 21
    %v2396 = vsub.s32 %v492, 21
    %v2397 = vsub.s32 %v493, 21
    %v2398 = vsub.s32 %v494, 21
    %v2399 = vsel %vm2117, %v2392, %v2385
    %v2400 = vsel %vm2118, %v2393, %v2386
    %v2401 = vsel %vm2119, %v2394, %v2387
    %v2402 = vsel %vm2120, %v2395, %v2388
    %v2403 = vsel %vm2121, %v2396, %v2389
    %v2404 = vsel %vm2122, %v2397, %v2390
    %v2405 = vsel %vm2123, %v2398, %v2391
    %v2406 = vsub.s32 %v488, 28
    %v2407 = vsub.s32 %v489, 28
    %v2408 = vsub.s32 %v490, 28
    %v2409 = vsub.s32 %v491, 28
    %v2410 = vsub.s32 %v492, 28
    %v2411 = vsub.s32 %v493, 28
    %v2412 = vsub.s32 %v494, 28
    %v2413 = vsel %vm2138, %v2406, %v2399
    %v2414 = vsel %vm2139, %v2407, %v2400
    %v2415 = vsel %vm2140, %v2408, %v2401
    %v2416 = vsel %vm2141, %v2409, %v2402
    %v2417 = vsel %vm2142, %v2410, %v2403
    %v2418 = vsel %vm2143, %v2411, %v2404
    %v2419 = vsel %vm2144, %v2412, %v2405
    %v2420 = vsub.s32 %v488, 35
    %v2421 = vsub.s32 %v489, 35
    %v2422 = vsub.s32 %v490, 35
    %v2423 = vsub.s32 %v491, 35
    %v2424 = vsub.s32 %v492, 35
    %v2425 = vsub.s32 %v493, 35
    %v2426 = vsub.s32 %v494, 35
    %v2427 = vsel %vm2159, %v2420, %v2413
    %v2428 = vsel %vm2160, %v2421, %v2414
    %v2429 = vsel %vm2161, %v2422, %v2415
    %v2430 = vsel %vm2162, %v2423, %v2416
    %v2431 = vsel %vm2163, %v2424, %v2417
    %v2432 = vsel %vm2164, %v2425, %v2418
    %v2433 = vsel %vm2165, %v2426, %v2419
    %v2434 = vsub.s32 %v488, 42
    %v2435 = vsub.s32 %v489, 42
    %v2436 = vsub.s32 %v490, 42
    %v2437 = vsub.s32 %v491, 42
    %v2438 = vsub.s32 %v492, 42
    %v2439 = vsub.s32 %v493, 42
    %v2440 = vsub.s32 %v494, 42
    %v2441 = vsel %vm2180, %v2434, %v2427
    %v2442 = vsel %vm2181, %v2435, %v2428
    %v2443 = vsel %vm2182, %v2436, %v2429
    %v2444 = vsel %vm2183, %v2437, %v2430
    %v2445 = vsel %vm2184, %v2438, %v2431
    %v2446 = vsel %vm2185, %v2439, %v2432
    %v2447 = vsel %vm2186, %v2440, %v2433
    %v2448 = vsub.s32 %v488, 49
    %v2449 = vsub.s32 %v489, 49
    %v2450 = vsub.s32 %v490, 49
    %v2451 = vsub.s32 %v491, 49
    %v2452 = vsub.s32 %v492, 49
    %v2453 = vsub.s32 %v493, 49
    %v2454 = vsub.s32 %v494, 49
    %v2455 = vsel %vm2201, %v2448, %v2441
    %v2456 = vsel %vm2202, %v2449, %v2442
    %v2457 = vsel %vm2203, %v2450, %v2443
    %v2458 = vsel %vm2204, %v2451, %v2444
    %v2459 = vsel %vm2205, %v2452, %v2445
    %v2460 = vsel %vm2206, %v2453, %v2446
    %v2461 = vsel %vm2207, %v2454, %v2447
    %v2462 = vmax.f32 %v2331, 0.0
    %v2463 = vmax.f32 %v2336, 0.0
    %v2464 = vmax.f32 %v2341, 0.0
    %v2465 = vmax.f32 %v2346, 0.0
    %v2466 = vmax.f32 %v2351, 0.0
    %v2467 = vmax.f32 %v2356, 0.0
    %v2468 = vmax.f32 %v2361, 0.0
    %vm2469 = vcmp.ge.s32.totalorder %v2455, 1
    %vm2470 = vcmp.ge.s32.totalorder %v2456, 1
    %vm2471 = vcmp.ge.s32.totalorder %v2457, 1
    %vm2472 = vcmp.ge.s32.totalorder %v2458, 1
    %vm2473 = vcmp.ge.s32.totalorder %v2459, 1
    %vm2474 = vcmp.ge.s32.totalorder %v2460, 1
    %vm2475 = vcmp.ge.s32.totalorder %v2461, 1
    %v2477 = vrot.slane %v2468, 7
    %v2485 = vrot.slane %v2462, 7
    %v2486 = vrot.slane %v2463, 7
    %v2487 = vsel %vm883, %v2485, %v2486
    %v2488 = vrot.slane %v2464, 7
    %v2489 = vsel %vm883, %v2486, %v2488
    %v2490 = vrot.slane %v2465, 7
    %v2491 = vsel %vm883, %v2488, %v2490
    %v2492 = vrot.slane %v2466, 7
    %v2493 = vsel %vm883, %v2490, %v2492
    %v2494 = vrot.slane %v2467, 7
    %v2495 = vsel %vm883, %v2492, %v2494
    %v2496 = vsel %vm883, %v2494, %v2477
    %v2504 = vsel %vm883, %v2477, %v2485
    %v2505 = vsel %vm2469, %v2504, 0.0
    %v2506 = vsel %vm2470, %v2487, 0.0
    %v2507 = vsel %vm2471, %v2489, 0.0
    %v2508 = vsel %vm2472, %v2491, 0.0
    %v2509 = vsel %vm2473, %v2493, 0.0
    %v2510 = vsel %vm2474, %v2495, 0.0
    %v2511 = vsel %vm2475, %v2496, 0.0
    %vm2512 = vcmp.le.s32.totalorder %v2455, 5
    %vm2513 = vcmp.le.s32.totalorder %v2456, 5
    %vm2514 = vcmp.le.s32.totalorder %v2457, 5
    %vm2515 = vcmp.le.s32.totalorder %v2458, 5
    %vm2516 = vcmp.le.s32.totalorder %v2459, 5
    %vm2517 = vcmp.le.s32.totalorder %v2460, 5
    %vm2518 = vcmp.le.s32.totalorder %v2461, 5
    %v2519 = vrot.slane %v2462, 1
    %v2520 = vrot.slane %v2463, 1
    %v2521 = vsel %vm85, %v2519, %v2520
    %v2522 = vrot.slane %v2464, 1
    %v2523 = vsel %vm85, %v2520, %v2522
    %v2524 = vrot.slane %v2465, 1
    %v2525 = vsel %vm85, %v2522, %v2524
    %v2526 = vrot.slane %v2466, 1
    %v2527 = vsel %vm85, %v2524, %v2526
    %v2528 = vrot.slane %v2467, 1
    %v2529 = vsel %vm85, %v2526, %v2528
    %v2530 = vrot.slane %v2468, 1
    %v2531 = vsel %vm85, %v2528, %v2530
    %v2540 = vsel %vm85, %v2530, %v2519
    %v2541 = vsel %vm2512, %v2521, 0.0
    %v2542 = vsel %vm2513, %v2523, 0.0
    %v2543 = vsel %vm2514, %v2525, 0.0
    %v2544 = vsel %vm2515, %v2527, 0.0
    %v2545 = vsel %vm2516, %v2529, 0.0
    %v2546 = vsel %vm2517, %v2531, 0.0
    %v2547 = vsel %vm2518, %v2540, 0.0
    %2548 = vrot.lane.b32.xlu0 %v2462, 32
    %v2549 = vpop.permute.xlu0 %2548
    %2550 = vrot.lane.b32.xlu0 %v2463, 32
    %v2551 = vpop.permute.xlu0 %2550
    %2552 = vrot.lane.b32.xlu0 %v2464, 32
    %v2553 = vpop.permute.xlu0 %2552
    %2554 = vrot.lane.b32.xlu0 %v2465, 32
    %v2555 = vpop.permute.xlu0 %2554
    %2556 = vrot.lane.b32.xlu0 %v2466, 32
    %v2557 = vpop.permute.xlu0 %2556
    %2558 = vrot.lane.b32.xlu0 %v2467, 32
    %v2559 = vpop.permute.xlu0 %2558
    %2560 = vrot.lane.b32.xlu0 %v2468, 32
    %v2561 = vpop.permute.xlu0 %2560
    %2576 = vrot.lane.b32.xlu0 %v2541, 64
    %v2577 = vpop.permute.xlu0 %2576
    %2578 = vrot.lane.b32.xlu0 %v2542, 64
    %v2579 = vpop.permute.xlu0 %2578
    %2580 = vrot.lane.b32.xlu0 %v2543, 64
    %v2581 = vpop.permute.xlu0 %2580
    %2582 = vrot.lane.b32.xlu0 %v2544, 64
    %v2583 = vpop.permute.xlu0 %2582
    %2584 = vrot.lane.b32.xlu0 %v2545, 64
    %v2585 = vpop.permute.xlu0 %2584
    %2586 = vrot.lane.b32.xlu0 %v2546, 64
    %v2587 = vpop.permute.xlu0 %2586
    %2588 = vrot.lane.b32.xlu0 %v2547, 64
    %v2589 = vpop.permute.xlu0 %2588
    %v2597 = vsel %vm253, %v2505, %v2549
    %v2598 = vsel %vm253, %v2506, %v2551
    %v2599 = vsel %vm253, %v2507, %v2553
    %v2600 = vsel %vm253, %v2508, %v2555
    %v2601 = vsel %vm253, %v2509, %v2557
    %v2602 = vsel %vm253, %v2510, %v2559
    %v2603 = vsel %vm253, %v2511, %v2561
    %v2604 = vsel %vm270, %v2597, %v2577
    %v2605 = vsel %vm270, %v2598, %v2579
    %v2606 = vsel %vm270, %v2599, %v2581
    %v2607 = vsel %vm270, %v2600, %v2583
    %v2608 = vsel %vm270, %v2601, %v2585
    %v2609 = vsel %vm270, %v2602, %v2587
    %v2610 = vsel %vm270, %v2603, %v2589
    %v2612 = vsel %vm293, %v2604, 0
    %v2615 = vsel %vm293, %v2605, 0
    %v2618 = vsel %vm293, %v2606, 0
    %v2621 = vsel %vm293, %v2607, 0
    %v2624 = vsel %vm293, %v2608, 0
    %v2627 = vsel %vm293, %v2609, 0
    %v2630 = vsel %vm293, %v2610, 0
    %2632 = vmatprep.subr.mxu0 0.0
    %2633 = vmatpush1.msra.mxu0 0.0
    %2634 = vmatprep.subr.mxu0 0.0
    %2635 = vmatpush1.msra.mxu0 0.0
    %2636 = vmatprep.subr.mxu0 0.0
    %2637 = vmatpush1.msra.mxu0 0.0
    %2638 = vmatprep.subr.mxu0 0.0
    %2639 = vmatpush1.msra.mxu0 0.0
    %2640 = vmatprep.subr.mxu0 0.0
    %2641 = vmatpush1.msra.mxu0 %v51
    %2642 = vmatprep.subr.mxu0 0.0
    %2643 = vmatpush1.msra.mxu0 %v50
    %2644 = vmatprep.subr.mxu0 0.0
    %2645 = vmatpush1.msra.mxu0 %v49
    %2646 = vmatprep.subr.mxu0 0.0
    %2647 = vmatpush1.msra.mxu0 %v48
    %2648 = vmatprep.subr.mxu0 0.0
    %2649 = vmatpush1.msra.mxu0 %v47
    %2650 = vmatprep.subr.mxu0 0.0
    %2651 = vmatpush1.msra.mxu0 %v46
    %2652 = vmatprep.subr.mxu0 0.0
    %2653 = vmatpush1.msra.mxu0 %v45
    %2654 = vmatprep.subr.mxu0 0.0
    %2655 = vmatpush1.msra.mxu0 %v44
    %2656 = vmatprep.subr.mxu0 0.0
    %2657 = vmatpush1.msra.mxu0 %v43
    %2658 = vmatprep.subr.mxu0 0.0
    %2659 = vmatpush1.msra.mxu0 %v42
    %2660 = vmatprep.subr.mxu0 0.0
    %2661 = vmatpush1.msra.mxu0 %v41
    %2662 = vmatprep.subr.mxu0 0.0
    %2663 = vmatpush1.msra.mxu0 %v40
    %2664 = vmatprep.subr.mxu0 0.0
    %2665 = vmatpush2.msra.mxu0 0.0
    %2666 = vmatprep.subr.mxu0 0.0
    %2667 = vmatpush2.msra.mxu0 0.0
    %2668 = vmatprep.subr.mxu0 0.0
    %2669 = vmatpush2.msra.mxu0 0.0
    %2670 = vmatprep.subr.mxu0 0.0
    %2671 = vmatpush2.msra.mxu0 0.0
    %2672 = vmatprep.subr.mxu0 0.0
    %2673 = vmatpush2.msra.mxu0 0.0
    %2674 = vmatprep.subr.mxu0 0.0
    %2675 = vmatpush2.msra.mxu0 0.0
    %2676 = vmatprep.subr.mxu0 0.0
    %2677 = vmatpush2.msra.mxu0 0.0
    %2678 = vmatprep.subr.mxu0 0.0
    %2679 = vmatpush2.msra.mxu0 0.0
    %2680 = vmatprep.subr.mxu0 0.0
    %2681 = vmatpush2.msra.mxu0 0.0
    %2682 = vmatprep.subr.mxu0 0.0
    %2683 = vmatpush2.msra.mxu0 0.0
    %2684 = vmatprep.subr.mxu0 0.0
    %2685 = vmatpush2.msra.mxu0 0.0
    %2686 = vmatprep.subr.mxu0 0.0
    %2687 = vmatpush2.msra.mxu0 0.0
    %2688 = vmatprep.subr.mxu0 0.0
    %2689 = vmatpush2.msra.mxu0 0.0
    %2690 = vmatprep.subr.mxu0 0.0
    %2691 = vmatpush2.msra.mxu0 0.0
    %2692 = vmatprep.subr.mxu0 0.0
    %2693 = vmatpush2.msra.mxu0 0.0
    %2694 = vmatprep.subr.mxu0 0.0
    %2695 = vmatpush2.msra.mxu0 0.0
    %2696 = vmatprep.mubr.f32.mxu0 0.0
    %2697 = vmatmul.mubr.f32.gmra.mxu0 %v2612
    %v2698 = vpop.f32.mrf.mxu0
    %v2699 = vadd.f32 %v1176, %v2698
    %v2700 = vpop.f32.mrf.mxu0
    %2701 = vmatprep.mubr.f32.mxu0 0.0
    %2702 = vmatmul.mubr.f32.gmra.mxu0 %v2615
    %v2703 = vpop.f32.mrf.mxu0
    %v2704 = vadd.f32 %v1176, %v2703
    %v2705 = vpop.f32.mrf.mxu0
    %2706 = vmatprep.mubr.f32.mxu0 0.0
    %2707 = vmatmul.mubr.f32.gmra.mxu0 %v2618
    %v2708 = vpop.f32.mrf.mxu0
    %v2709 = vadd.f32 %v1176, %v2708
    %v2710 = vpop.f32.mrf.mxu0
    %2711 = vmatprep.mubr.f32.mxu0 0.0
    %2712 = vmatmul.mubr.f32.gmra.mxu0 %v2621
    %v2713 = vpop.f32.mrf.mxu0
    %v2714 = vadd.f32 %v1176, %v2713
    %v2715 = vpop.f32.mrf.mxu0
    %2716 = vmatprep.mubr.f32.mxu0 0.0
    %2717 = vmatmul.mubr.f32.gmra.mxu0 %v2624
    %v2718 = vpop.f32.mrf.mxu0
    %v2719 = vadd.f32 %v1176, %v2718
    %v2720 = vpop.f32.mrf.mxu0
    %2721 = vmatprep.mubr.f32.mxu0 0.0
    %2722 = vmatmul.mubr.f32.gmra.mxu0 %v2627
    %v2723 = vpop.f32.mrf.mxu0
    %v2724 = vadd.f32 %v1176, %v2723
    %v2725 = vpop.f32.mrf.mxu0
    %2726 = vmatprep.mubr.f32.mxu0 0.0
    %2727 = vmatmul.mubr.f32.gmra.mxu0 %v2630
    %v2728 = vpop.f32.mrf.mxu0
    %v2729 = vadd.f32 %v1176, %v2728
    %v2730 = vpop.f32.mrf.mxu0
    %2731 = vdwg.mxu0
    %v2732 = vmax.f32 %v2699, 0.0
    %v2733 = vmax.f32 %v2704, 0.0
    %v2734 = vmax.f32 %v2709, 0.0
    %v2735 = vmax.f32 %v2714, 0.0
    %v2736 = vmax.f32 %v2719, 0.0
    %v2737 = vmax.f32 %v2724, 0.0
    %v2738 = vmax.f32 %v2729, 0.0
    %v2740 = vrot.slane %v2738, 7
    %v2748 = vrot.slane %v2732, 7
    %v2749 = vrot.slane %v2733, 7
    %v2750 = vsel %vm883, %v2748, %v2749
    %v2751 = vrot.slane %v2734, 7
    %v2752 = vsel %vm883, %v2749, %v2751
    %v2753 = vrot.slane %v2735, 7
    %v2754 = vsel %vm883, %v2751, %v2753
    %v2755 = vrot.slane %v2736, 7
    %v2756 = vsel %vm883, %v2753, %v2755
    %v2757 = vrot.slane %v2737, 7
    %v2758 = vsel %vm883, %v2755, %v2757
    %v2759 = vsel %vm883, %v2757, %v2740
    %v2767 = vsel %vm883, %v2740, %v2748
    %v2768 = vsel %vm2469, %v2767, 0.0
    %v2769 = vsel %vm2470, %v2750, 0.0
    %v2770 = vsel %vm2471, %v2752, 0.0
    %v2771 = vsel %vm2472, %v2754, 0.0
    %v2772 = vsel %vm2473, %v2756, 0.0
    %v2773 = vsel %vm2474, %v2758, 0.0
    %v2774 = vsel %vm2475, %v2759, 0.0
    %v2775 = vrot.slane %v2732, 1
    %v2776 = vrot.slane %v2733, 1
    %v2777 = vsel %vm85, %v2775, %v2776
    %v2778 = vrot.slane %v2734, 1
    %v2779 = vsel %vm85, %v2776, %v2778
    %v2780 = vrot.slane %v2735, 1
    %v2781 = vsel %vm85, %v2778, %v2780
    %v2782 = vrot.slane %v2736, 1
    %v2783 = vsel %vm85, %v2780, %v2782
    %v2784 = vrot.slane %v2737, 1
    %v2785 = vsel %vm85, %v2782, %v2784
    %v2786 = vrot.slane %v2738, 1
    %v2787 = vsel %vm85, %v2784, %v2786
    %v2796 = vsel %vm85, %v2786, %v2775
    %v2797 = vsel %vm2512, %v2777, 0.0
    %v2798 = vsel %vm2513, %v2779, 0.0
    %v2799 = vsel %vm2514, %v2781, 0.0
    %v2800 = vsel %vm2515, %v2783, 0.0
    %v2801 = vsel %vm2516, %v2785, 0.0
    %v2802 = vsel %vm2517, %v2787, 0.0
    %v2803 = vsel %vm2518, %v2796, 0.0
    %2804 = vrot.lane.b32.xlu0 %v2732, 32
    %v2805 = vpop.permute.xlu0 %2804
    %2806 = vrot.lane.b32.xlu0 %v2733, 32
    %v2807 = vpop.permute.xlu0 %2806
    %2808 = vrot.lane.b32.xlu0 %v2734, 32
    %v2809 = vpop.permute.xlu0 %2808
    %2810 = vrot.lane.b32.xlu0 %v2735, 32
    %v2811 = vpop.permute.xlu0 %2810
    %2812 = vrot.lane.b32.xlu0 %v2736, 32
    %v2813 = vpop.permute.xlu0 %2812
    %2814 = vrot.lane.b32.xlu0 %v2737, 32
    %v2815 = vpop.permute.xlu0 %2814
    %2816 = vrot.lane.b32.xlu0 %v2738, 32
    %v2817 = vpop.permute.xlu0 %2816
    %2832 = vrot.lane.b32.xlu0 %v2797, 64
    %v2833 = vpop.permute.xlu0 %2832
    %2834 = vrot.lane.b32.xlu0 %v2798, 64
    %v2835 = vpop.permute.xlu0 %2834
    %2836 = vrot.lane.b32.xlu0 %v2799, 64
    %v2837 = vpop.permute.xlu0 %2836
    %2838 = vrot.lane.b32.xlu0 %v2800, 64
    %v2839 = vpop.permute.xlu0 %2838
    %2840 = vrot.lane.b32.xlu0 %v2801, 64
    %v2841 = vpop.permute.xlu0 %2840
    %2842 = vrot.lane.b32.xlu0 %v2802, 64
    %v2843 = vpop.permute.xlu0 %2842
    %2844 = vrot.lane.b32.xlu0 %v2803, 64
    %v2845 = vpop.permute.xlu0 %2844
    %v2853 = vsel %vm253, %v2768, %v2805
    %v2854 = vsel %vm253, %v2769, %v2807
    %v2855 = vsel %vm253, %v2770, %v2809
    %v2856 = vsel %vm253, %v2771, %v2811
    %v2857 = vsel %vm253, %v2772, %v2813
    %v2858 = vsel %vm253, %v2773, %v2815
    %v2859 = vsel %vm253, %v2774, %v2817
    %v2860 = vsel %vm270, %v2853, %v2833
    %v2861 = vsel %vm270, %v2854, %v2835
    %v2862 = vsel %vm270, %v2855, %v2837
    %v2863 = vsel %vm270, %v2856, %v2839
    %v2864 = vsel %vm270, %v2857, %v2841
    %v2865 = vsel %vm270, %v2858, %v2843
    %v2866 = vsel %vm270, %v2859, %v2845
    %v2868 = vsel %vm293, %v2860, 0
    %v2871 = vsel %vm293, %v2861, 0
    %v2874 = vsel %vm293, %v2862, 0
    %v2877 = vsel %vm293, %v2863, 0
    %v2880 = vsel %vm293, %v2864, 0
    %v2883 = vsel %vm293, %v2865, 0
    %v2886 = vsel %vm293, %v2866, 0
    %2888 = vmatprep.subr.mxu0 0.0
    %2889 = vmatpush1.msra.mxu0 0.0
    %2890 = vmatprep.subr.mxu0 0.0
    %2891 = vmatpush1.msra.mxu0 0.0
    %2892 = vmatprep.subr.mxu0 0.0
    %2893 = vmatpush1.msra.mxu0 0.0
    %2894 = vmatprep.subr.mxu0 0.0
    %2895 = vmatpush1.msra.mxu0 0.0
    %2896 = vmatprep.subr.mxu0 0.0
    %2897 = vmatpush1.msra.mxu0 %v51
    %2898 = vmatprep.subr.mxu0 0.0
    %2899 = vmatpush1.msra.mxu0 %v50
    %2900 = vmatprep.subr.mxu0 0.0
    %2901 = vmatpush1.msra.mxu0 %v49
    %2902 = vmatprep.subr.mxu0 0.0
    %2903 = vmatpush1.msra.mxu0 %v48
    %2904 = vmatprep.subr.mxu0 0.0
    %2905 = vmatpush1.msra.mxu0 %v47
    %2906 = vmatprep.subr.mxu0 0.0
    %2907 = vmatpush1.msra.mxu0 %v46
    %2908 = vmatprep.subr.mxu0 0.0
    %2909 = vmatpush1.msra.mxu0 %v45
    %2910 = vmatprep.subr.mxu0 0.0
    %2911 = vmatpush1.msra.mxu0 %v44
    %2912 = vmatprep.subr.mxu0 0.0
    %2913 = vmatpush1.msra.mxu0 %v43
    %2914 = vmatprep.subr.mxu0 0.0
    %2915 = vmatpush1.msra.mxu0 %v42
    %2916 = vmatprep.subr.mxu0 0.0
    %2917 = vmatpush1.msra.mxu0 %v41
    %2918 = vmatprep.subr.mxu0 0.0
    %2919 = vmatpush1.msra.mxu0 %v40
    %2920 = vmatprep.subr.mxu0 0.0
    %2921 = vmatpush2.msra.mxu0 0.0
    %2922 = vmatprep.subr.mxu0 0.0
    %2923 = vmatpush2.msra.mxu0 0.0
    %2924 = vmatprep.subr.mxu0 0.0
    %2925 = vmatpush2.msra.mxu0 0.0
    %2926 = vmatprep.subr.mxu0 0.0
    %2927 = vmatpush2.msra.mxu0 0.0
    %2928 = vmatprep.subr.mxu0 0.0
    %2929 = vmatpush2.msra.mxu0 0.0
    %2930 = vmatprep.subr.mxu0 0.0
    %2931 = vmatpush2.msra.mxu0 0.0
    %2932 = vmatprep.subr.mxu0 0.0
    %2933 = vmatpush2.msra.mxu0 0.0
    %2934 = vmatprep.subr.mxu0 0.0
    %2935 = vmatpush2.msra.mxu0 0.0
    %2936 = vmatprep.subr.mxu0 0.0
    %2937 = vmatpush2.msra.mxu0 0.0
    %2938 = vmatprep.subr.mxu0 0.0
    %2939 = vmatpush2.msra.mxu0 0.0
    %2940 = vmatprep.subr.mxu0 0.0
    %2941 = vmatpush2.msra.mxu0 0.0
    %2942 = vmatprep.subr.mxu0 0.0
    %2943 = vmatpush2.msra.mxu0 0.0
    %2944 = vmatprep.subr.mxu0 0.0
    %2945 = vmatpush2.msra.mxu0 0.0
    %2946 = vmatprep.subr.mxu0 0.0
    %2947 = vmatpush2.msra.mxu0 0.0
    %2948 = vmatprep.subr.mxu0 0.0
    %2949 = vmatpush2.msra.mxu0 0.0
    %2950 = vmatprep.subr.mxu0 0.0
    %2951 = vmatpush2.msra.mxu0 0.0
    %2952 = vmatprep.mubr.f32.mxu0 0.0
    %2953 = vmatmul.mubr.f32.gmra.mxu0 %v2868
    %v2954 = vpop.f32.mrf.mxu0
    %v2955 = vadd.f32 %v1176, %v2954
    %v2956 = vpop.f32.mrf.mxu0
    %2957 = vmatprep.mubr.f32.mxu0 0.0
    %2958 = vmatmul.mubr.f32.gmra.mxu0 %v2871
    %v2959 = vpop.f32.mrf.mxu0
    %v2960 = vadd.f32 %v1176, %v2959
    %v2961 = vpop.f32.mrf.mxu0
    %2962 = vmatprep.mubr.f32.mxu0 0.0
    %2963 = vmatmul.mubr.f32.gmra.mxu0 %v2874
    %v2964 = vpop.f32.mrf.mxu0
    %v2965 = vadd.f32 %v1176, %v2964
    %v2966 = vpop.f32.mrf.mxu0
    %2967 = vmatprep.mubr.f32.mxu0 0.0
    %2968 = vmatmul.mubr.f32.gmra.mxu0 %v2877
    %v2969 = vpop.f32.mrf.mxu0
    %v2970 = vadd.f32 %v1176, %v2969
    %v2971 = vpop.f32.mrf.mxu0
    %2972 = vmatprep.mubr.f32.mxu0 0.0
    %2973 = vmatmul.mubr.f32.gmra.mxu0 %v2880
    %v2974 = vpop.f32.mrf.mxu0
    %v2975 = vadd.f32 %v1176, %v2974
    %v2976 = vpop.f32.mrf.mxu0
    %2977 = vmatprep.mubr.f32.mxu0 0.0
    %2978 = vmatmul.mubr.f32.gmra.mxu0 %v2883
    %v2979 = vpop.f32.mrf.mxu0
    %v2980 = vadd.f32 %v1176, %v2979
    %v2981 = vpop.f32.mrf.mxu0
    %2982 = vmatprep.mubr.f32.mxu0 0.0
    %2983 = vmatmul.mubr.f32.gmra.mxu0 %v2886
    %v2984 = vpop.f32.mrf.mxu0
    %v2985 = vadd.f32 %v1176, %v2984
    %v2986 = vpop.f32.mrf.mxu0
    %2987 = vdwg.mxu0
    %v2988 = vadd.f32 %v2955, %v2331
    %v2989 = vadd.f32 %v2960, %v2336
    %v2990 = vadd.f32 %v2965, %v2341
    %v2991 = vadd.f32 %v2970, %v2346
    %v2992 = vadd.f32 %v2975, %v2351
    %v2993 = vadd.f32 %v2980, %v2356
    %v2994 = vadd.f32 %v2985, %v2361
    %v3002 = vrot.slane %v2988, 1
    %v3003 = vrot.slane %v2989, 1
    %v3004 = vsel %vm85, %v3002, %v3003
    %v3005 = vrot.slane %v2990, 1
    %v3006 = vsel %vm85, %v3003, %v3005
    %v3007 = vrot.slane %v2991, 1
    %v3008 = vsel %vm85, %v3005, %v3007
    %v3009 = vrot.slane %v2992, 1
    %v3010 = vsel %vm85, %v3007, %v3009
    %v3011 = vrot.slane %v2993, 1
    %v3012 = vsel %vm85, %v3009, %v3011
    %v3013 = vrot.slane %v2994, 1
    %v3014 = vsel %vm85, %v3011, %v3013
    %v3023 = vsel %vm85, %v3013, %v3002
    %v3024 = vsel %vm2512, %v3004, 0.0
    %v3025 = vsel %vm2513, %v3006, 0.0
    %v3026 = vsel %vm2514, %v3008, 0.0
    %v3027 = vsel %vm2515, %v3010, 0.0
    %v3028 = vsel %vm2516, %v3012, 0.0
    %v3029 = vsel %vm2517, %v3014, 0.0
    %v3030 = vsel %vm2518, %v3023, 0.0
    %vm3031 = vcmp.le.s32.totalorder %v2455, 4
    %vm3032 = vcmp.le.s32.totalorder %v2456, 4
    %vm3033 = vcmp.le.s32.totalorder %v2457, 4
    %vm3034 = vcmp.le.s32.totalorder %v2458, 4
    %vm3035 = vcmp.le.s32.totalorder %v2459, 4
    %vm3036 = vcmp.le.s32.totalorder %v2460, 4
    %vm3037 = vcmp.le.s32.totalorder %v2461, 4
    %v3038 = vrot.slane %v2988, 2
    %v3039 = vrot.slane %v2989, 2
    %v3040 = vsel %vm120, %v3038, %v3039
    %v3041 = vrot.slane %v2990, 2
    %v3042 = vsel %vm120, %v3039, %v3041
    %v3043 = vrot.slane %v2991, 2
    %v3044 = vsel %vm120, %v3041, %v3043
    %v3045 = vrot.slane %v2992, 2
    %v3046 = vsel %vm120, %v3043, %v3045
    %v3047 = vrot.slane %v2993, 2
    %v3048 = vsel %vm120, %v3045, %v3047
    %v3049 = vrot.slane %v2994, 2
    %v3050 = vsel %vm120, %v3047, %v3049
    %v3059 = vsel %vm120, %v3049, %v3038
    %v3060 = vsel %vm3031, %v3040, 0.0
    %v3061 = vsel %vm3032, %v3042, 0.0
    %v3062 = vsel %vm3033, %v3044, 0.0
    %v3063 = vsel %vm3034, %v3046, 0.0
    %v3064 = vsel %vm3035, %v3048, 0.0
    %v3065 = vsel %vm3036, %v3050, 0.0
    %v3066 = vsel %vm3037, %v3059, 0.0
    %v3067 = vmax.f32 %v2988, %v3024
    %v3068 = vmax.f32 %v2989, %v3025
    %v3069 = vmax.f32 %v2990, %v3026
    %v3070 = vmax.f32 %v2991, %v3027
    %v3071 = vmax.f32 %v2992, %v3028
    %v3072 = vmax.f32 %v2993, %v3029
    %v3073 = vmax.f32 %v2994, %v3030
    %v3074 = vmax.f32 %v3067, %v3060
    %v3075 = vmax.f32 %v3068, %v3061
    %v3076 = vmax.f32 %v3069, %v3062
    %v3077 = vmax.f32 %v3070, %v3063
    %v3078 = vmax.f32 %v3071, %v3064
    %v3079 = vmax.f32 %v3072, %v3065
    %v3080 = vmax.f32 %v3073, %v3066
    %vm3081 = vcmp.ge.s32.totalorder %v488, 3
    %vm3082 = vcmp.ge.s32.totalorder %v489, 3
    %vm3083 = vcmp.ge.s32.totalorder %v490, 3
    %v3084 = vsel %vm3081, 1, 0
    %v3085 = vsel %vm3082, 1, 0
    %v3086 = vsel %vm3083, 1, 0
    %vm3087 = vcmp.ge.s32.totalorder %v488, 6
    %vm3088 = vcmp.ge.s32.totalorder %v489, 6
    %vm3089 = vcmp.ge.s32.totalorder %v490, 6
    %v3090 = vsel %vm3087, 1, 0
    %v3091 = vsel %vm3088, 1, 0
    %v3092 = vsel %vm3089, 1, 0
    %v3093 = vadd.s32 %v3084, %v3090
    %v3094 = vadd.s32 %v3085, %v3091
    %v3095 = vadd.s32 %v3086, %v3092
    %vm3096 = vcmp.ge.s32.totalorder %v488, 9
    %vm3097 = vcmp.ge.s32.totalorder %v489, 9
    %vm3098 = vcmp.ge.s32.totalorder %v490, 9
    %v3099 = vsel %vm3096, 1, 0
    %v3100 = vsel %vm3097, 1, 0
    %v3101 = vsel %vm3098, 1, 0
    %v3102 = vadd.s32 %v3093, %v3099
    %v3103 = vadd.s32 %v3094, %v3100
    %v3104 = vadd.s32 %v3095, %v3101
    %vm3105 = vcmp.ge.s32.totalorder %v488, 12
    %vm3106 = vcmp.ge.s32.totalorder %v489, 12
    %vm3107 = vcmp.ge.s32.totalorder %v490, 12
    %v3108 = vsel %vm3105, 1, 0
    %v3109 = vsel %vm3106, 1, 0
    %v3110 = vsel %vm3107, 1, 0
    %v3111 = vadd.s32 %v3102, %v3108
    %v3112 = vadd.s32 %v3103, %v3109
    %v3113 = vadd.s32 %v3104, %v3110
    %vm3114 = vcmp.ge.s32.totalorder %v488, 15
    %vm3115 = vcmp.ge.s32.totalorder %v489, 15
    %vm3116 = vcmp.ge.s32.totalorder %v490, 15
    %v3117 = vsel %vm3114, 1, 0
    %v3118 = vsel %vm3115, 1, 0
    %v3119 = vsel %vm3116, 1, 0
    %v3120 = vadd.s32 %v3111, %v3117
    %v3121 = vadd.s32 %v3112, %v3118
    %v3122 = vadd.s32 %v3113, %v3119
    %vm3123 = vcmp.ge.s32.totalorder %v488, 18
    %vm3124 = vcmp.ge.s32.totalorder %v489, 18
    %vm3125 = vcmp.ge.s32.totalorder %v490, 18
    %v3126 = vsel %vm3123, 1, 0
    %v3127 = vsel %vm3124, 1, 0
    %v3128 = vsel %vm3125, 1, 0
    %v3129 = vadd.s32 %v3120, %v3126
    %v3130 = vadd.s32 %v3121, %v3127
    %v3131 = vadd.s32 %v3122, %v3128
    %v3132 = vadd.s32 %v3129, %v2124
    %v3133 = vadd.s32 %v3130, %v2125
    %v3134 = vadd.s32 %v3131, %v2126
    %v3135 = vadd.s32 %v2222, %v3132
    %v3136 = vadd.s32 %v2223, %v3133
    %v3137 = vadd.s32 %v2224, %v3134
    %vm3138 = vcmp.eq.s32.totalorder %v2081, %v3135
    %vm3139 = vcmp.eq.s32.totalorder %v2081, %v3136
    %vm3140 = vcmp.eq.s32.totalorder %v2081, %v3137
    %v3141 = vsel %vm3138, 1, 0
    %v3142 = vsel %vm3139, 1, 0
    %v3143 = vsel %vm3140, 1, 0
    %v3144 = vcvt.s32.f32 %v3141
    %v3145 = vcvt.s32.f32 %v3142
    %v3146 = vcvt.s32.f32 %v3143
    %vm3147 = vcmask 457728
    %v3149 = vsel %vm3147, %v3144, 0
    %v3152 = vsel %vm3147, %v3145, 0
    %v3155 = vsel %vm3147, %v3146, 0
    %3157 = vmatprep.subr.mxu0 0.0
    %3158 = vmatpush1.msra.mxu0 0.0
    %3159 = vmatprep.subr.mxu0 0.0
    %3160 = vmatpush1.msra.mxu0 0.0
    %3161 = vmatprep.subr.mxu0 0.0
    %3162 = vmatpush1.msra.mxu0 0.0
    %3163 = vmatprep.subr.mxu0 0.0
    %3164 = vmatpush1.msra.mxu0 0.0
    %3165 = vmatprep.subr.mxu0 0.0
    %3166 = vmatpush1.msra.mxu0 0.0
    %3167 = vmatprep.subr.mxu0 0.0
    %3168 = vmatpush1.msra.mxu0 0.0
    %3169 = vmatprep.subr.mxu0 0.0
    %3170 = vmatpush1.msra.mxu0 0.0
    %3171 = vmatprep.subr.mxu0 0.0
    %3172 = vmatpush1.msra.mxu0 0.0
    %3173 = vmatprep.subr.mxu0 0.0
    %3174 = vmatpush1.msra.mxu0 0.0
    %3175 = vmatprep.subr.mxu0 0.0
    %3176 = vmatpush1.msra.mxu0 %v3080
    %3177 = vmatprep.subr.mxu0 0.0
    %3178 = vmatpush1.msra.mxu0 %v3079
    %3179 = vmatprep.subr.mxu0 0.0
    %3180 = vmatpush1.msra.mxu0 %v3078
    %3181 = vmatprep.subr.mxu0 0.0
    %3182 = vmatpush1.msra.mxu0 %v3077
    %3183 = vmatprep.subr.mxu0 0.0
    %3184 = vmatpush1.msra.mxu0 %v3076
    %3185 = vmatprep.subr.mxu0 0.0
    %3186 = vmatpush1.msra.mxu0 %v3075
    %3187 = vmatprep.subr.mxu0 0.0
    %3188 = vmatpush1.msra.mxu0 %v3074
    %3189 = vmatprep.subr.mxu0 0.0
    %3190 = vmatpush2.msra.mxu0 0.0
    %3191 = vmatprep.subr.mxu0 0.0
    %3192 = vmatpush2.msra.mxu0 0.0
    %3193 = vmatprep.subr.mxu0 0.0
    %3194 = vmatpush2.msra.mxu0 0.0
    %3195 = vmatprep.subr.mxu0 0.0
    %3196 = vmatpush2.msra.mxu0 0.0
    %3197 = vmatprep.subr.mxu0 0.0
    %3198 = vmatpush2.msra.mxu0 0.0
    %3199 = vmatprep.subr.mxu0 0.0
    %3200 = vmatpush2.msra.mxu0 0.0
    %3201 = vmatprep.subr.mxu0 0.0
    %3202 = vmatpush2.msra.mxu0 0.0
    %3203 = vmatprep.subr.mxu0 0.0
    %3204 = vmatpush2.msra.mxu0 0.0
    %3205 = vmatprep.subr.mxu0 0.0
    %3206 = vmatpush2.msra.mxu0 0.0
    %3207 = vmatprep.subr.mxu0 0.0
    %3208 = vmatpush2.msra.mxu0 0.0
    %3209 = vmatprep.subr.mxu0 0.0
    %3210 = vmatpush2.msra.mxu0 0.0
    %3211 = vmatprep.subr.mxu0 0.0
    %3212 = vmatpush2.msra.mxu0 0.0
    %3213 = vmatprep.subr.mxu0 0.0
    %3214 = vmatpush2.msra.mxu0 0.0
    %3215 = vmatprep.subr.mxu0 0.0
    %3216 = vmatpush2.msra.mxu0 0.0
    %3217 = vmatprep.subr.mxu0 0.0
    %3218 = vmatpush2.msra.mxu0 0.0
    %3219 = vmatprep.subr.mxu0 0.0
    %3220 = vmatpush2.msra.mxu0 0.0
    %3221 = vmatprep.mubr.f32.mxu0 0.0
    %3222 = vmatmul.mubr.f32.gmra.mxu0 %v3149
    %v3223 = vpop.f32.mrf.mxu0
    %v3224 = vadd.f32 0.0, %v3223
    %v3225 = vpop.f32.mrf.mxu0
    %3226 = vmatprep.mubr.f32.mxu0 0.0
    %3227 = vmatmul.mubr.f32.gmra.mxu0 %v3152
    %v3228 = vpop.f32.mrf.mxu0
    %v3229 = vadd.f32 0.0, %v3228
    %v3230 = vpop.f32.mrf.mxu0
    %3231 = vmatprep.mubr.f32.mxu0 0.0
    %3232 = vmatmul.mubr.f32.gmra.mxu0 %v3155
    %v3233 = vpop.f32.mrf.mxu0
    %v3234 = vadd.f32 0.0, %v3233
    %v3235 = vpop.f32.mrf.mxu0
    %3236 = vdwg.mxu0
    %v3237 = vsub.s32 %v488, 3
    %v3238 = vsub.s32 %v489, 3
    %v3239 = vsub.s32 %v490, 3
    %v3240 = vsel %vm3081, %v3237, %v488
    %v3241 = vsel %vm3082, %v3238, %v489
    %v3242 = vsel %vm3083, %v3239, %v490
    %v3243 = vsub.s32 %v488, 6
    %v3244 = vsub.s32 %v489, 6
    %v3245 = vsub.s32 %v490, 6
    %v3246 = vsel %vm3087, %v3243, %v3240
    %v3247 = vsel %vm3088, %v3244, %v3241
    %v3248 = vsel %vm3089, %v3245, %v3242
    %v3249 = vsub.s32 %v488, 9
    %v3250 = vsub.s32 %v489, 9
    %v3251 = vsub.s32 %v490, 9
    %v3252 = vsel %vm3096, %v3249, %v3246
    %v3253 = vsel %vm3097, %v3250, %v3247
    %v3254 = vsel %vm3098, %v3251, %v3248
    %v3255 = vsub.s32 %v488, 12
    %v3256 = vsub.s32 %v489, 12
    %v3257 = vsub.s32 %v490, 12
    %v3258 = vsel %vm3105, %v3255, %v3252
    %v3259 = vsel %vm3106, %v3256, %v3253
    %v3260 = vsel %vm3107, %v3257, %v3254
    %v3261 = vsub.s32 %v488, 15
    %v3262 = vsub.s32 %v489, 15
    %v3263 = vsub.s32 %v490, 15
    %v3264 = vsel %vm3114, %v3261, %v3258
    %v3265 = vsel %vm3115, %v3262, %v3259
    %v3266 = vsel %vm3116, %v3263, %v3260
    %v3267 = vsub.s32 %v488, 18
    %v3268 = vsub.s32 %v489, 18
    %v3269 = vsub.s32 %v490, 18
    %v3270 = vsel %vm3123, %v3267, %v3264
    %v3271 = vsel %vm3124, %v3268, %v3265
    %v3272 = vsel %vm3125, %v3269, %v3266
    %v3273 = vsel %vm2117, %v2392, %v3270
    %v3274 = vsel %vm2118, %v2393, %v3271
    %v3275 = vsel %vm2119, %v2394, %v3272
    %v3276 = vmax.f32 %v3224, 0.0
    %v3277 = vmax.f32 %v3229, 0.0
    %v3278 = vmax.f32 %v3234, 0.0
    %vm3279 = vcmp.ge.s32.totalorder %v3273, 1
    %vm3280 = vcmp.ge.s32.totalorder %v3274, 1
    %vm3281 = vcmp.ge.s32.totalorder %v3275, 1
    %v3283 = vrot.slane %v3278, 7
    %v3287 = vrot.slane %v3276, 7
    %v3288 = vrot.slane %v3277, 7
    %v3289 = vsel %vm883, %v3287, %v3288
    %v3290 = vsel %vm883, %v3288, %v3283
    %v3294 = vsel %vm883, %v3283, %v3287
    %v3295 = vsel %vm3279, %v3294, 0.0
    %v3296 = vsel %vm3280, %v3289, 0.0
    %v3297 = vsel %vm3281, %v3290, 0.0
    %vm3298 = vcmp.le.s32.totalorder %v3273, 1
    %vm3299 = vcmp.le.s32.totalorder %v3274, 1
    %vm3300 = vcmp.le.s32.totalorder %v3275, 1
    %v3301 = vrot.slane %v3276, 1
    %v3302 = vrot.slane %v3277, 1
    %v3303 = vsel %vm85, %v3301, %v3302
    %v3304 = vrot.slane %v3278, 1
    %v3305 = vsel %vm85, %v3302, %v3304
    %v3310 = vsel %vm85, %v3304, %v3301
    %v3311 = vsel %vm3298, %v3303, 0.0
    %v3312 = vsel %vm3299, %v3305, 0.0
    %v3313 = vsel %vm3300, %v3310, 0.0
    %3314 = vrot.lane.b32.xlu0 %v3276, 32
    %v3315 = vpop.permute.xlu0 %3314
    %3316 = vrot.lane.b32.xlu0 %v3277, 32
    %v3317 = vpop.permute.xlu0 %3316
    %3318 = vrot.lane.b32.xlu0 %v3278, 32
    %v3319 = vpop.permute.xlu0 %3318
    %3326 = vrot.lane.b32.xlu0 %v3311, 64
    %v3327 = vpop.permute.xlu0 %3326
    %3328 = vrot.lane.b32.xlu0 %v3312, 64
    %v3329 = vpop.permute.xlu0 %3328
    %3330 = vrot.lane.b32.xlu0 %v3313, 64
    %v3331 = vpop.permute.xlu0 %3330
    %v3335 = vsel %vm253, %v3295, %v3315
    %v3336 = vsel %vm253, %v3296, %v3317
    %v3337 = vsel %vm253, %v3297, %v3319
    %v3338 = vsel %vm270, %v3335, %v3327
    %v3339 = vsel %vm270, %v3336, %v3329
    %v3340 = vsel %vm270, %v3337, %v3331
    %v3342 = vsel %vm293, %v3338, 0
    %v3345 = vsel %vm293, %v3339, 0
    %v3348 = vsel %vm293, %v3340, 0
    %3350 = vmatprep.subr.mxu0 0.0
    %3351 = vmatpush1.msra.mxu0 0.0
    %3352 = vmatprep.subr.mxu0 0.0
    %3353 = vmatpush1.msra.mxu0 0.0
    %3354 = vmatprep.subr.mxu0 0.0
    %3355 = vmatpush1.msra.mxu0 0.0
    %3356 = vmatprep.subr.mxu0 0.0
    %3357 = vmatpush1.msra.mxu0 0.0
    %3358 = vmatprep.subr.mxu0 0.0
    %3359 = vmatpush1.msra.mxu0 %v51
    %3360 = vmatprep.subr.mxu0 0.0
    %3361 = vmatpush1.msra.mxu0 %v50
    %3362 = vmatprep.subr.mxu0 0.0
    %3363 = vmatpush1.msra.mxu0 %v49
    %3364 = vmatprep.subr.mxu0 0.0
    %3365 = vmatpush1.msra.mxu0 %v48
    %3366 = vmatprep.subr.mxu0 0.0
    %3367 = vmatpush1.msra.mxu0 %v47
    %3368 = vmatprep.subr.mxu0 0.0
    %3369 = vmatpush1.msra.mxu0 %v46
    %3370 = vmatprep.subr.mxu0 0.0
    %3371 = vmatpush1.msra.mxu0 %v45
    %3372 = vmatprep.subr.mxu0 0.0
    %3373 = vmatpush1.msra.mxu0 %v44
    %3374 = vmatprep.subr.mxu0 0.0
    %3375 = vmatpush1.msra.mxu0 %v43
    %3376 = vmatprep.subr.mxu0 0.0
    %3377 = vmatpush1.msra.mxu0 %v42
    %3378 = vmatprep.subr.mxu0 0.0
    %3379 = vmatpush1.msra.mxu0 %v41
    %3380 = vmatprep.subr.mxu0 0.0
    %3381 = vmatpush1.msra.mxu0 %v40
    %3382 = vmatprep.subr.mxu0 0.0
    %3383 = vmatpush2.msra.mxu0 0.0
    %3384 = vmatprep.subr.mxu0 0.0
    %3385 = vmatpush2.msra.mxu0 0.0
    %3386 = vmatprep.subr.mxu0 0.0
    %3387 = vmatpush2.msra.mxu0 0.0
    %3388 = vmatprep.subr.mxu0 0.0
    %3389 = vmatpush2.msra.mxu0 0.0
    %3390 = vmatprep.subr.mxu0 0.0
    %3391 = vmatpush2.msra.mxu0 0.0
    %3392 = vmatprep.subr.mxu0 0.0
    %3393 = vmatpush2.msra.mxu0 0.0
    %3394 = vmatprep.subr.mxu0 0.0
    %3395 = vmatpush2.msra.mxu0 0.0
    %3396 = vmatprep.subr.mxu0 0.0
    %3397 = vmatpush2.msra.mxu0 0.0
    %3398 = vmatprep.subr.mxu0 0.0
    %3399 = vmatpush2.msra.mxu0 0.0
    %3400 = vmatprep.subr.mxu0 0.0
    %3401 = vmatpush2.msra.mxu0 0.0
    %3402 = vmatprep.subr.mxu0 0.0
    %3403 = vmatpush2.msra.mxu0 0.0
    %3404 = vmatprep.subr.mxu0 0.0
    %3405 = vmatpush2.msra.mxu0 0.0
    %3406 = vmatprep.subr.mxu0 0.0
    %3407 = vmatpush2.msra.mxu0 0.0
    %3408 = vmatprep.subr.mxu0 0.0
    %3409 = vmatpush2.msra.mxu0 0.0
    %3410 = vmatprep.subr.mxu0 0.0
    %3411 = vmatpush2.msra.mxu0 0.0
    %3412 = vmatprep.subr.mxu0 0.0
    %3413 = vmatpush2.msra.mxu0 0.0
    %3414 = vmatprep.mubr.f32.mxu0 0.0
    %3415 = vmatmul.mubr.f32.gmra.mxu0 %v3342
    %v3416 = vpop.f32.mrf.mxu0
    %v3417 = vadd.f32 %v1176, %v3416
    %v3418 = vpop.f32.mrf.mxu0
    %3419 = vmatprep.mubr.f32.mxu0 0.0
    %3420 = vmatmul.mubr.f32.gmra.mxu0 %v3345
    %v3421 = vpop.f32.mrf.mxu0
    %v3422 = vadd.f32 %v1176, %v3421
    %v3423 = vpop.f32.mrf.mxu0
    %3424 = vmatprep.mubr.f32.mxu0 0.0
    %3425 = vmatmul.mubr.f32.gmra.mxu0 %v3348
    %v3426 = vpop.f32.mrf.mxu0
    %v3427 = vadd.f32 %v1176, %v3426
    %v3428 = vpop.f32.mrf.mxu0
    %3429 = vdwg.mxu0
    %v3430 = vmax.f32 %v3417, 0.0
    %v3431 = vmax.f32 %v3422, 0.0
    %v3432 = vmax.f32 %v3427, 0.0
    %v3434 = vrot.slane %v3432, 7
    %v3438 = vrot.slane %v3430, 7
    %v3439 = vrot.slane %v3431, 7
    %v3440 = vsel %vm883, %v3438, %v3439
    %v3441 = vsel %vm883, %v3439, %v3434
    %v3445 = vsel %vm883, %v3434, %v3438
    %v3446 = vsel %vm3279, %v3445, 0.0
    %v3447 = vsel %vm3280, %v3440, 0.0
    %v3448 = vsel %vm3281, %v3441, 0.0
    %v3449 = vrot.slane %v3430, 1
    %v3450 = vrot.slane %v3431, 1
    %v3451 = vsel %vm85, %v3449, %v3450
    %v3452 = vrot.slane %v3432, 1
    %v3453 = vsel %vm85, %v3450, %v3452
    %v3458 = vsel %vm85, %v3452, %v3449
    %v3459 = vsel %vm3298, %v3451, 0.0
    %v3460 = vsel %vm3299, %v3453, 0.0
    %v3461 = vsel %vm3300, %v3458, 0.0
    %3462 = vrot.lane.b32.xlu0 %v3430, 32
    %v3463 = vpop.permute.xlu0 %3462
    %3464 = vrot.lane.b32.xlu0 %v3431, 32
    %v3465 = vpop.permute.xlu0 %3464
    %3466 = vrot.lane.b32.xlu0 %v3432, 32
    %v3467 = vpop.permute.xlu0 %3466
    %3474 = vrot.lane.b32.xlu0 %v3459, 64
    %v3475 = vpop.permute.xlu0 %3474
    %3476 = vrot.lane.b32.xlu0 %v3460, 64
    %v3477 = vpop.permute.xlu0 %3476
    %3478 = vrot.lane.b32.xlu0 %v3461, 64
    %v3479 = vpop.permute.xlu0 %3478
    %v3483 = vsel %vm253, %v3446, %v3463
    %v3484 = vsel %vm253, %v3447, %v3465
    %v3485 = vsel %vm253, %v3448, %v3467
    %v3486 = vsel %vm270, %v3483, %v3475
    %v3487 = vsel %vm270, %v3484, %v3477
    %v3488 = vsel %vm270, %v3485, %v3479
    %v3490 = vsel %vm293, %v3486, 0
    %v3493 = vsel %vm293, %v3487, 0
    %v3496 = vsel %vm293, %v3488, 0
    %3498 = vmatprep.subr.mxu0 0.0
    %3499 = vmatpush1.msra.mxu0 0.0
    %3500 = vmatprep.subr.mxu0 0.0
    %3501 = vmatpush1.msra.mxu0 0.0
    %3502 = vmatprep.subr.mxu0 0.0
    %3503 = vmatpush1.msra.mxu0 0.0
    %3504 = vmatprep.subr.mxu0 0.0
    %3505 = vmatpush1.msra.mxu0 0.0
    %3506 = vmatprep.subr.mxu0 0.0
    %3507 = vmatpush1.msra.mxu0 %v51
    %3508 = vmatprep.subr.mxu0 0.0
    %3509 = vmatpush1.msra.mxu0 %v50
    %3510 = vmatprep.subr.mxu0 0.0
    %3511 = vmatpush1.msra.mxu0 %v49
    %3512 = vmatprep.subr.mxu0 0.0
    %3513 = vmatpush1.msra.mxu0 %v48
    %3514 = vmatprep.subr.mxu0 0.0
    %3515 = vmatpush1.msra.mxu0 %v47
    %3516 = vmatprep.subr.mxu0 0.0
    %3517 = vmatpush1.msra.mxu0 %v46
    %3518 = vmatprep.subr.mxu0 0.0
    %3519 = vmatpush1.msra.mxu0 %v45
    %3520 = vmatprep.subr.mxu0 0.0
    %3521 = vmatpush1.msra.mxu0 %v44
    %3522 = vmatprep.subr.mxu0 0.0
    %3523 = vmatpush1.msra.mxu0 %v43
    %3524 = vmatprep.subr.mxu0 0.0
    %3525 = vmatpush1.msra.mxu0 %v42
    %3526 = vmatprep.subr.mxu0 0.0
    %3527 = vmatpush1.msra.mxu0 %v41
    %3528 = vmatprep.subr.mxu0 0.0
    %3529 = vmatpush1.msra.mxu0 %v40
    %3530 = vmatprep.subr.mxu0 0.0
    %3531 = vmatpush2.msra.mxu0 0.0
    %3532 = vmatprep.subr.mxu0 0.0
    %3533 = vmatpush2.msra.mxu0 0.0
    %3534 = vmatprep.subr.mxu0 0.0
    %3535 = vmatpush2.msra.mxu0 0.0
    %3536 = vmatprep.subr.mxu0 0.0
    %3537 = vmatpush2.msra.mxu0 0.0
    %3538 = vmatprep.subr.mxu0 0.0
    %3539 = vmatpush2.msra.mxu0 0.0
    %3540 = vmatprep.subr.mxu0 0.0
    %3541 = vmatpush2.msra.mxu0 0.0
    %3542 = vmatprep.subr.mxu0 0.0
    %3543 = vmatpush2.msra.mxu0 0.0
    %3544 = vmatprep.subr.mxu0 0.0
    %3545 = vmatpush2.msra.mxu0 0.0
    %3546 = vmatprep.subr.mxu0 0.0
    %3547 = vmatpush2.msra.mxu0 0.0
    %3548 = vmatprep.subr.mxu0 0.0
    %3549 = vmatpush2.msra.mxu0 0.0
    %3550 = vmatprep.subr.mxu0 0.0
    %3551 = vmatpush2.msra.mxu0 0.0
    %3552 = vmatprep.subr.mxu0 0.0
    %3553 = vmatpush2.msra.mxu0 0.0
    %3554 = vmatprep.subr.mxu0 0.0
    %3555 = vmatpush2.msra.mxu0 0.0
    %3556 = vmatprep.subr.mxu0 0.0
    %3557 = vmatpush2.msra.mxu0 0.0
    %3558 = vmatprep.subr.mxu0 0.0
    %3559 = vmatpush2.msra.mxu0 0.0
    %3560 = vmatprep.subr.mxu0 0.0
    %3561 = vmatpush2.msra.mxu0 0.0
    %3562 = vmatprep.mubr.f32.mxu0 0.0
    %3563 = vmatmul.mubr.f32.gmra.mxu0 %v3490
    %v3564 = vpop.f32.mrf.mxu0
    %v3565 = vadd.f32 %v1176, %v3564
    %v3566 = vpop.f32.mrf.mxu0
    %3567 = vmatprep.mubr.f32.mxu0 0.0
    %3568 = vmatmul.mubr.f32.gmra.mxu0 %v3493
    %v3569 = vpop.f32.mrf.mxu0
    %v3570 = vadd.f32 %v1176, %v3569
    %v3571 = vpop.f32.mrf.mxu0
    %3572 = vmatprep.mubr.f32.mxu0 0.0
    %3573 = vmatmul.mubr.f32.gmra.mxu0 %v3496
    %v3574 = vpop.f32.mrf.mxu0
    %v3575 = vadd.f32 %v1176, %v3574
    %v3576 = vpop.f32.mrf.mxu0
    %3577 = vdwg.mxu0
    %v3578 = vadd.f32 %v3565, %v3224
    %v3579 = vadd.f32 %v3570, %v3229
    %v3580 = vadd.f32 %v3575, %v3234
    %v3584 = vrot.slane %v3578, 1
    %v3585 = vrot.slane %v3579, 1
    %v3586 = vsel %vm85, %v3584, %v3585
    %v3587 = vrot.slane %v3580, 1
    %v3588 = vsel %vm85, %v3585, %v3587
    %v3593 = vsel %vm85, %v3587, %v3584
    %v3594 = vsel %vm3298, %v3586, 0.0
    %v3595 = vsel %vm3299, %v3588, 0.0
    %v3596 = vsel %vm3300, %v3593, 0.0
    %vm3597 = vcmp.le.s32.totalorder %v3273, 0
    %vm3598 = vcmp.le.s32.totalorder %v3274, 0
    %vm3599 = vcmp.le.s32.totalorder %v3275, 0
    %v3600 = vrot.slane %v3578, 2
    %v3601 = vrot.slane %v3579, 2
    %v3602 = vsel %vm120, %v3600, %v3601
    %v3603 = vrot.slane %v3580, 2
    %v3604 = vsel %vm120, %v3601, %v3603
    %v3609 = vsel %vm120, %v3603, %v3600
    %v3610 = vsel %vm3597, %v3602, 0.0
    %v3611 = vsel %vm3598, %v3604, 0.0
    %v3612 = vsel %vm3599, %v3609, 0.0
    %v3613 = vmax.f32 %v3578, %v3594
    %v3614 = vmax.f32 %v3579, %v3595
    %v3615 = vmax.f32 %v3580, %v3596
    %v3616 = vmax.f32 %v3613, %v3610
    %v3617 = vmax.f32 %v3614, %v3611
    %v3618 = vmax.f32 %v3615, %v3612
    %vm3619 = vcmp.ge.s32.totalorder %v488, 1
    %v3620 = vsel %vm3619, 1, 0
    %vm3621 = vcmp.ge.s32.totalorder %v488, 2
    %v3622 = vsel %vm3621, 1, 0
    %v3623 = vadd.s32 %v3620, %v3622
    %v3624 = vadd.s32 %v3623, %v3084
    %vm3625 = vcmp.ge.s32.totalorder %v488, 4
    %v3626 = vsel %vm3625, 1, 0
    %v3627 = vadd.s32 %v3624, %v3626
    %vm3628 = vcmp.ge.s32.totalorder %v488, 5
    %v3629 = vsel %vm3628, 1, 0
    %v3630 = vadd.s32 %v3627, %v3629
    %v3631 = vadd.s32 %v3630, %v3090
    %v3632 = vadd.s32 %v3631, %v2089
    %v3633 = vadd.s32 %v2222, %v3632
    %vm3634 = vcmp.eq.s32.totalorder %v2081, %v3633
    %v3635 = vsel %vm3634, 1, 0
    %v3636 = vcvt.s32.f32 %v3635
    %vm3637 = vcmask 195584
    %v3639 = vsel %vm3637, %v3636, 0
    %3641 = vmatprep.subr.mxu0 0.0
    %3642 = vmatpush1.msra.mxu0 0.0
    %3643 = vmatprep.subr.mxu0 0.0
    %3644 = vmatpush1.msra.mxu0 0.0
    %3645 = vmatprep.subr.mxu0 0.0
    %3646 = vmatpush1.msra.mxu0 0.0
    %3647 = vmatprep.subr.mxu0 0.0
    %3648 = vmatpush1.msra.mxu0 0.0
    %3649 = vmatprep.subr.mxu0 0.0
    %3650 = vmatpush1.msra.mxu0 0.0
    %3651 = vmatprep.subr.mxu0 0.0
    %3652 = vmatpush1.msra.mxu0 0.0
    %3653 = vmatprep.subr.mxu0 0.0
    %3654 = vmatpush1.msra.mxu0 0.0
    %3655 = vmatprep.subr.mxu0 0.0
    %3656 = vmatpush1.msra.mxu0 0.0
    %3657 = vmatprep.subr.mxu0 0.0
    %3658 = vmatpush1.msra.mxu0 0.0
    %3659 = vmatprep.subr.mxu0 0.0
    %3660 = vmatpush1.msra.mxu0 0.0
    %3661 = vmatprep.subr.mxu0 0.0
    %3662 = vmatpush1.msra.mxu0 0.0
    %3663 = vmatprep.subr.mxu0 0.0
    %3664 = vmatpush1.msra.mxu0 0.0
    %3665 = vmatprep.subr.mxu0 0.0
    %3666 = vmatpush1.msra.mxu0 0.0
    %3667 = vmatprep.subr.mxu0 0.0
    %3668 = vmatpush1.msra.mxu0 %v3618
    %3669 = vmatprep.subr.mxu0 0.0
    %3670 = vmatpush1.msra.mxu0 %v3617
    %3671 = vmatprep.subr.mxu0 0.0
    %3672 = vmatpush1.msra.mxu0 %v3616
    %3673 = vmatprep.subr.mxu0 0.0
    %3674 = vmatpush2.msra.mxu0 0.0
    %3675 = vmatprep.subr.mxu0 0.0
    %3676 = vmatpush2.msra.mxu0 0.0
    %3677 = vmatprep.subr.mxu0 0.0
    %3678 = vmatpush2.msra.mxu0 0.0
    %3679 = vmatprep.subr.mxu0 0.0
    %3680 = vmatpush2.msra.mxu0 0.0
    %3681 = vmatprep.subr.mxu0 0.0
    %3682 = vmatpush2.msra.mxu0 0.0
    %3683 = vmatprep.subr.mxu0 0.0
    %3684 = vmatpush2.msra.mxu0 0.0
    %3685 = vmatprep.subr.mxu0 0.0
    %3686 = vmatpush2.msra.mxu0 0.0
    %3687 = vmatprep.subr.mxu0 0.0
    %3688 = vmatpush2.msra.mxu0 0.0
    %3689 = vmatprep.subr.mxu0 0.0
    %3690 = vmatpush2.msra.mxu0 0.0
    %3691 = vmatprep.subr.mxu0 0.0
    %3692 = vmatpush2.msra.mxu0 0.0
    %3693 = vmatprep.subr.mxu0 0.0
    %3694 = vmatpush2.msra.mxu0 0.0
    %3695 = vmatprep.subr.mxu0 0.0
    %3696 = vmatpush2.msra.mxu0 0.0
    %3697 = vmatprep.subr.mxu0 0.0
    %3698 = vmatpush2.msra.mxu0 0.0
    %3699 = vmatprep.subr.mxu0 0.0
    %3700 = vmatpush2.msra.mxu0 0.0
    %3701 = vmatprep.subr.mxu0 0.0
    %3702 = vmatpush2.msra.mxu0 0.0
    %3703 = vmatprep.subr.mxu0 0.0
    %3704 = vmatpush2.msra.mxu0 0.0
    %3705 = vmatprep.mubr.f32.mxu0 0.0
    %3706 = vmatmul.mubr.f32.gmra.mxu0 %v3639
    %v3707 = vpop.f32.mrf.mxu0
    %v3708 = vadd.f32 0.0, %v3707
    %v3709 = vpop.f32.mrf.mxu0
    %3710 = vdwg.mxu0
    %v3711 = vsub.s32 %v488, 1
    %v3712 = vsel %vm3619, %v3711, %v488
    %v3713 = vsub.s32 %v488, 2
    %v3714 = vsel %vm3621, %v3713, %v3712
    %v3715 = vsel %vm3081, %v3237, %v3714
    %v3716 = vsub.s32 %v488, 4
    %v3717 = vsel %vm3625, %v3716, %v3715
    %v3718 = vsub.s32 %v488, 5
    %v3719 = vsel %vm3628, %v3718, %v3717
    %v3720 = vsel %vm3087, %v3243, %v3719
    %v3721 = vsel %vm2082, %v2364, %v3720
    %v3722 = vmax.f32 %v3708, 0.0
    %vm3723 = vcmp.ge.s32.totalorder %v3721, 1
    %v3725 = vrot.slane %v3722, 7
    %v3727 = vsel %vm883, %v3725, %v3725
    %v3728 = vsel %vm3723, %v3727, 0.0
    %vm3729 = vcmp.le.s32.totalorder %v3721, 4294967295
    %v3730 = vrot.slane %v3722, 1
    %v3732 = vsel %vm85, %v3730, %v3730
    %v3733 = vsel %vm3729, %v3732, 0.0
    %3734 = vrot.lane.b32.xlu0 %v3722, 32
    %v3735 = vpop.permute.xlu0 %3734
    %3738 = vrot.lane.b32.xlu0 %v3733, 64
    %v3739 = vpop.permute.xlu0 %3738
    %v3741 = vsel %vm253, %v3728, %v3735
    %v3742 = vsel %vm270, %v3741, %v3739
    %v3744 = vsel %vm293, %v3742, 0
    %3746 = vmatprep.subr.mxu0 0.0
    %3747 = vmatpush1.msra.mxu0 0.0
    %3748 = vmatprep.subr.mxu0 0.0
    %3749 = vmatpush1.msra.mxu0 0.0
    %3750 = vmatprep.subr.mxu0 0.0
    %3751 = vmatpush1.msra.mxu0 0.0
    %3752 = vmatprep.subr.mxu0 0.0
    %3753 = vmatpush1.msra.mxu0 0.0
    %3754 = vmatprep.subr.mxu0 0.0
    %3755 = vmatpush1.msra.mxu0 %v51
    %3756 = vmatprep.subr.mxu0 0.0
    %3757 = vmatpush1.msra.mxu0 %v50
    %3758 = vmatprep.subr.mxu0 0.0
    %3759 = vmatpush1.msra.mxu0 %v49
    %3760 = vmatprep.subr.mxu0 0.0
    %3761 = vmatpush1.msra.mxu0 %v48
    %3762 = vmatprep.subr.mxu0 0.0
    %3763 = vmatpush1.msra.mxu0 %v47
    %3764 = vmatprep.subr.mxu0 0.0
    %3765 = vmatpush1.msra.mxu0 %v46
    %3766 = vmatprep.subr.mxu0 0.0
    %3767 = vmatpush1.msra.mxu0 %v45
    %3768 = vmatprep.subr.mxu0 0.0
    %3769 = vmatpush1.msra.mxu0 %v44
    %3770 = vmatprep.subr.mxu0 0.0
    %3771 = vmatpush1.msra.mxu0 %v43
    %3772 = vmatprep.subr.mxu0 0.0
    %3773 = vmatpush1.msra.mxu0 %v42
    %3774 = vmatprep.subr.mxu0 0.0
    %3775 = vmatpush1.msra.mxu0 %v41
    %3776 = vmatprep.subr.mxu0 0.0
    %3777 = vmatpush1.msra.mxu0 %v40
    %3778 = vmatprep.subr.mxu0 0.0
    %3779 = vmatpush2.msra.mxu0 0.0
    %3780 = vmatprep.subr.mxu0 0.0
    %3781 = vmatpush2.msra.mxu0 0.0
    %3782 = vmatprep.subr.mxu0 0.0
    %3783 = vmatpush2.msra.mxu0 0.0
    %3784 = vmatprep.subr.mxu0 0.0
    %3785 = vmatpush2.msra.mxu0 0.0
    %3786 = vmatprep.subr.mxu0 0.0
    %3787 = vmatpush2.msra.mxu0 0.0
    %3788 = vmatprep.subr.mxu0 0.0
    %3789 = vmatpush2.msra.mxu0 0.0
    %3790 = vmatprep.subr.mxu0 0.0
    %3791 = vmatpush2.msra.mxu0 0.0
    %3792 = vmatprep.subr.mxu0 0.0
    %3793 = vmatpush2.msra.mxu0 0.0
    %3794 = vmatprep.subr.mxu0 0.0
    %3795 = vmatpush2.msra.mxu0 0.0
    %3796 = vmatprep.subr.mxu0 0.0
    %3797 = vmatpush2.msra.mxu0 0.0
    %3798 = vmatprep.subr.mxu0 0.0
    %3799 = vmatpush2.msra.mxu0 0.0
    %3800 = vmatprep.subr.mxu0 0.0
    %3801 = vmatpush2.msra.mxu0 0.0
    %3802 = vmatprep.subr.mxu0 0.0
    %3803 = vmatpush2.msra.mxu0 0.0
    %3804 = vmatprep.subr.mxu0 0.0
    %3805 = vmatpush2.msra.mxu0 0.0
    %3806 = vmatprep.subr.mxu0 0.0
    %3807 = vmatpush2.msra.mxu0 0.0
    %3808 = vmatprep.subr.mxu0 0.0
    %3809 = vmatpush2.msra.mxu0 0.0
    %3810 = vmatprep.mubr.f32.mxu0 0.0
    %3811 = vmatmul.mubr.f32.gmra.mxu0 %v3744
    %v3812 = vpop.f32.mrf.mxu0
    %v3813 = vadd.f32 %v1176, %v3812
    %v3814 = vpop.f32.mrf.mxu0
    %3815 = vdwg.mxu0
    %v3816 = vmax.f32 %v3813, 0.0
    %v3818 = vrot.slane %v3816, 7
    %v3820 = vsel %vm883, %v3818, %v3818
    %v3821 = vsel %vm3723, %v3820, 0.0
    %v3822 = vrot.slane %v3816, 1
    %v3824 = vsel %vm85, %v3822, %v3822
    %v3825 = vsel %vm3729, %v3824, 0.0
    %3826 = vrot.lane.b32.xlu0 %v3816, 32
    %v3827 = vpop.permute.xlu0 %3826
    %3830 = vrot.lane.b32.xlu0 %v3825, 64
    %v3831 = vpop.permute.xlu0 %3830
    %v3833 = vsel %vm253, %v3821, %v3827
    %v3834 = vsel %vm270, %v3833, %v3831
    %v3836 = vsel %vm293, %v3834, 0
    %3838 = vmatprep.subr.mxu0 0.0
    %3839 = vmatpush1.msra.mxu0 0.0
    %3840 = vmatprep.subr.mxu0 0.0
    %3841 = vmatpush1.msra.mxu0 0.0
    %3842 = vmatprep.subr.mxu0 0.0
    %3843 = vmatpush1.msra.mxu0 0.0
    %3844 = vmatprep.subr.mxu0 0.0
    %3845 = vmatpush1.msra.mxu0 0.0
    %3846 = vmatprep.subr.mxu0 0.0
    %3847 = vmatpush1.msra.mxu0 %v51
    %3848 = vmatprep.subr.mxu0 0.0
    %3849 = vmatpush1.msra.mxu0 %v50
    %3850 = vmatprep.subr.mxu0 0.0
    %3851 = vmatpush1.msra.mxu0 %v49
    %3852 = vmatprep.subr.mxu0 0.0
    %3853 = vmatpush1.msra.mxu0 %v48
    %3854 = vmatprep.subr.mxu0 0.0
    %3855 = vmatpush1.msra.mxu0 %v47
    %3856 = vmatprep.subr.mxu0 0.0
    %3857 = vmatpush1.msra.mxu0 %v46
    %3858 = vmatprep.subr.mxu0 0.0
    %3859 = vmatpush1.msra.mxu0 %v45
    %3860 = vmatprep.subr.mxu0 0.0
    %3861 = vmatpush1.msra.mxu0 %v44
    %3862 = vmatprep.subr.mxu0 0.0
    %3863 = vmatpush1.msra.mxu0 %v43
    %3864 = vmatprep.subr.mxu0 0.0
    %3865 = vmatpush1.msra.mxu0 %v42
    %3866 = vmatprep.subr.mxu0 0.0
    %3867 = vmatpush1.msra.mxu0 %v41
    %3868 = vmatprep.subr.mxu0 0.0
    %3869 = vmatpush1.msra.mxu0 %v40
    %3870 = vmatprep.subr.mxu0 0.0
    %3871 = vmatpush2.msra.mxu0 0.0
    %3872 = vmatprep.subr.mxu0 0.0
    %3873 = vmatpush2.msra.mxu0 0.0
    %3874 = vmatprep.subr.mxu0 0.0
    %3875 = vmatpush2.msra.mxu0 0.0
    %3876 = vmatprep.subr.mxu0 0.0
    %3877 = vmatpush2.msra.mxu0 0.0
    %3878 = vmatprep.subr.mxu0 0.0
    %3879 = vmatpush2.msra.mxu0 0.0
    %3880 = vmatprep.subr.mxu0 0.0
    %3881 = vmatpush2.msra.mxu0 0.0
    %3882 = vmatprep.subr.mxu0 0.0
    %3883 = vmatpush2.msra.mxu0 0.0
    %3884 = vmatprep.subr.mxu0 0.0
    %3885 = vmatpush2.msra.mxu0 0.0
    %3886 = vmatprep.subr.mxu0 0.0
    %3887 = vmatpush2.msra.mxu0 0.0
    %3888 = vmatprep.subr.mxu0 0.0
    %3889 = vmatpush2.msra.mxu0 0.0
    %3890 = vmatprep.subr.mxu0 0.0
    %3891 = vmatpush2.msra.mxu0 0.0
    %3892 = vmatprep.subr.mxu0 0.0
    %3893 = vmatpush2.msra.mxu0 0.0
    %3894 = vmatprep.subr.mxu0 0.0
    %3895 = vmatpush2.msra.mxu0 0.0
    %3896 = vmatprep.subr.mxu0 0.0
    %3897 = vmatpush2.msra.mxu0 0.0
    %3898 = vmatprep.subr.mxu0 0.0
    %3899 = vmatpush2.msra.mxu0 0.0
    %3900 = vmatprep.subr.mxu0 0.0
    %3901 = vmatpush2.msra.mxu0 0.0
    %3902 = vmatprep.mubr.f32.mxu0 0.0
    %3903 = vmatmul.mubr.f32.gmra.mxu0 %v3836
    %v3904 = vpop.f32.mrf.mxu0
    %v3905 = vadd.f32 %v1176, %v3904
    %v3906 = vpop.f32.mrf.mxu0
    %3907 = vdwg.mxu0
    %v3908 = vadd.f32 %v3905, %v3708
    %v3909 = vld [vmem:[%s5] sm:$0xff]
    %v3910 = vld [vmem:[%s5 + $0x8] sm:$0xff]
    %v3911 = vld [vmem:[%s5 + $0x10] sm:$0xff]
    %v3912 = vld [vmem:[%s5 + $0x18] sm:$0xff]
    %v3913 = vld [vmem:[%s6] sm:$0x1]
    %v3915 = vlaneseq
    %v3916 = vshrl.u32 %v3915, 7
    %v3917 = vsub.s32 0, %v3916
    %v3918 = vrot.slane %v3913, %v3917
    %v3921 = vsel %vm253, %v3908, 0
    %3923 = vmatprep.subr.mxu0 0.0
    %3924 = vmatpush1.msra.mxu0 0.0
    %3925 = vmatprep.subr.mxu0 0.0
    %3926 = vmatpush1.msra.mxu0 0.0
    %3927 = vmatprep.subr.mxu0 0.0
    %3928 = vmatpush1.msra.mxu0 0.0
    %3929 = vmatprep.subr.mxu0 0.0
    %3930 = vmatpush1.msra.mxu0 0.0
    %3931 = vmatprep.subr.mxu0 0.0
    %3932 = vmatpush1.msra.mxu0 0.0
    %3933 = vmatprep.subr.mxu0 0.0
    %3934 = vmatpush1.msra.mxu0 0.0
    %3935 = vmatprep.subr.mxu0 0.0
    %3936 = vmatpush1.msra.mxu0 0.0
    %3937 = vmatprep.subr.mxu0 0.0
    %3938 = vmatpush1.msra.mxu0 0.0
    %3939 = vmatprep.subr.mxu0 0.0
    %3940 = vmatpush1.msra.mxu0 0.0
    %3941 = vmatprep.subr.mxu0 0.0
    %3942 = vmatpush1.msra.mxu0 0.0
    %3943 = vmatprep.subr.mxu0 0.0
    %3944 = vmatpush1.msra.mxu0 0.0
    %3945 = vmatprep.subr.mxu0 0.0
    %3946 = vmatpush1.msra.mxu0 0.0
    %3947 = vmatprep.subr.mxu0 0.0
    %3948 = vmatpush1.msra.mxu0 %v3912
    %3949 = vmatprep.subr.mxu0 0.0
    %3950 = vmatpush1.msra.mxu0 %v3911
    %3951 = vmatprep.subr.mxu0 0.0
    %3952 = vmatpush1.msra.mxu0 %v3910
    %3953 = vmatprep.subr.mxu0 0.0
    %3954 = vmatpush1.msra.mxu0 %v3909
    %3955 = vmatprep.subr.mxu0 0.0
    %3956 = vmatpush2.msra.mxu0 0.0
    %3957 = vmatprep.subr.mxu0 0.0
    %3958 = vmatpush2.msra.mxu0 0.0
    %3959 = vmatprep.subr.mxu0 0.0
    %3960 = vmatpush2.msra.mxu0 0.0
    %3961 = vmatprep.subr.mxu0 0.0
    %3962 = vmatpush2.msra.mxu0 0.0
    %3963 = vmatprep.subr.mxu0 0.0
    %3964 = vmatpush2.msra.mxu0 0.0
    %3965 = vmatprep.subr.mxu0 0.0
    %3966 = vmatpush2.msra.mxu0 0.0
    %3967 = vmatprep.subr.mxu0 0.0
    %3968 = vmatpush2.msra.mxu0 0.0
    %3969 = vmatprep.subr.mxu0 0.0
    %3970 = vmatpush2.msra.mxu0 0.0
    %3971 = vmatprep.subr.mxu0 0.0
    %3972 = vmatpush2.msra.mxu0 0.0
    %3973 = vmatprep.subr.mxu0 0.0
    %3974 = vmatpush2.msra.mxu0 0.0
    %3975 = vmatprep.subr.mxu0 0.0
    %3976 = vmatpush2.msra.mxu0 0.0
    %3977 = vmatprep.subr.mxu0 0.0
    %3978 = vmatpush2.msra.mxu0 0.0
    %3979 = vmatprep.subr.mxu0 0.0
    %3980 = vmatpush2.msra.mxu0 0.0
    %3981 = vmatprep.subr.mxu0 0.0
    %3982 = vmatpush2.msra.mxu0 0.0
    %3983 = vmatprep.subr.mxu0 0.0
    %3984 = vmatpush2.msra.mxu0 0.0
    %3985 = vmatprep.subr.mxu0 0.0
    %3986 = vmatpush2.msra.mxu0 0.0
    %3987 = vmatprep.mubr.f32.mxu0 0.0
    %3988 = vmatmul.mubr.f32.gmra.mxu0 %v3921
    %v3989 = vpop.f32.mrf.mxu0
    %v3990 = vadd.f32 %v3918, %v3989
    %v3991 = vpop.f32.mrf.mxu0
    %3992 = vdwg.mxu0
    %3993 = vst [vmem:[#allocation2] sm:$0xff] %v3990
    // Predicated region
    $region30: #{tpu_custom_call.1} parent=1 // pred_check
      _
    $region31: #{tpu_custom_call.1} parent=1 // pred_check_branch
      %3995 = sbr.rel (0) target = $region33
    $region32: #{tpu_custom_call.1} parent=1 // pred_region
      %s3997 = ssub.s32 128, 128
      %3998 = vsyncadd [#allocation3], %s3997
      %s4000 = sshll.u32 [#allocation2], 4
      %s4001 = int_to_ptr.vmem [resolvable:$true] %s4000
      %4003 = dma.vmem_to_hbm [thread:$0]  %s4001, 128, %s7, [#allocation3]
    $region33: #{tpu_custom_call.1} parent=1 // pred_fallthru
      _
    // Predicated region
    $region34: #{tpu_custom_call.1} parent=1 // pred_check
      _
    $region35: #{tpu_custom_call.1} parent=1 // pred_check_branch
      %4005 = sbr.rel (0) target = $region37
    $region36: #{tpu_custom_call.1} parent=1 // pred_region
      %4006 = dma.done [#allocation3], 128
    $region37: #{tpu_custom_call.1} parent=1 // pred_fallthru
      _
    %4007 = vsyncpa [#allocation3], 1

</llo_original>
